<compile_context>
chip_gen: v6e
topology: v6e:2x2x1
jax: 0.10.0
libtpu: 0.0.40
codegen_flags: <defaults>
</compile_context>

<pallas_src>
import functools
import math

import jax
import jax.numpy as jnp
from jax.experimental import pallas as pl
from jax.experimental.pallas import tpu as pltpu

EPS = 1e-12  # matches the reference module's norm_eps default


# ----------------------------- in-kernel helpers -----------------------------

def _layernorm(x, g, b, eps=EPS):
    mu = jnp.mean(x, axis=-1, keepdims=True)
    var = jnp.mean((x - mu) ** 2, axis=-1, keepdims=True)
    return (x - mu) * jax.lax.rsqrt(var + eps) * g + b


def _gelu(x):
    # TODO(synk): torch nn.GELU defaults to the exact erf form; tanh approximation used here.
    c = 0.7978845608028654
    return 0.5 * x * (1.0 + jnp.tanh(c * (x + 0.044715 * x * x * x)))


# ------------------------------ Pallas kernels --------------------------------

def _patch_embed_kernel(p_ref, w_ref, b_ref, cls_ref, pos_ref, o_ref):
    # p_ref: [N, C*p*p] f32, w_ref: [C*p*p, D] bf16, b/cls: [1, D], pos: [N+1, D]
    emb = jnp.dot(p_ref[...].astype(jnp.bfloat16), w_ref[...],
                  preferred_element_type=jnp.float32) + b_ref[...]
    # Direct slice stores instead of a concatenate (avoids an extra VMEM copy).
    o_ref[0:1, :] = cls_ref[...] + pos_ref[0:1, :]
    o_ref[1:, :] = emb + pos_ref[1:, :]


def _encoder_stack_kernel(x_ref,
                          ln1g, ln1b, wq, wk, wv, bq, bk, bv, wo, bo,
                          ln2g, ln2b, w1, b1, w2, b2,
                          o_ref, *, num_heads):
    # Grid = (batch, layer).  o_ref block index depends only on batch, so the
    # token state stays resident in VMEM across the layer axis.
    layer = pl.program_id(1)

    @pl.when(layer == 0)
    def _():
        o_ref[...] = x_ref[...]

    x = o_ref[...].astype(jnp.float32)            # [S, D] residual stream (f32)
    S, D = x.shape
    H = num_heads
    dh = D // H
    scale = 1.0 / math.sqrt(dh)

    # ---------------- attention: x + MHA(LN(x)) ----------------
    h = _layernorm(x, ln1g[...], ln1b[...]).astype(jnp.bfloat16)      # [S, D]
    hb = jnp.broadcast_to(h, (H, S, D))                               # head-batched

    q = jnp.einsum('hsd,hde->hse', hb, wq[...],
                   preferred_element_type=jnp.float32) + bq[...]      # [H, S, dh]
    k = jnp.einsum('hsd,hde->hse', hb, wk[...],
                   preferred_element_type=jnp.float32) + bk[...]
    v = jnp.einsum('hsd,hde->hse', hb, wv[...],
                   preferred_element_type=jnp.float32) + bv[...]

    s = jnp.einsum('hqe,hke->hqk', q.astype(jnp.bfloat16), k.astype(jnp.bfloat16),
                   preferred_element_type=jnp.float32) * scale        # [H, S, S]
    s = s - jnp.max(s, axis=-1, keepdims=True)
    p = jnp.exp(s)
    p = p * pl.reciprocal(jnp.sum(p, axis=-1, keepdims=True), approx=True)

    ctx = jnp.einsum('hqk,hke->hqe', p.astype(jnp.bfloat16), v.astype(jnp.bfloat16),
                     preferred_element_type=jnp.float32)              # [H, S, dh]
    attn = jnp.sum(jnp.einsum('hse,hed->hsd', ctx.astype(jnp.bfloat16), wo[...],
                              preferred_element_type=jnp.float32),
                   axis=0) + bo[...]                                  # [S, D]
    x = x + attn                                   # dropout = identity at inference

    # ---------------- MLP: x + MLP(LN(x)) ----------------
    h2 = _layernorm(x, ln2g[...], ln2b[...]).astype(jnp.bfloat16)
    m = _gelu(jnp.dot(h2, w1[...], preferred_element_type=jnp.float32) + b1[...])
    m = jnp.dot(m.astype(jnp.bfloat16), w2[...],
                preferred_element_type=jnp.float32) + b2[...]
    o_ref[...] = (x + m).astype(o_ref.dtype)


def _head_kernel(cls_ref, lnc_g, lnc_b, lnh_g, lnh_b, w1, b1, w2, b2, o_ref):
    # Mirrors: y = layer_norm(cls); out = mlp_head(y) = Linear(Dropout(Linear(LN(y))))
    # NOTE: the reference applies LayerNorm(num_classes) directly to the cls
    # token (width embed_dim) — only well-defined when num_classes == embed_dim.
    y = _layernorm(cls_ref[...].astype(jnp.float32), lnc_g[...], lnc_b[...])
    y = _layernorm(y, lnh_g[...], lnh_b[...])
    h = jnp.dot(y.astype(jnp.bfloat16), w1[...],
                preferred_element_type=jnp.float32) + b1[...]
    # Dropout is identity at inference.
    o = jnp.dot(h.astype(jnp.bfloat16), w2[...],
                preferred_element_type=jnp.float32) + b2[...]
    o_ref[...] = o.astype(o_ref.dtype)


# ------------------------------ wrappers ---------------------------------------

def patch_embed(patches, w, b, cls_tok, pos):
    B, N, P = patches.shape
    D = w.shape[1]
    S = N + 1
    return pl.pallas_call(
        _patch_embed_kernel,
        out_shape=jax.ShapeDtypeStruct((B, S, D), jnp.float32),
        grid=(B,),
        in_specs=[
            pl.BlockSpec((None, N, P), lambda i: (i, 0, 0)),
            pl.BlockSpec((P, D), lambda i: (0, 0)),
            pl.BlockSpec((1, D), lambda i: (0, 0)),
            pl.BlockSpec((1, D), lambda i: (0, 0)),
            pl.BlockSpec((S, D), lambda i: (0, 0)),
        ],
        out_specs=pl.BlockSpec((None, S, D), lambda i: (i, 0, 0)),
        compiler_params=pltpu.CompilerParams(dimension_semantics=("parallel",)),
    )(patches, w, b, cls_tok, pos)


def encoder_stack(tokens, sp, num_heads):
    B, S, D = tokens.shape
    depth, H, _, dh = sp["wq"].shape
    M = sp["w1"].shape[-1]

    def w_spec(shape):
        # Stacked [depth, ...] weight: block = one layer's slice, indexed by l.
        return pl.BlockSpec((None,) + shape, lambda b, l, _s=shape: (l,) + (0,) * len(_s))

    tok_spec = pl.BlockSpec((None, S, D), lambda b, l: (b, 0, 0))

    kern = functools.partial(_encoder_stack_kernel, num_heads=num_heads)
    return pl.pallas_call(
        kern,
        out_shape=jax.ShapeDtypeStruct((B, S, D), jnp.float32),
        grid=(B, depth),
        in_specs=[
            tok_spec,
            w_spec((1, D)), w_spec((1, D)),                             # ln1 g/b
            w_spec((H, D, dh)), w_spec((H, D, dh)), w_spec((H, D, dh)),  # wq wk wv
            w_spec((H, 1, dh)), w_spec((H, 1, dh)), w_spec((H, 1, dh)),  # bq bk bv
            w_spec((H, dh, D)), w_spec((1, D)),                         # wo, bo
            w_spec((1, D)), w_spec((1, D)),                             # ln2 g/b
            w_spec((D, M)), w_spec((1, M)),                             # w1, b1
            w_spec((M, D)), w_spec((1, D)),                             # w2, b2
        ],
        out_specs=tok_spec,
        compiler_params=pltpu.CompilerParams(
            dimension_semantics=("parallel", "arbitrary"),
            vmem_limit_bytes=64 * 1024 * 1024),
    )(tokens,
      sp["ln1_g"], sp["ln1_b"],
      sp["wq"], sp["wk"], sp["wv"],
      sp["bq"], sp["bk"], sp["bv"],
      sp["wo"], sp["bo"],
      sp["ln2_g"], sp["ln2_b"],
      sp["w1"], sp["b1"], sp["w2"], sp["b2"])


def head(cls, hp):
    B, _ = cls.shape
    C = hp["w2"].shape[1]
    return pl.pallas_call(
        _head_kernel,
        out_shape=jax.ShapeDtypeStruct((B, C), jnp.float32),
    )(cls, hp["lnc_g"], hp["lnc_b"], hp["lnh_g"], hp["lnh_b"],
      hp["w1"], hp["b1"], hp["w2"], hp["b2"])


# ------------------------------ JAX glue ----------------------------------------

def extract_patches(x, p):
    """[B, C, H, W] -> [B, N, C*p*p] (matches Conv2d(k=p, stride=p) flattening)."""
    B, C, H, W = x.shape
    gh, gw = H // p, W // p
    x = x.reshape(B, C, gh, p, gw, p)
    x = x.transpose(0, 2, 4, 1, 3, 5)  # [B, gh, gw, C, p, p]
    return x.reshape(B, gh * gw, C * p * p)


def vit_forward(x, params, *, patch_size, num_heads):
    patches = extract_patches(x, patch_size)
    tokens = patch_embed(patches, params["patch_w"], params["patch_b"],
                         params["cls"], params["pos"])
    tokens = encoder_stack(tokens, params["stack"], num_heads)
    cls = tokens[:, 0, :]                 # encoded[:, 0]
    return head(cls, params["head"])


def init_params(key, *, depth, num_heads, embed_dim, mlp_dim, num_classes,
                patch_size, in_chans, num_patches):
    D, M, H = embed_dim, mlp_dim, num_heads
    dh = D // H
    P = in_chans * patch_size * patch_size
    S = num_patches + 1
    bf16 = jnp.bfloat16

    def nrm(k, shape, dtype=jnp.float32, scale=0.02):
        return (scale * jax.random.normal(k, shape, dtype=jnp.float32)).astype(dtype)

    keys = jax.random.split(key, 11)
    return {
        "patch_w": nrm(keys[0], (P, D), bf16),
        "patch_b": jnp.zeros((1, D), jnp.float32),
        "cls": nrm(keys[1], (1, D)),
        "pos": nrm(keys[2], (S, D)),
        "stack": {
            "ln1_g": jnp.ones((depth, 1, D), jnp.float32),
            "ln1_b": jnp.zeros((depth, 1, D), jnp.float32),
            "wq": nrm(keys[3], (depth, H, D, dh), bf16),
            "wk": nrm(keys[4], (depth, H, D, dh), bf16),
            "wv": nrm(keys[5], (depth, H, D, dh), bf16),
            "bq": jnp.zeros((depth, H, 1, dh), jnp.float32),
            "bk": jnp.zeros((depth, H, 1, dh), jnp.float32),
            "bv": jnp.zeros((depth, H, 1, dh), jnp.float32),
            "wo": nrm(keys[6], (depth, H, dh, D), bf16),
            "bo": jnp.zeros((depth, 1, D), jnp.float32),
            "ln2_g": jnp.ones((depth, 1, D), jnp.float32),
            "ln2_b": jnp.zeros((depth, 1, D), jnp.float32),
            "w1": nrm(keys[7], (depth, D, M), bf16),
            "b1": jnp.zeros((depth, 1, M), jnp.float32),
            "w2": nrm(keys[8], (depth, M, D), bf16),
            "b2": jnp.zeros((depth, 1, D), jnp.float32),
        },
        "head": {
            "lnc_g": jnp.ones((1, num_classes), jnp.float32),
            "lnc_b": jnp.zeros((1, num_classes), jnp.float32),
            "lnh_g": jnp.ones((1, D), jnp.float32),
            "lnh_b": jnp.zeros((1, D), jnp.float32),
            "w1": nrm(keys[9], (D, M), bf16),
            "b1": jnp.zeros((1, M), jnp.float32),
            "w2": nrm(keys[10], (M, num_classes), bf16),
            "b2": jnp.zeros((1, num_classes), jnp.float32),
        },
    }


if __name__ == "__main__":
    # Small synthetic config; embed_dim = 128 keeps every output block lane-dense.
    depth, num_heads, embed_dim, mlp_dim = 2, 4, 128, 256
    patch_size, image_size, in_chans = 8, 16, 3
    # NOTE: the reference forward applies LayerNorm(num_classes) directly to the
    # cls token (width embed_dim); that is only well-defined when
    # num_classes == embed_dim, so the small config uses num_classes = embed_dim.
    num_classes = embed_dim
    batch = 2
    num_patches = (image_size // patch_size) ** 2  # 4 patches -> 5 tokens

    key = jax.random.PRNGKey(0)
    kx, kp = jax.random.split(key)
    x = jax.random.normal(kx, (batch, in_chans, image_size, image_size), dtype=jnp.float32)
    params = init_params(kp, depth=depth, num_heads=num_heads, embed_dim=embed_dim,
                         mlp_dim=mlp_dim, num_classes=num_classes,
                         patch_size=patch_size, in_chans=in_chans,
                         num_patches=num_patches)

    fwd = jax.jit(functools.partial(vit_forward, patch_size=patch_size,
                                    num_heads=num_heads))
    out = fwd(x, params)
    out = jax.block_until_ready(out)
    assert out.shape == (batch, num_classes)
    print("KERNEL_OK")
</pallas_src>

<mosaic_0001>
module attributes {stable_mosaic.version = 11 : i64} {
  func.func @_patch_embed_kernel(%arg0: i32, %arg1: memref<1x4x192xf32, #tpu.memory_space<vmem>>, %arg2: memref<192x128xbf16, #tpu.memory_space<vmem>>, %arg3: memref<1x128xf32, #tpu.memory_space<vmem>>, %arg4: memref<1x128xf32, #tpu.memory_space<vmem>>, %arg5: memref<5x128xf32, #tpu.memory_space<vmem>>, %arg6: memref<1x5x128xf32, #tpu.memory_space<vmem>>) attributes {dimension_semantics = [#tpu.dimension_semantics<parallel>], iteration_bounds = array<i64: 2>, scalar_prefetch = 0 : i64, scratch_operands = 0 : i64, tpu.core_type = #tpu.core_type<tc>, window_params = [{transform_indices = @transform_0, window_bounds = array<i64: 1, 4, 192>}, {pipeline_mode = #tpu.pipeline_mode<synchronous>, transform_indices = @transform_1, window_bounds = array<i64: 192, 128>}, {pipeline_mode = #tpu.pipeline_mode<synchronous>, transform_indices = @transform_2, window_bounds = array<i64: 1, 128>}, {pipeline_mode = #tpu.pipeline_mode<synchronous>, transform_indices = @transform_3, window_bounds = array<i64: 1, 128>}, {pipeline_mode = #tpu.pipeline_mode<synchronous>, transform_indices = @transform_4, window_bounds = array<i64: 5, 128>}, {transform_indices = @transform_5, window_bounds = array<i64: 1, 5, 128>}]} {
    %c0 = arith.constant 0 : index
    %c0_0 = arith.constant 0 : index
    %c0_1 = arith.constant 0 : index
    %0 = vector.load %arg1[%c0, %c0_0, %c0_1] : memref<1x4x192xf32, #tpu.memory_space<vmem>>, vector<1x4x192xf32>
    %1 = vector.shape_cast %0 : vector<1x4x192xf32> to vector<4x192xf32>
    %2 = arith.truncf %1 : vector<4x192xf32> to vector<4x192xbf16>
    %c0_2 = arith.constant 0 : index
    %c0_3 = arith.constant 0 : index
    %3 = vector.load %arg2[%c0_2, %c0_3] : memref<192x128xbf16, #tpu.memory_space<vmem>>, vector<192x128xbf16>
    %cst = arith.constant dense<0.000000e+00> : vector<4x128xf32>
    %4 = tpu.matmul %2, %3, %cst {dimension_numbers = #tpu.dot_dimension_numbers<[1], [0], [0], [1], [0, 0, 1, 1], [], []>} : vector<4x192xbf16>, vector<192x128xbf16>, vector<4x128xf32> -> vector<4x128xf32>
    %c0_4 = arith.constant 0 : index
    %c0_5 = arith.constant 0 : index
    %5 = vector.load %arg3[%c0_4, %c0_5] : memref<1x128xf32, #tpu.memory_space<vmem>>, vector<1x128xf32>
    %6 = vector.broadcast %5 : vector<1x128xf32> to vector<4x128xf32>
    %7 = arith.addf %4, %6 : vector<4x128xf32>
    %c0_6 = arith.constant 0 : index
    %c0_7 = arith.constant 0 : index
    %8 = vector.load %arg4[%c0_6, %c0_7] : memref<1x128xf32, #tpu.memory_space<vmem>>, vector<1x128xf32>
    %c0_8 = arith.constant 0 : index
    %c0_9 = arith.constant 0 : index
    %9 = vector.load %arg5[%c0_8, %c0_9] : memref<5x128xf32, #tpu.memory_space<vmem>>, vector<1x128xf32>
    %10 = arith.addf %8, %9 : vector<1x128xf32>
    %c0_10 = arith.constant 0 : index
    %c0_11 = arith.constant 0 : index
    %c0_12 = arith.constant 0 : index
    %11 = vector.load %arg6[%c0_10, %c0_11, %c0_12] : memref<1x5x128xf32, #tpu.memory_space<vmem>>, vector<1x1x128xf32>
    %12 = vector.shape_cast %11 : vector<1x1x128xf32> to vector<1x128xf32>
    %13 = vector.shape_cast %10 : vector<1x128xf32> to vector<1x1x128xf32>
    tpu.vector_store %arg6[%c0_10, %c0_11, %c0_12], %13 {strides = array<i32>} : memref<1x5x128xf32, #tpu.memory_space<vmem>>, vector<1x1x128xf32>,
    %c1 = arith.constant 1 : index
    %c0_13 = arith.constant 0 : index
    %14 = vector.load %arg5[%c1, %c0_13] : memref<5x128xf32, #tpu.memory_space<vmem>>, vector<4x128xf32>
    %15 = arith.addf %7, %14 : vector<4x128xf32>
    %c0_14 = arith.constant 0 : index
    %c1_15 = arith.constant 1 : index
    %c0_16 = arith.constant 0 : index
    %16 = vector.load %arg6[%c0_14, %c1_15, %c0_16] : memref<1x5x128xf32, #tpu.memory_space<vmem>>, vector<1x4x128xf32>
    %17 = vector.shape_cast %16 : vector<1x4x128xf32> to vector<4x128xf32>
    %18 = vector.shape_cast %15 : vector<4x128xf32> to vector<1x4x128xf32>
    tpu.vector_store %arg6[%c0_14, %c1_15, %c0_16], %18 {strides = array<i32>} : memref<1x5x128xf32, #tpu.memory_space<vmem>>, vector<1x4x128xf32>,
    return
  }
  func.func @transform_0(%arg0: i32) -> (i32, i32, i32) {
    %c0_i32 = arith.constant 0 : i32
    %c0_i32_0 = arith.constant 0 : i32
    %c0_i32_1 = arith.constant 0 : i32
    return %arg0, %c0_i32, %c0_i32_0 : i32, i32, i32
  }
  func.func @transform_1(%arg0: i32) -> (i32, i32) {
    %c0_i32 = arith.constant 0 : i32
    %c0_i32_0 = arith.constant 0 : i32
    %c0_i32_1 = arith.constant 0 : i32
    return %c0_i32, %c0_i32_0 : i32, i32
  }
  func.func @transform_2(%arg0: i32) -> (i32, i32) {
    %c0_i32 = arith.constant 0 : i32
    %c0_i32_0 = arith.constant 0 : i32
    %c0_i32_1 = arith.constant 0 : i32
    return %c0_i32, %c0_i32_0 : i32, i32
  }
  func.func @transform_3(%arg0: i32) -> (i32, i32) {
    %c0_i32 = arith.constant 0 : i32
    %c0_i32_0 = arith.constant 0 : i32
    %c0_i32_1 = arith.constant 0 : i32
    return %c0_i32, %c0_i32_0 : i32, i32
  }
  func.func @transform_4(%arg0: i32) -> (i32, i32) {
    %c0_i32 = arith.constant 0 : i32
    %c0_i32_0 = arith.constant 0 : i32
    %c0_i32_1 = arith.constant 0 : i32
    return %c0_i32, %c0_i32_0 : i32, i32
  }
  func.func @transform_5(%arg0: i32) -> (i32, i32, i32) {
    %c0_i32 = arith.constant 0 : i32
    %c0_i32_0 = arith.constant 0 : i32
    %c0_i32_1 = arith.constant 0 : i32
    return %arg0, %c0_i32, %c0_i32_0 : i32, i32, i32
  }
}

module attributes {stable_mosaic.version = 11 : i64} {
  func.func @_encoder_stack_kernel(%arg0: i32, %arg1: i32, %arg2: memref<1x5x128xf32, #tpu.memory_space<vmem>>, %arg3: memref<1x1x128xf32, #tpu.memory_space<vmem>>, %arg4: memref<1x1x128xf32, #tpu.memory_space<vmem>>, %arg5: memref<1x4x128x32xbf16, #tpu.memory_space<vmem>>, %arg6: memref<1x4x128x32xbf16, #tpu.memory_space<vmem>>, %arg7: memref<1x4x128x32xbf16, #tpu.memory_space<vmem>>, %arg8: memref<1x4x1x32xf32, #tpu.memory_space<vmem>>, %arg9: memref<1x4x1x32xf32, #tpu.memory_space<vmem>>, %arg10: memref<1x4x1x32xf32, #tpu.memory_space<vmem>>, %arg11: memref<1x4x32x128xbf16, #tpu.memory_space<vmem>>, %arg12: memref<1x1x128xf32, #tpu.memory_space<vmem>>, %arg13: memref<1x1x128xf32, #tpu.memory_space<vmem>>, %arg14: memref<1x1x128xf32, #tpu.memory_space<vmem>>, %arg15: memref<1x128x256xbf16, #tpu.memory_space<vmem>>, %arg16: memref<1x1x256xf32, #tpu.memory_space<vmem>>, %arg17: memref<1x256x128xbf16, #tpu.memory_space<vmem>>, %arg18: memref<1x1x128xf32, #tpu.memory_space<vmem>>, %arg19: memref<1x5x128xf32, #tpu.memory_space<vmem>>) attributes {dimension_semantics = [#tpu.dimension_semantics<parallel>, #tpu.dimension_semantics<arbitrary>], iteration_bounds = array<i64: 2, 2>, scalar_prefetch = 0 : i64, scratch_operands = 0 : i64, tpu.core_type = #tpu.core_type<tc>, window_params = [{transform_indices = @transform_0, window_bounds = array<i64: 1, 5, 128>}, {transform_indices = @transform_1, window_bounds = array<i64: 1, 1, 128>}, {transform_indices = @transform_2, window_bounds = array<i64: 1, 1, 128>}, {transform_indices = @transform_3, window_bounds = array<i64: 1, 4, 128, 32>}, {transform_indices = @transform_4, window_bounds = array<i64: 1, 4, 128, 32>}, {transform_indices = @transform_5, window_bounds = array<i64: 1, 4, 128, 32>}, {transform_indices = @transform_6, window_bounds = array<i64: 1, 4, 1, 32>}, {transform_indices = @transform_7, window_bounds = array<i64: 1, 4, 1, 32>}, {transform_indices = @transform_8, window_bounds = array<i64: 1, 4, 1, 32>}, {transform_indices = @transform_9, window_bounds = array<i64: 1, 4, 32, 128>}, {transform_indices = @transform_10, window_bounds = array<i64: 1, 1, 128>}, {transform_indices = @transform_11, window_bounds = array<i64: 1, 1, 128>}, {transform_indices = @transform_12, window_bounds = array<i64: 1, 1, 128>}, {transform_indices = @transform_13, window_bounds = array<i64: 1, 128, 256>}, {transform_indices = @transform_14, window_bounds = array<i64: 1, 1, 256>}, {transform_indices = @transform_15, window_bounds = array<i64: 1, 256, 128>}, {transform_indices = @transform_16, window_bounds = array<i64: 1, 1, 128>}, {transform_indices = @transform_17, window_bounds = array<i64: 1, 5, 128>}]} {
    %c0_i32 = arith.constant 0 : i32
    %0 = arith.cmpi eq, %arg1, %c0_i32 : i32
    %1 = arith.extui %0 : i1 to i32
    %c0_i32_0 = arith.constant 0 : i32
    %2 = arith.cmpi ne, %1, %c0_i32_0 : i32
    scf.if %2 {
      %c0_86 = arith.constant 0 : index
      %c0_87 = arith.constant 0 : index
      %c0_88 = arith.constant 0 : index
      %142 = vector.load %arg2[%c0_86, %c0_87, %c0_88] : memref<1x5x128xf32, #tpu.memory_space<vmem>>, vector<1x5x128xf32>
      %143 = vector.shape_cast %142 : vector<1x5x128xf32> to vector<5x128xf32>
      %c0_89 = arith.constant 0 : index
      %c0_90 = arith.constant 0 : index
      %c0_91 = arith.constant 0 : index
      %144 = vector.load %arg19[%c0_89, %c0_90, %c0_91] : memref<1x5x128xf32, #tpu.memory_space<vmem>>, vector<1x5x128xf32>
      %145 = vector.shape_cast %144 : vector<1x5x128xf32> to vector<5x128xf32>
      %146 = vector.shape_cast %143 : vector<5x128xf32> to vector<1x5x128xf32>
      tpu.vector_store %arg19[%c0_89, %c0_90, %c0_91], %146 {strides = array<i32>} : memref<1x5x128xf32, #tpu.memory_space<vmem>>, vector<1x5x128xf32>,
    } else {
    }
    %c0 = arith.constant 0 : index
    %c0_1 = arith.constant 0 : index
    %c0_2 = arith.constant 0 : index
    %3 = vector.load %arg19[%c0, %c0_1, %c0_2] : memref<1x5x128xf32, #tpu.memory_space<vmem>>, vector<1x5x128xf32>
    %4 = vector.shape_cast %3 : vector<1x5x128xf32> to vector<5x128xf32>
    %c0_3 = arith.constant 0 : index
    %c0_4 = arith.constant 0 : index
    %c0_5 = arith.constant 0 : index
    %5 = vector.load %arg3[%c0_3, %c0_4, %c0_5] : memref<1x1x128xf32, #tpu.memory_space<vmem>>, vector<1x1x128xf32>
    %6 = vector.shape_cast %5 : vector<1x1x128xf32> to vector<1x128xf32>
    %c0_6 = arith.constant 0 : index
    %c0_7 = arith.constant 0 : index
    %c0_8 = arith.constant 0 : index
    %7 = vector.load %arg4[%c0_6, %c0_7, %c0_8] : memref<1x1x128xf32, #tpu.memory_space<vmem>>, vector<1x1x128xf32>
    %8 = vector.shape_cast %7 : vector<1x1x128xf32> to vector<1x128xf32>
    %cst = arith.constant dense<0.000000e+00> : vector<5xf32>
    %9 = vector.multi_reduction <add>, %4, %cst [1] : vector<5x128xf32> to vector<5xf32>
    %10 = vector.shape_cast %9 : vector<5xf32> to vector<5x1xf32>
    %cst_9 = arith.constant 1.280000e+02 : f32
    %11 = vector.broadcast %cst_9 : f32 to vector<5x1xf32>
    %12 = arith.divf %10, %11 : vector<5x1xf32>
    %13 = vector.broadcast %12 : vector<5x1xf32> to vector<5x128xf32>
    %14 = arith.subf %4, %13 : vector<5x128xf32>
    %15 = arith.mulf %14, %14 : vector<5x128xf32>
    %cst_10 = arith.constant dense<0.000000e+00> : vector<5xf32>
    %16 = vector.multi_reduction <add>, %15, %cst_10 [1] : vector<5x128xf32> to vector<5xf32>
    %17 = vector.shape_cast %16 : vector<5xf32> to vector<5x1xf32>
    %cst_11 = arith.constant 1.280000e+02 : f32
    %18 = vector.broadcast %cst_11 : f32 to vector<5x1xf32>
    %19 = arith.divf %17, %18 : vector<5x1xf32>
    %20 = vector.broadcast %12 : vector<5x1xf32> to vector<5x128xf32>
    %21 = arith.subf %4, %20 : vector<5x128xf32>
    %cst_12 = arith.constant 9.99999996E-13 : f32
    %22 = vector.broadcast %cst_12 : f32 to vector<5x1xf32>
    %23 = arith.addf %19, %22 : vector<5x1xf32>
    %24 = math.rsqrt %23 : vector<5x1xf32>
    %25 = vector.broadcast %24 : vector<5x1xf32> to vector<5x128xf32>
    %26 = arith.mulf %21, %25 : vector<5x128xf32>
    %27 = vector.broadcast %6 : vector<1x128xf32> to vector<5x128xf32>
    %28 = arith.mulf %26, %27 : vector<5x128xf32>
    %29 = vector.broadcast %8 : vector<1x128xf32> to vector<5x128xf32>
    %30 = arith.addf %28, %29 : vector<5x128xf32>
    %31 = arith.truncf %30 : vector<5x128xf32> to vector<5x128xbf16>
    %32 = vector.shape_cast %31 : vector<5x128xbf16> to vector<1x5x128xbf16>
    %33 = vector.broadcast %32 : vector<1x5x128xbf16> to vector<4x5x128xbf16>
    %c0_13 = arith.constant 0 : index
    %c0_14 = arith.constant 0 : index
    %c0_15 = arith.constant 0 : index
    %c0_16 = arith.constant 0 : index
    %34 = vector.load %arg5[%c0_13, %c0_14, %c0_15, %c0_16] : memref<1x4x128x32xbf16, #tpu.memory_space<vmem>>, vector<1x4x128x32xbf16>
    %35 = vector.shape_cast %34 : vector<1x4x128x32xbf16> to vector<4x128x32xbf16>
    "tpu.trace_start"() <{level = 10 : i32, message = "hsd,hde->hse"}> : () -> ()
    %cst_17 = arith.constant dense<0.000000e+00> : vector<4x5x32xf32>
    %36 = tpu.matmul %33, %35, %cst_17 {dimension_numbers = #tpu.dot_dimension_numbers<[2], [1], [1], [2], [0, 0, 0, 1, 1, 2], [0], [0]>} : vector<4x5x128xbf16>, vector<4x128x32xbf16>, vector<4x5x32xf32> -> vector<4x5x32xf32>
    "tpu.trace_stop"() : () -> ()
    %c0_18 = arith.constant 0 : index
    %c0_19 = arith.constant 0 : index
    %c0_20 = arith.constant 0 : index
    %c0_21 = arith.constant 0 : index
    %37 = vector.load %arg8[%c0_18, %c0_19, %c0_20, %c0_21] : memref<1x4x1x32xf32, #tpu.memory_space<vmem>>, vector<1x4x1x32xf32>
    %38 = vector.shape_cast %37 : vector<1x4x1x32xf32> to vector<4x1x32xf32>
    %39 = vector.broadcast %38 : vector<4x1x32xf32> to vector<4x5x32xf32>
    %40 = arith.addf %36, %39 : vector<4x5x32xf32>
    %c0_22 = arith.constant 0 : index
    %c0_23 = arith.constant 0 : index
    %c0_24 = arith.constant 0 : index
    %c0_25 = arith.constant 0 : index
    %41 = vector.load %arg6[%c0_22, %c0_23, %c0_24, %c0_25] : memref<1x4x128x32xbf16, #tpu.memory_space<vmem>>, vector<1x4x128x32xbf16>
    %42 = vector.shape_cast %41 : vector<1x4x128x32xbf16> to vector<4x128x32xbf16>
    "tpu.trace_start"() <{level = 10 : i32, message = "hsd,hde->hse"}> : () -> ()
    %cst_26 = arith.constant dense<0.000000e+00> : vector<4x5x32xf32>
    %43 = tpu.matmul %33, %42, %cst_26 {dimension_numbers = #tpu.dot_dimension_numbers<[2], [1], [1], [2], [0, 0, 0, 1, 1, 2], [0], [0]>} : vector<4x5x128xbf16>, vector<4x128x32xbf16>, vector<4x5x32xf32> -> vector<4x5x32xf32>
    "tpu.trace_stop"() : () -> ()
    %c0_27 = arith.constant 0 : index
    %c0_28 = arith.constant 0 : index
    %c0_29 = arith.constant 0 : index
    %c0_30 = arith.constant 0 : index
    %44 = vector.load %arg9[%c0_27, %c0_28, %c0_29, %c0_30] : memref<1x4x1x32xf32, #tpu.memory_space<vmem>>, vector<1x4x1x32xf32>
    %45 = vector.shape_cast %44 : vector<1x4x1x32xf32> to vector<4x1x32xf32>
    %46 = vector.broadcast %45 : vector<4x1x32xf32> to vector<4x5x32xf32>
    %47 = arith.addf %43, %46 : vector<4x5x32xf32>
    %c0_31 = arith.constant 0 : index
    %c0_32 = arith.constant 0 : index
    %c0_33 = arith.constant 0 : index
    %c0_34 = arith.constant 0 : index
    %48 = vector.load %arg7[%c0_31, %c0_32, %c0_33, %c0_34] : memref<1x4x128x32xbf16, #tpu.memory_space<vmem>>, vector<1x4x128x32xbf16>
    %49 = vector.shape_cast %48 : vector<1x4x128x32xbf16> to vector<4x128x32xbf16>
    "tpu.trace_start"() <{level = 10 : i32, message = "hsd,hde->hse"}> : () -> ()
    %cst_35 = arith.constant dense<0.000000e+00> : vector<4x5x32xf32>
    %50 = tpu.matmul %33, %49, %cst_35 {dimension_numbers = #tpu.dot_dimension_numbers<[2], [1], [1], [2], [0, 0, 0, 1, 1, 2], [0], [0]>} : vector<4x5x128xbf16>, vector<4x128x32xbf16>, vector<4x5x32xf32> -> vector<4x5x32xf32>
    "tpu.trace_stop"() : () -> ()
    %c0_36 = arith.constant 0 : index
    %c0_37 = arith.constant 0 : index
    %c0_38 = arith.constant 0 : index
    %c0_39 = arith.constant 0 : index
    %51 = vector.load %arg10[%c0_36, %c0_37, %c0_38, %c0_39] : memref<1x4x1x32xf32, #tpu.memory_space<vmem>>, vector<1x4x1x32xf32>
    %52 = vector.shape_cast %51 : vector<1x4x1x32xf32> to vector<4x1x32xf32>
    %53 = vector.broadcast %52 : vector<4x1x32xf32> to vector<4x5x32xf32>
    %54 = arith.addf %50, %53 : vector<4x5x32xf32>
    %55 = arith.truncf %40 : vector<4x5x32xf32> to vector<4x5x32xbf16>
    %56 = arith.truncf %47 : vector<4x5x32xf32> to vector<4x5x32xbf16>
    "tpu.trace_start"() <{level = 10 : i32, message = "hqe,hke->hqk"}> : () -> ()
    %cst_40 = arith.constant dense<0.000000e+00> : vector<4x5x5xf32>
    %57 = tpu.matmul %55, %56, %cst_40 {dimension_numbers = #tpu.dot_dimension_numbers<[2], [2], [1], [1], [0, 0, 0, 1, 1, 1], [0], [0]>} : vector<4x5x32xbf16>, vector<4x5x32xbf16>, vector<4x5x5xf32> -> vector<4x5x5xf32>
    "tpu.trace_stop"() : () -> ()
    %cst_41 = arith.constant 0.176776692 : f32
    %58 = vector.broadcast %cst_41 : f32 to vector<4x5x5xf32>
    %59 = arith.mulf %57, %58 : vector<4x5x5xf32>
    %cst_42 = arith.constant dense<0xFF800000> : vector<4x5xf32>
    %60 = vector.multi_reduction <maximumf>, %59, %cst_42 [2] : vector<4x5x5xf32> to vector<4x5xf32>
    %61 = vector.shape_cast %60 : vector<4x5xf32> to vector<4x5x1xf32>
    %62 = vector.broadcast %61 : vector<4x5x1xf32> to vector<4x5x5xf32>
    %63 = arith.subf %59, %62 : vector<4x5x5xf32>
    %64 = math.exp %63 : vector<4x5x5xf32>
    %cst_43 = arith.constant dense<0.000000e+00> : vector<4x5xf32>
    %65 = vector.multi_reduction <add>, %64, %cst_43 [2] : vector<4x5x5xf32> to vector<4x5xf32>
    %66 = vector.shape_cast %65 : vector<4x5xf32> to vector<4x5x1xf32>
    %67 = tpu.reciprocal %66 {approx = true} : vector<4x5x1xf32> -> vector<4x5x1xf32>
    %68 = vector.broadcast %67 : vector<4x5x1xf32> to vector<4x5x5xf32>
    %69 = arith.mulf %64, %68 : vector<4x5x5xf32>
    %70 = arith.truncf %69 : vector<4x5x5xf32> to vector<4x5x5xbf16>
    %71 = arith.truncf %54 : vector<4x5x32xf32> to vector<4x5x32xbf16>
    "tpu.trace_start"() <{level = 10 : i32, message = "hqk,hke->hqe"}> : () -> ()
    %cst_44 = arith.constant dense<0.000000e+00> : vector<4x5x32xf32>
    %72 = tpu.matmul %70, %71, %cst_44 {dimension_numbers = #tpu.dot_dimension_numbers<[2], [1], [1], [2], [0, 0, 0, 1, 1, 2], [0], [0]>} : vector<4x5x5xbf16>, vector<4x5x32xbf16>, vector<4x5x32xf32> -> vector<4x5x32xf32>
    "tpu.trace_stop"() : () -> ()
    %73 = arith.truncf %72 : vector<4x5x32xf32> to vector<4x5x32xbf16>
    %c0_45 = arith.constant 0 : index
    %c0_46 = arith.constant 0 : index
    %c0_47 = arith.constant 0 : index
    %c0_48 = arith.constant 0 : index
    %74 = vector.load %arg11[%c0_45, %c0_46, %c0_47, %c0_48] : memref<1x4x32x128xbf16, #tpu.memory_space<vmem>>, vector<1x4x32x128xbf16>
    %75 = vector.shape_cast %74 : vector<1x4x32x128xbf16> to vector<4x32x128xbf16>
    "tpu.trace_start"() <{level = 10 : i32, message = "hse,hed->hsd"}> : () -> ()
    %cst_49 = arith.constant dense<0.000000e+00> : vector<4x5x128xf32>
    %76 = tpu.matmul %73, %75, %cst_49 {dimension_numbers = #tpu.dot_dimension_numbers<[2], [1], [1], [2], [0, 0, 0, 1, 1, 2], [0], [0]>} : vector<4x5x32xbf16>, vector<4x32x128xbf16>, vector<4x5x128xf32> -> vector<4x5x128xf32>
    "tpu.trace_stop"() : () -> ()
    %cst_50 = arith.constant dense<0.000000e+00> : vector<5x128xf32>
    %77 = vector.multi_reduction <add>, %76, %cst_50 [0] : vector<4x5x128xf32> to vector<5x128xf32>
    %c0_51 = arith.constant 0 : index
    %c0_52 = arith.constant 0 : index
    %c0_53 = arith.constant 0 : index
    %78 = vector.load %arg12[%c0_51, %c0_52, %c0_53] : memref<1x1x128xf32, #tpu.memory_space<vmem>>, vector<1x1x128xf32>
    %79 = vector.shape_cast %78 : vector<1x1x128xf32> to vector<1x128xf32>
    %80 = vector.broadcast %79 : vector<1x128xf32> to vector<5x128xf32>
    %81 = arith.addf %77, %80 : vector<5x128xf32>
    %82 = arith.addf %4, %81 : vector<5x128xf32>
    %c0_54 = arith.constant 0 : index
    %c0_55 = arith.constant 0 : index
    %c0_56 = arith.constant 0 : index
    %83 = vector.load %arg13[%c0_54, %c0_55, %c0_56] : memref<1x1x128xf32, #tpu.memory_space<vmem>>, vector<1x1x128xf32>
    %84 = vector.shape_cast %83 : vector<1x1x128xf32> to vector<1x128xf32>
    %c0_57 = arith.constant 0 : index
    %c0_58 = arith.constant 0 : index
    %c0_59 = arith.constant 0 : index
    %85 = vector.load %arg14[%c0_57, %c0_58, %c0_59] : memref<1x1x128xf32, #tpu.memory_space<vmem>>, vector<1x1x128xf32>
    %86 = vector.shape_cast %85 : vector<1x1x128xf32> to vector<1x128xf32>
    %cst_60 = arith.constant dense<0.000000e+00> : vector<5xf32>
    %87 = vector.multi_reduction <add>, %82, %cst_60 [1] : vector<5x128xf32> to vector<5xf32>
    %88 = vector.shape_cast %87 : vector<5xf32> to vector<5x1xf32>
    %cst_61 = arith.constant 1.280000e+02 : f32
    %89 = vector.broadcast %cst_61 : f32 to vector<5x1xf32>
    %90 = arith.divf %88, %89 : vector<5x1xf32>
    %91 = vector.broadcast %90 : vector<5x1xf32> to vector<5x128xf32>
    %92 = arith.subf %82, %91 : vector<5x128xf32>
    %93 = arith.mulf %92, %92 : vector<5x128xf32>
    %cst_62 = arith.constant dense<0.000000e+00> : vector<5xf32>
    %94 = vector.multi_reduction <add>, %93, %cst_62 [1] : vector<5x128xf32> to vector<5xf32>
    %95 = vector.shape_cast %94 : vector<5xf32> to vector<5x1xf32>
    %cst_63 = arith.constant 1.280000e+02 : f32
    %96 = vector.broadcast %cst_63 : f32 to vector<5x1xf32>
    %97 = arith.divf %95, %96 : vector<5x1xf32>
    %98 = vector.broadcast %90 : vector<5x1xf32> to vector<5x128xf32>
    %99 = arith.subf %82, %98 : vector<5x128xf32>
    %cst_64 = arith.constant 9.99999996E-13 : f32
    %100 = vector.broadcast %cst_64 : f32 to vector<5x1xf32>
    %101 = arith.addf %97, %100 : vector<5x1xf32>
    %102 = math.rsqrt %101 : vector<5x1xf32>
    %103 = vector.broadcast %102 : vector<5x1xf32> to vector<5x128xf32>
    %104 = arith.mulf %99, %103 : vector<5x128xf32>
    %105 = vector.broadcast %84 : vector<1x128xf32> to vector<5x128xf32>
    %106 = arith.mulf %104, %105 : vector<5x128xf32>
    %107 = vector.broadcast %86 : vector<1x128xf32> to vector<5x128xf32>
    %108 = arith.addf %106, %107 : vector<5x128xf32>
    %109 = arith.truncf %108 : vector<5x128xf32> to vector<5x128xbf16>
    %c0_65 = arith.constant 0 : index
    %c0_66 = arith.constant 0 : index
    %c0_67 = arith.constant 0 : index
    %110 = vector.load %arg15[%c0_65, %c0_66, %c0_67] : memref<1x128x256xbf16, #tpu.memory_space<vmem>>, vector<1x128x256xbf16>
    %111 = vector.shape_cast %110 : vector<1x128x256xbf16> to vector<128x256xbf16>
    %cst_68 = arith.constant dense<0.000000e+00> : vector<5x256xf32>
    %112 = tpu.matmul %109, %111, %cst_68 {dimension_numbers = #tpu.dot_dimension_numbers<[1], [0], [0], [1], [0, 0, 1, 1], [], []>} : vector<5x128xbf16>, vector<128x256xbf16>, vector<5x256xf32> -> vector<5x256xf32>
    %c0_69 = arith.constant 0 : index
    %c0_70 = arith.constant 0 : index
    %c0_71 = arith.constant 0 : index
    %113 = vector.load %arg16[%c0_69, %c0_70, %c0_71] : memref<1x1x256xf32, #tpu.memory_space<vmem>>, vector<1x1x256xf32>
    %114 = vector.shape_cast %113 : vector<1x1x256xf32> to vector<1x256xf32>
    %115 = vector.broadcast %114 : vector<1x256xf32> to vector<5x256xf32>
    %116 = arith.addf %112, %115 : vector<5x256xf32>
    %cst_72 = arith.constant 5.000000e-01 : f32
    %117 = vector.broadcast %cst_72 : f32 to vector<5x256xf32>
    %118 = arith.mulf %117, %116 : vector<5x256xf32>
    %cst_73 = arith.constant 4.471500e-02 : f32
    %119 = vector.broadcast %cst_73 : f32 to vector<5x256xf32>
    %120 = arith.mulf %119, %116 : vector<5x256xf32>
    %121 = arith.mulf %120, %116 : vector<5x256xf32>
    %122 = arith.mulf %121, %116 : vector<5x256xf32>
    %123 = arith.addf %116, %122 : vector<5x256xf32>
    %cst_74 = arith.constant 0.797884583 : f32
    %124 = vector.broadcast %cst_74 : f32 to vector<5x256xf32>
    %125 = arith.mulf %124, %123 : vector<5x256xf32>
    %126 = math.tanh %125 : vector<5x256xf32>
    %cst_75 = arith.constant 1.000000e+00 : f32
    %127 = vector.broadcast %cst_75 : f32 to vector<5x256xf32>
    %128 = arith.addf %127, %126 : vector<5x256xf32>
    %129 = arith.mulf %118, %128 : vector<5x256xf32>
    %130 = arith.truncf %129 : vector<5x256xf32> to vector<5x256xbf16>
    %c0_76 = arith.constant 0 : index
    %c0_77 = arith.constant 0 : index
    %c0_78 = arith.constant 0 : index
    %131 = vector.load %arg17[%c0_76, %c0_77, %c0_78] : memref<1x256x128xbf16, #tpu.memory_space<vmem>>, vector<1x256x128xbf16>
    %132 = vector.shape_cast %131 : vector<1x256x128xbf16> to vector<256x128xbf16>
    %cst_79 = arith.constant dense<0.000000e+00> : vector<5x128xf32>
    %133 = tpu.matmul %130, %132, %cst_79 {dimension_numbers = #tpu.dot_dimension_numbers<[1], [0], [0], [1], [0, 0, 1, 1], [], []>} : vector<5x256xbf16>, vector<256x128xbf16>, vector<5x128xf32> -> vector<5x128xf32>
    %c0_80 = arith.constant 0 : index
    %c0_81 = arith.constant 0 : index
    %c0_82 = arith.constant 0 : index
    %134 = vector.load %arg18[%c0_80, %c0_81, %c0_82] : memref<1x1x128xf32, #tpu.memory_space<vmem>>, vector<1x1x128xf32>
    %135 = vector.shape_cast %134 : vector<1x1x128xf32> to vector<1x128xf32>
    %136 = vector.broadcast %135 : vector<1x128xf32> to vector<5x128xf32>
    %137 = arith.addf %133, %136 : vector<5x128xf32>
    %138 = arith.addf %82, %137 : vector<5x128xf32>
    %c0_83 = arith.constant 0 : index
    %c0_84 = arith.constant 0 : index
    %c0_85 = arith.constant 0 : index
    %139 = vector.load %arg19[%c0_83, %c0_84, %c0_85] : memref<1x5x128xf32, #tpu.memory_space<vmem>>, vector<1x5x128xf32>
    %140 = vector.shape_cast %139 : vector<1x5x128xf32> to vector<5x128xf32>
    %141 = vector.shape_cast %138 : vector<5x128xf32> to vector<1x5x128xf32>
    tpu.vector_store %arg19[%c0_83, %c0_84, %c0_85], %141 {strides = array<i32>} : memref<1x5x128xf32, #tpu.memory_space<vmem>>, vector<1x5x128xf32>,
    return
  }
  func.func @transform_0(%arg0: i32, %arg1: i32) -> (i32, i32, i32) {
    %c0_i32 = arith.constant 0 : i32
    %c0_i32_0 = arith.constant 0 : i32
    %c0_i32_1 = arith.constant 0 : i32
    return %arg0, %c0_i32, %c0_i32_0 : i32, i32, i32
  }
  func.func @transform_1(%arg0: i32, %arg1: i32) -> (i32, i32, i32) {
    %c0_i32 = arith.constant 0 : i32
    %c0_i32_0 = arith.constant 0 : i32
    %c0_i32_1 = arith.constant 0 : i32
    return %arg1, %c0_i32, %c0_i32_0 : i32, i32, i32
  }
  func.func @transform_2(%arg0: i32, %arg1: i32) -> (i32, i32, i32) {
    %c0_i32 = arith.constant 0 : i32
    %c0_i32_0 = arith.constant 0 : i32
    %c0_i32_1 = arith.constant 0 : i32
    return %arg1, %c0_i32, %c0_i32_0 : i32, i32, i32
  }
  func.func @transform_3(%arg0: i32, %arg1: i32) -> (i32, i32, i32, i32) {
    %c0_i32 = arith.constant 0 : i32
    %c0_i32_0 = arith.constant 0 : i32
    %c0_i32_1 = arith.constant 0 : i32
    %c0_i32_2 = arith.constant 0 : i32
    return %arg1, %c0_i32, %c0_i32_0, %c0_i32_1 : i32, i32, i32, i32
  }
  func.func @transform_4(%arg0: i32, %arg1: i32) -> (i32, i32, i32, i32) {
    %c0_i32 = arith.constant 0 : i32
    %c0_i32_0 = arith.constant 0 : i32
    %c0_i32_1 = arith.constant 0 : i32
    %c0_i32_2 = arith.constant 0 : i32
    return %arg1, %c0_i32, %c0_i32_0, %c0_i32_1 : i32, i32, i32, i32
  }
  func.func @transform_5(%arg0: i32, %arg1: i32) -> (i32, i32, i32, i32) {
    %c0_i32 = arith.constant 0 : i32
    %c0_i32_0 = arith.constant 0 : i32
    %c0_i32_1 = arith.constant 0 : i32
    %c0_i32_2 = arith.constant 0 : i32
    return %arg1, %c0_i32, %c0_i32_0, %c0_i32_1 : i32, i32, i32, i32
  }
  func.func @transform_6(%arg0: i32, %arg1: i32) -> (i32, i32, i32, i32) {
    %c0_i32 = arith.constant 0 : i32
    %c0_i32_0 = arith.constant 0 : i32
    %c0_i32_1 = arith.constant 0 : i32
    %c0_i32_2 = arith.constant 0 : i32
    return %arg1, %c0_i32, %c0_i32_0, %c0_i32_1 : i32, i32, i32, i32
  }
  func.func @transform_7(%arg0: i32, %arg1: i32) -> (i32, i32, i32, i32) {
    %c0_i32 = arith.constant 0 : i32
    %c0_i32_0 = arith.constant 0 : i32
    %c0_i32_1 = arith.constant 0 : i32
    %c0_i32_2 = arith.constant 0 : i32
    return %arg1, %c0_i32, %c0_i32_0, %c0_i32_1 : i32, i32, i32, i32
  }
  func.func @transform_8(%arg0: i32, %arg1: i32) -> (i32, i32, i32, i32) {
    %c0_i32 = arith.constant 0 : i32
    %c0_i32_0 = arith.constant 0 : i32
    %c0_i32_1 = arith.constant 0 : i32
    %c0_i32_2 = arith.constant 0 : i32
    return %arg1, %c0_i32, %c0_i32_0, %c0_i32_1 : i32, i32, i32, i32
  }
  func.func @transform_9(%arg0: i32, %arg1: i32) -> (i32, i32, i32, i32) {
    %c0_i32 = arith.constant 0 : i32
    %c0_i32_0 = arith.constant 0 : i32
    %c0_i32_1 = arith.constant 0 : i32
    %c0_i32_2 = arith.constant 0 : i32
    return %arg1, %c0_i32, %c0_i32_0, %c0_i32_1 : i32, i32, i32, i32
  }
  func.func @transform_10(%arg0: i32, %arg1: i32) -> (i32, i32, i32) {
    %c0_i32 = arith.constant 0 : i32
    %c0_i32_0 = arith.constant 0 : i32
    %c0_i32_1 = arith.constant 0 : i32
    return %arg1, %c0_i32, %c0_i32_0 : i32, i32, i32
  }
  func.func @transform_11(%arg0: i32, %arg1: i32) -> (i32, i32, i32) {
    %c0_i32 = arith.constant 0 : i32
    %c0_i32_0 = arith.constant 0 : i32
    %c0_i32_1 = arith.constant 0 : i32
    return %arg1, %c0_i32, %c0_i32_0 : i32, i32, i32
  }
  func.func @transform_12(%arg0: i32, %arg1: i32) -> (i32, i32, i32) {
    %c0_i32 = arith.constant 0 : i32
    %c0_i32_0 = arith.constant 0 : i32
    %c0_i32_1 = arith.constant 0 : i32
    return %arg1, %c0_i32, %c0_i32_0 : i32, i32, i32
  }
  func.func @transform_13(%arg0: i32, %arg1: i32) -> (i32, i32, i32) {
    %c0_i32 = arith.constant 0 : i32
    %c0_i32_0 = arith.constant 0 : i32
    %c0_i32_1 = arith.constant 0 : i32
    return %arg1, %c0_i32, %c0_i32_0 : i32, i32, i32
  }
  func.func @transform_14(%arg0: i32, %arg1: i32) -> (i32, i32, i32) {
    %c0_i32 = arith.constant 0 : i32
    %c0_i32_0 = arith.constant 0 : i32
    %c0_i32_1 = arith.constant 0 : i32
    return %arg1, %c0_i32, %c0_i32_0 : i32, i32, i32
  }
  func.func @transform_15(%arg0: i32, %arg1: i32) -> (i32, i32, i32) {
    %c0_i32 = arith.constant 0 : i32
    %c0_i32_0 = arith.constant 0 : i32
    %c0_i32_1 = arith.constant 0 : i32
    return %arg1, %c0_i32, %c0_i32_0 : i32, i32, i32
  }
  func.func @transform_16(%arg0: i32, %arg1: i32) -> (i32, i32, i32) {
    %c0_i32 = arith.constant 0 : i32
    %c0_i32_0 = arith.constant 0 : i32
    %c0_i32_1 = arith.constant 0 : i32
    return %arg1, %c0_i32, %c0_i32_0 : i32, i32, i32
  }
  func.func @transform_17(%arg0: i32, %arg1: i32) -> (i32, i32, i32) {
    %c0_i32 = arith.constant 0 : i32
    %c0_i32_0 = arith.constant 0 : i32
    %c0_i32_1 = arith.constant 0 : i32
    return %arg0, %c0_i32, %c0_i32_0 : i32, i32, i32
  }
}

module attributes {stable_mosaic.version = 11 : i64} {
  func.func @_head_kernel(%arg0: memref<2x128xf32, #tpu.memory_space<vmem>>, %arg1: memref<1x128xf32, #tpu.memory_space<vmem>>, %arg2: memref<1x128xf32, #tpu.memory_space<vmem>>, %arg3: memref<1x128xf32, #tpu.memory_space<vmem>>, %arg4: memref<1x128xf32, #tpu.memory_space<vmem>>, %arg5: memref<128x256xbf16, #tpu.memory_space<vmem>>, %arg6: memref<1x256xf32, #tpu.memory_space<vmem>>, %arg7: memref<256x128xbf16, #tpu.memory_space<vmem>>, %arg8: memref<1x128xf32, #tpu.memory_space<vmem>>, %arg9: memref<2x128xf32, #tpu.memory_space<vmem>>) attributes {dimension_semantics = [], scalar_prefetch = 0 : i64, scratch_operands = 0 : i64, tpu.core_type = #tpu.core_type<tc>} {
    %c0 = arith.constant 0 : index
    %c0_0 = arith.constant 0 : index
    %0 = vector.load %arg0[%c0, %c0_0] : memref<2x128xf32, #tpu.memory_space<vmem>>, vector<2x128xf32>
    %c0_1 = arith.constant 0 : index
    %c0_2 = arith.constant 0 : index
    %1 = vector.load %arg1[%c0_1, %c0_2] : memref<1x128xf32, #tpu.memory_space<vmem>>, vector<1x128xf32>
    %c0_3 = arith.constant 0 : index
    %c0_4 = arith.constant 0 : index
    %2 = vector.load %arg2[%c0_3, %c0_4] : memref<1x128xf32, #tpu.memory_space<vmem>>, vector<1x128xf32>
    %cst = arith.constant dense<0.000000e+00> : vector<2xf32>
    %3 = vector.multi_reduction <add>, %0, %cst [1] : vector<2x128xf32> to vector<2xf32>
    %4 = vector.shape_cast %3 : vector<2xf32> to vector<2x1xf32>
    %cst_5 = arith.constant 1.280000e+02 : f32
    %5 = vector.broadcast %cst_5 : f32 to vector<2x1xf32>
    %6 = arith.divf %4, %5 : vector<2x1xf32>
    %7 = vector.broadcast %6 : vector<2x1xf32> to vector<2x128xf32>
    %8 = arith.subf %0, %7 : vector<2x128xf32>
    %9 = arith.mulf %8, %8 : vector<2x128xf32>
    %cst_6 = arith.constant dense<0.000000e+00> : vector<2xf32>
    %10 = vector.multi_reduction <add>, %9, %cst_6 [1] : vector<2x128xf32> to vector<2xf32>
    %11 = vector.shape_cast %10 : vector<2xf32> to vector<2x1xf32>
    %cst_7 = arith.constant 1.280000e+02 : f32
    %12 = vector.broadcast %cst_7 : f32 to vector<2x1xf32>
    %13 = arith.divf %11, %12 : vector<2x1xf32>
    %14 = vector.broadcast %6 : vector<2x1xf32> to vector<2x128xf32>
    %15 = arith.subf %0, %14 : vector<2x128xf32>
    %cst_8 = arith.constant 9.99999996E-13 : f32
    %16 = vector.broadcast %cst_8 : f32 to vector<2x1xf32>
    %17 = arith.addf %13, %16 : vector<2x1xf32>
    %18 = math.rsqrt %17 : vector<2x1xf32>
    %19 = vector.broadcast %18 : vector<2x1xf32> to vector<2x128xf32>
    %20 = arith.mulf %15, %19 : vector<2x128xf32>
    %21 = vector.broadcast %1 : vector<1x128xf32> to vector<2x128xf32>
    %22 = arith.mulf %20, %21 : vector<2x128xf32>
    %23 = vector.broadcast %2 : vector<1x128xf32> to vector<2x128xf32>
    %24 = arith.addf %22, %23 : vector<2x128xf32>
    %c0_9 = arith.constant 0 : index
    %c0_10 = arith.constant 0 : index
    %25 = vector.load %arg3[%c0_9, %c0_10] : memref<1x128xf32, #tpu.memory_space<vmem>>, vector<1x128xf32>
    %c0_11 = arith.constant 0 : index
    %c0_12 = arith.constant 0 : index
    %26 = vector.load %arg4[%c0_11, %c0_12] : memref<1x128xf32, #tpu.memory_space<vmem>>, vector<1x128xf32>
    %cst_13 = arith.constant dense<0.000000e+00> : vector<2xf32>
    %27 = vector.multi_reduction <add>, %24, %cst_13 [1] : vector<2x128xf32> to vector<2xf32>
    %28 = vector.shape_cast %27 : vector<2xf32> to vector<2x1xf32>
    %cst_14 = arith.constant 1.280000e+02 : f32
    %29 = vector.broadcast %cst_14 : f32 to vector<2x1xf32>
    %30 = arith.divf %28, %29 : vector<2x1xf32>
    %31 = vector.broadcast %30 : vector<2x1xf32> to vector<2x128xf32>
    %32 = arith.subf %24, %31 : vector<2x128xf32>
    %33 = arith.mulf %32, %32 : vector<2x128xf32>
    %cst_15 = arith.constant dense<0.000000e+00> : vector<2xf32>
    %34 = vector.multi_reduction <add>, %33, %cst_15 [1] : vector<2x128xf32> to vector<2xf32>
    %35 = vector.shape_cast %34 : vector<2xf32> to vector<2x1xf32>
    %cst_16 = arith.constant 1.280000e+02 : f32
    %36 = vector.broadcast %cst_16 : f32 to vector<2x1xf32>
    %37 = arith.divf %35, %36 : vector<2x1xf32>
    %38 = vector.broadcast %30 : vector<2x1xf32> to vector<2x128xf32>
    %39 = arith.subf %24, %38 : vector<2x128xf32>
    %cst_17 = arith.constant 9.99999996E-13 : f32
    %40 = vector.broadcast %cst_17 : f32 to vector<2x1xf32>
    %41 = arith.addf %37, %40 : vector<2x1xf32>
    %42 = math.rsqrt %41 : vector<2x1xf32>
    %43 = vector.broadcast %42 : vector<2x1xf32> to vector<2x128xf32>
    %44 = arith.mulf %39, %43 : vector<2x128xf32>
    %45 = vector.broadcast %25 : vector<1x128xf32> to vector<2x128xf32>
    %46 = arith.mulf %44, %45 : vector<2x128xf32>
    %47 = vector.broadcast %26 : vector<1x128xf32> to vector<2x128xf32>
    %48 = arith.addf %46, %47 : vector<2x128xf32>
    %49 = arith.truncf %48 : vector<2x128xf32> to vector<2x128xbf16>
    %c0_18 = arith.constant 0 : index
    %c0_19 = arith.constant 0 : index
    %50 = vector.load %arg5[%c0_18, %c0_19] : memref<128x256xbf16, #tpu.memory_space<vmem>>, vector<128x256xbf16>
    %cst_20 = arith.constant dense<0.000000e+00> : vector<2x256xf32>
    %51 = tpu.matmul %49, %50, %cst_20 {dimension_numbers = #tpu.dot_dimension_numbers<[1], [0], [0], [1], [0, 0, 1, 1], [], []>} : vector<2x128xbf16>, vector<128x256xbf16>, vector<2x256xf32> -> vector<2x256xf32>
    %c0_21 = arith.constant 0 : index
    %c0_22 = arith.constant 0 : index
    %52 = vector.load %arg6[%c0_21, %c0_22] : memref<1x256xf32, #tpu.memory_space<vmem>>, vector<1x256xf32>
    %53 = vector.broadcast %52 : vector<1x256xf32> to vector<2x256xf32>
    %54 = arith.addf %51, %53 : vector<2x256xf32>
    %55 = arith.truncf %54 : vector<2x256xf32> to vector<2x256xbf16>
    %c0_23 = arith.constant 0 : index
    %c0_24 = arith.constant 0 : index
    %56 = vector.load %arg7[%c0_23, %c0_24] : memref<256x128xbf16, #tpu.memory_space<vmem>>, vector<256x128xbf16>
    %cst_25 = arith.constant dense<0.000000e+00> : vector<2x128xf32>
    %57 = tpu.matmul %55, %56, %cst_25 {dimension_numbers = #tpu.dot_dimension_numbers<[1], [0], [0], [1], [0, 0, 1, 1], [], []>} : vector<2x256xbf16>, vector<256x128xbf16>, vector<2x128xf32> -> vector<2x128xf32>
    %c0_26 = arith.constant 0 : index
    %c0_27 = arith.constant 0 : index
    %58 = vector.load %arg8[%c0_26, %c0_27] : memref<1x128xf32, #tpu.memory_space<vmem>>, vector<1x128xf32>
    %59 = vector.broadcast %58 : vector<1x128xf32> to vector<2x128xf32>
    %60 = arith.addf %57, %59 : vector<2x128xf32>
    %c0_28 = arith.constant 0 : index
    %c0_29 = arith.constant 0 : index
    %61 = vector.load %arg9[%c0_28, %c0_29] : memref<2x128xf32, #tpu.memory_space<vmem>>, vector<2x128xf32>
    tpu.vector_store %arg9[%c0_28, %c0_29], %60 {strides = array<i32>} : memref<2x128xf32, #tpu.memory_space<vmem>>, vector<2x128xf32>,
    return
  }
}

</mosaic_0001>

<llo_original>
// kernel: vit_forward.3
$region0: #{vit_forward.3}
  #allocation0 [shape = 'u32[]', space=smem, size = 0x4, offset = 0x4, fixed_abs, tag = 'smem constant byte address 0x4 - core index']
  #allocation1 [shape = 'u32[144,128]{1,0:T(1,128)}', space=vmem, size = 0x12000, scoped, tag = 'internal scratch']
  %s0 = inlined_call_operand.vmem [shape: f32[2,4,192], index: 0, kind: input, shape index: {}]
  %s1 = inlined_call_operand.vmem [shape: bf16[192,128], index: 1, kind: input, shape index: {}]
  %s2 = inlined_call_operand.vmem [shape: f32[1,128], index: 2, kind: input, shape index: {}]
  %s3 = inlined_call_operand.vmem [shape: f32[1,128], index: 3, kind: input, shape index: {}]
  %s4 = inlined_call_operand.vmem [shape: f32[5,128], index: 4, kind: input, shape index: {}]
  %s5 = inlined_call_operand.vmem [shape: f32[2,5,128], index: 5, kind: output, shape index: {}]
  %s6 = sld [smem:[#allocation0]]
  $region53: #{vit_forward.3} parent=0
    _
  %s8 = ssub.s32 1, %s6
  %s9 = scalar_select 0, %s8, %s6
  loop: start=0, step=1, limit=4
  $region2: #{vit_forward.3} parent=0 // loop_pre_header
    _
  $region3: #{vit_forward.3} parent=0 // loop_header
    %s11 = sphi 0, %s15
    %p12 = scmp.ge.s32.totalorder %s11, 4
    %s21 = sphi 0, %s23
    %s24 = sphi 0, %s21
    %s25 = sphi 0, %s24
    %s41 = sphi 0, %s25
    %s45 = sphi 0, %s45
    %s47 = sphi 0, %s45
    %s48 = sphi 0, %s47
    %s62 = sphi 0, %s48
    %s66 = sphi 0, %s66
    %s68 = sphi 0, %s66
    %s69 = sphi 0, %s68
    %s83 = sphi 0, %s69
    %s87 = sphi 0, %s87
    %s89 = sphi 0, %s87
    %s90 = sphi 0, %s89
    %s104 = sphi 0, %s90
    %s108 = sphi 0, %s108
    %s110 = sphi 0, %s108
    %s111 = sphi 0, %s110
    %s125 = sphi 0, %s111
    %s131 = sphi 0, %s133
    %s134 = sphi 0, %s131
    %s135 = sphi 0, %s134
    %s151 = sphi 0, %s135
  $region4: #{vit_forward.3} parent=0 // loop_header_branch
    %14 = sbr.rel (%p12) target = $region8
  $region5: #{vit_forward.3} parent=0 // loop_body
    %s16 = ssub.s32 %s11, 1
    %s17 = ssub.s32 %s11, 2
    %s18 = sadd.s32 %s11, 1
    %s19 = ssub.s32 %s11, %s18
    %p20 = scmp.eq.s32.totalorder %s19, 0
    %s22 = sadd.s32 %s21, 1
    %s23 = scalar_select %p20, %s21, %s22
    %p26 = pneg %p20
    %p27 = scmp.eq.s32.totalorder %s11, 1
    %p28 = por %p26, %p27
    %p29 = scmp.ne.s32.totalorder %s21, %s24
    %p30 = scmp.eq.s32.totalorder %s11, 0
    %p31 = por %p29, %p30
    %p32 = scmp.ne.s32.totalorder %s21, %s24
    %p33 = scmp.eq.s32.totalorder %s16, 1
    %p34 = por %p32, %p33
    %p35 = scmp.ne.s32.totalorder %s24, %s25
    %p36 = scmp.eq.s32.totalorder %s16, 0
    %p37 = por %p35, %p36
    %p38 = scmp.ne.s32.totalorder %s24, %s25
    %p39 = scmp.eq.s32.totalorder %s17, 1
    %p40 = por %p38, %p39
    %p42 = scmp.ne.s32.totalorder %s25, %s41
    %p43 = scmp.eq.s32.totalorder %s17, 0
    %p44 = por %p42, %p43
    %s46 = sadd.s32 %s45, 1
    %p49 = scmp.eq.s32.totalorder %s11, 1
    %p50 = scmp.ne.s32.totalorder %s45, %s47
    %p51 = scmp.eq.s32.totalorder %s11, 0
    %p52 = por %p50, %p51
    %p53 = scmp.ne.s32.totalorder %s45, %s47
    %p54 = scmp.eq.s32.totalorder %s16, 1
    %p55 = por %p53, %p54
    %p56 = scmp.ne.s32.totalorder %s47, %s48
    %p57 = scmp.eq.s32.totalorder %s16, 0
    %p58 = por %p56, %p57
    %p59 = scmp.ne.s32.totalorder %s47, %s48
    %p60 = scmp.eq.s32.totalorder %s17, 1
    %p61 = por %p59, %p60
    %p63 = scmp.ne.s32.totalorder %s48, %s62
    %p64 = scmp.eq.s32.totalorder %s17, 0
    %p65 = por %p63, %p64
    %s67 = sadd.s32 %s66, 1
    %p70 = scmp.eq.s32.totalorder %s11, 1
    %p71 = scmp.ne.s32.totalorder %s66, %s68
    %p72 = scmp.eq.s32.totalorder %s11, 0
    %p73 = por %p71, %p72
    %p74 = scmp.ne.s32.totalorder %s66, %s68
    %p75 = scmp.eq.s32.totalorder %s16, 1
    %p76 = por %p74, %p75
    %p77 = scmp.ne.s32.totalorder %s68, %s69
    %p78 = scmp.eq.s32.totalorder %s16, 0
    %p79 = por %p77, %p78
    %p80 = scmp.ne.s32.totalorder %s68, %s69
    %p81 = scmp.eq.s32.totalorder %s17, 1
    %p82 = por %p80, %p81
    %p84 = scmp.ne.s32.totalorder %s69, %s83
    %p85 = scmp.eq.s32.totalorder %s17, 0
    %p86 = por %p84, %p85
    %s88 = sadd.s32 %s87, 1
    %p91 = scmp.eq.s32.totalorder %s11, 1
    %p92 = scmp.ne.s32.totalorder %s87, %s89
    %p93 = scmp.eq.s32.totalorder %s11, 0
    %p94 = por %p92, %p93
    %p95 = scmp.ne.s32.totalorder %s87, %s89
    %p96 = scmp.eq.s32.totalorder %s16, 1
    %p97 = por %p95, %p96
    %p98 = scmp.ne.s32.totalorder %s89, %s90
    %p99 = scmp.eq.s32.totalorder %s16, 0
    %p100 = por %p98, %p99
    %p101 = scmp.ne.s32.totalorder %s89, %s90
    %p102 = scmp.eq.s32.totalorder %s17, 1
    %p103 = por %p101, %p102
    %p105 = scmp.ne.s32.totalorder %s90, %s104
    %p106 = scmp.eq.s32.totalorder %s17, 0
    %p107 = por %p105, %p106
    %s109 = sadd.s32 %s108, 1
    %p112 = scmp.eq.s32.totalorder %s11, 1
    %p113 = scmp.ne.s32.totalorder %s108, %s110
    %p114 = scmp.eq.s32.totalorder %s11, 0
    %p115 = por %p113, %p114
    %p116 = scmp.ne.s32.totalorder %s108, %s110
    %p117 = scmp.eq.s32.totalorder %s16, 1
    %p118 = por %p116, %p117
    %p119 = scmp.ne.s32.totalorder %s110, %s111
    %p120 = scmp.eq.s32.totalorder %s16, 0
    %p121 = por %p119, %p120
    %p122 = scmp.ne.s32.totalorder %s110, %s111
    %p123 = scmp.eq.s32.totalorder %s17, 1
    %p124 = por %p122, %p123
    %p126 = scmp.ne.s32.totalorder %s111, %s125
    %p127 = scmp.eq.s32.totalorder %s17, 0
    %p128 = por %p126, %p127
    %s129 = ssub.s32 %s11, %s18
    %p130 = scmp.eq.s32.totalorder %s129, 0
    %s132 = sadd.s32 %s131, 1
    %s133 = scalar_select %p130, %s131, %s132
    %p136 = pneg %p130
    %p137 = scmp.eq.s32.totalorder %s11, 1
    %p138 = por %p136, %p137
    %p139 = scmp.ne.s32.totalorder %s131, %s134
    %p140 = scmp.eq.s32.totalorder %s11, 0
    %p141 = por %p139, %p140
    %p142 = scmp.ne.s32.totalorder %s131, %s134
    %p143 = scmp.eq.s32.totalorder %s16, 1
    %p144 = por %p142, %p143
    %p145 = scmp.ne.s32.totalorder %s134, %s135
    %p146 = scmp.eq.s32.totalorder %s16, 0
    %p147 = por %p145, %p146
    %p148 = scmp.ne.s32.totalorder %s134, %s135
    %p149 = scmp.eq.s32.totalorder %s17, 1
    %p150 = por %p148, %p149
    %p152 = scmp.ne.s32.totalorder %s135, %s151
    %p153 = scmp.eq.s32.totalorder %s17, 0
    %p154 = por %p152, %p153
    %p155 = scmp.le.s32.totalorder 1, %s11
    %p156 = scmp.lt.s32.totalorder %s11, 3
    %p157 = pnand %p155, %p156
    %p158 = pneg %p157
    // Predicated region
    $region9: #{vit_forward.3} parent=5 // pred_check
      _
    $region10: #{vit_forward.3} parent=5 // pred_check_branch
      %160 = sbr.rel (%p157) target = $region12
    $region11: #{vit_forward.3} parent=5 // pred_region
      %s161 = ssub.s32 %s11, 1
      // Predicated region
      $region13: #{vit_forward.3} parent=11 // pred_check
        %p162 = pneg %p58
      $region14: #{vit_forward.3} parent=11 // pred_check_branch
        %164 = sbr.rel (%p162) target = $region16
      $region15: #{vit_forward.3} parent=11 // pred_region
        _
      $region16: #{vit_forward.3} parent=11 // pred_fallthru
        _
      // Predicated region
      $region17: #{vit_forward.3} parent=11 // pred_check
        %p165 = pneg %p79
      $region18: #{vit_forward.3} parent=11 // pred_check_branch
        %167 = sbr.rel (%p165) target = $region20
      $region19: #{vit_forward.3} parent=11 // pred_region
        _
      $region20: #{vit_forward.3} parent=11 // pred_fallthru
        _
      // Predicated region
      $region21: #{vit_forward.3} parent=11 // pred_check
        %p168 = pneg %p100
      $region22: #{vit_forward.3} parent=11 // pred_check_branch
        %170 = sbr.rel (%p168) target = $region24
      $region23: #{vit_forward.3} parent=11 // pred_region
        _
      $region24: #{vit_forward.3} parent=11 // pred_fallthru
        _
      // Predicated region
      $region25: #{vit_forward.3} parent=11 // pred_check
        %p171 = pneg %p121
      $region26: #{vit_forward.3} parent=11 // pred_check_branch
        %173 = sbr.rel (%p171) target = $region28
      $region27: #{vit_forward.3} parent=11 // pred_region
        _
      $region28: #{vit_forward.3} parent=11 // pred_fallthru
        _
    $region12: #{vit_forward.3} parent=5 // pred_fallthru
      _
    %p174 = scmp.lt.s32.totalorder %s11, 2
    // Predicated region
    $region29: #{vit_forward.3} parent=5 // pred_check
      %p175 = pneg %p174
    $region30: #{vit_forward.3} parent=5 // pred_check_branch
      %177 = sbr.rel (%p175) target = $region32
    $region31: #{vit_forward.3} parent=5 // pred_region
      // Predicated region
      $region33: #{vit_forward.3} parent=31 // pred_check
        %p178 = pneg %p31
      $region34: #{vit_forward.3} parent=31 // pred_check_branch
        %180 = sbr.rel (%p178) target = $region36
      $region35: #{vit_forward.3} parent=31 // pred_region
        %p181 = scmp.lt.s32.totalorder %s11, 1
        %s182 = scalar_select %p181, %s11, 1
        %s183 = smul.addr %s182, 2
        %s184 = smul.addr %s183, 4
        %s185 = scalar_lea.vmem %s0, %s184
      $region36: #{vit_forward.3} parent=31 // pred_fallthru
        _
    $region32: #{vit_forward.3} parent=5 // pred_fallthru
      _
    %p186 = scmp.le.s32.totalorder 1, %s11
    %p187 = scmp.lt.s32.totalorder %s11, 3
    %p188 = pnand %p186, %p187
    %p189 = pneg %p188
    // Predicated region
    $region37: #{vit_forward.3} parent=5 // pred_check
      _
    $region38: #{vit_forward.3} parent=5 // pred_check_branch
      %191 = sbr.rel (%p188) target = $region40
    $region39: #{vit_forward.3} parent=5 // pred_region
      %s192 = ssub.s32 %s11, 1
      %p193 = scmp.lt.s32.totalorder %s16, 1
      %s194 = scalar_select %p193, %s16, 1
      %s195 = smul.addr %s194, 2
      %s196 = smul.addr %s195, 4
      %s197 = scalar_lea.vmem %s0, %s196
      %p198 = pneg %p37
      %p199 = pneg %p34
      %p200 = pneg %p58
      %p201 = pneg %p55
      %p202 = pneg %p79
      %p203 = pneg %p76
      %p204 = pneg %p100
      %p205 = pneg %p97
      %p206 = pneg %p121
      %p207 = pneg %p118
      %p208 = pneg %p147
      %p209 = pneg %p144
      %p210 = scmp.lt.s32.totalorder %s16, 1
      %s211 = scalar_select %p210, %s16, 1
      %s212 = smul.addr %s211, 8
      %s213 = scalar_lea.vmem %s5, %s212
      %p214 = scmp.lt.s32.totalorder %s16, 1
      %s215 = scalar_select %p214, %s16, 1
      %s216 = smul.addr %s215, 2
      %s217 = smul.addr %s216, 4
      %s218 = scalar_lea.vmem %s0, %s217
      %p219 = scmp.lt.s32.totalorder %s16, 1
      %s220 = scalar_select %p219, %s16, 1
      %s221 = smul.addr %s220, 8
      %s222 = scalar_lea.vmem %s5, %s221
      %v224 = vld [vmem:[%s218] sm:$0xff]
      %v226 = vcombine.high %v224, %v224
      %v228 = vpack.c.bf16 %v224, %v224
      %v229 = vpack.c.bf16 %v226, %v226
      %v230 = vld [vmem:[%s1] sm:$0xf]
      %v231 = vld [vmem:[%s1 + $0x4] sm:$0xf]
      %v232 = vld [vmem:[%s1 + $0x8] sm:$0xf]
      %v233 = vld [vmem:[%s1 + $0xc] sm:$0xf]
      %v234 = vld [vmem:[%s1 + $0x10] sm:$0xf]
      %v235 = vld [vmem:[%s1 + $0x14] sm:$0xf]
      %v236 = vld [vmem:[%s1 + $0x18] sm:$0xf]
      %v237 = vld [vmem:[%s1 + $0x1c] sm:$0xf]
      %v238 = vld [vmem:[%s1 + $0x20] sm:$0xf]
      %v239 = vld [vmem:[%s1 + $0x24] sm:$0xf]
      %v240 = vld [vmem:[%s1 + $0x28] sm:$0xf]
      %v241 = vld [vmem:[%s1 + $0x2c] sm:$0xf]
      %v242 = vld [vmem:[%s1 + $0x30] sm:$0xf]
      %v243 = vld [vmem:[%s1 + $0x34] sm:$0xf]
      %v244 = vld [vmem:[%s1 + $0x38] sm:$0xf]
      %v245 = vld [vmem:[%s1 + $0x3c] sm:$0xf]
      %v246 = vld [vmem:[%s1 + $0x40] sm:$0xf]
      %v247 = vld [vmem:[%s1 + $0x44] sm:$0xf]
      %v248 = vld [vmem:[%s1 + $0x48] sm:$0xf]
      %v249 = vld [vmem:[%s1 + $0x4c] sm:$0xf]
      %v250 = vld [vmem:[%s1 + $0x50] sm:$0xf]
      %v251 = vld [vmem:[%s1 + $0x54] sm:$0xf]
      %v252 = vld [vmem:[%s1 + $0x58] sm:$0xf]
      %v253 = vld [vmem:[%s1 + $0x5c] sm:$0xf]
      %v254 = vld [vmem:[%s2] sm:$0x1]
      %v256 = vlaneseq
      %v257 = vshrl.u32 %v256, 7
      %v258 = vsub.s32 0, %v257
      %v259 = vrot.slane %v254, %v258
      %v285 = vunpack.c.l.b16 %v230
      %v286 = vunpack.c.l.b16 %v231
      %v287 = vunpack.c.l.b16 %v232
      %v288 = vunpack.c.l.b16 %v233
      %v289 = vunpack.c.l.b16 %v234
      %v290 = vunpack.c.l.b16 %v235
      %v291 = vunpack.c.l.b16 %v236
      %v292 = vunpack.c.l.b16 %v237
      %v293 = vunpack.c.l.b16 %v238
      %v294 = vunpack.c.l.b16 %v239
      %v295 = vunpack.c.l.b16 %v240
      %v296 = vunpack.c.l.b16 %v241
      %v297 = vunpack.c.l.b16 %v242
      %v298 = vunpack.c.l.b16 %v243
      %v299 = vunpack.c.l.b16 %v244
      %v300 = vunpack.c.l.b16 %v245
      %v301 = vunpack.c.l.b16 %v246
      %v302 = vunpack.c.l.b16 %v247
      %v303 = vunpack.c.l.b16 %v248
      %v304 = vunpack.c.l.b16 %v249
      %v305 = vunpack.c.l.b16 %v250
      %v306 = vunpack.c.l.b16 %v251
      %v307 = vunpack.c.l.b16 %v252
      %v308 = vunpack.c.l.b16 %v253
      %v309 = vpack.c.b16 %v286, %v285
      %v310 = vpack.c.b16 %v288, %v287
      %v311 = vpack.c.b16 %v290, %v289
      %v312 = vpack.c.b16 %v292, %v291
      %v313 = vpack.c.b16 %v294, %v293
      %v314 = vpack.c.b16 %v296, %v295
      %v315 = vpack.c.b16 %v298, %v297
      %v316 = vpack.c.b16 %v300, %v299
      %v317 = vpack.c.b16 %v302, %v301
      %v318 = vpack.c.b16 %v304, %v303
      %v319 = vpack.c.b16 %v306, %v305
      %v320 = vpack.c.b16 %v308, %v307
      %vm333 = vcmask 523264
      %v335 = vsel %vm333, %v229, 0
      %337 = vmatprep.subr.bf16.mxu0 0
      %338 = vmatpush1.bf16.msra.mxu0 %v316
      %339 = vmatprep.subr.bf16.mxu0 0
      %340 = vmatpush1.bf16.msra.mxu0 %v315
      %341 = vmatprep.subr.bf16.mxu0 0
      %342 = vmatpush1.bf16.msra.mxu0 %v314
      %343 = vmatprep.subr.bf16.mxu0 0
      %344 = vmatpush1.bf16.msra.mxu0 %v313
      %345 = vmatprep.subr.bf16.mxu0 0
      %346 = vmatpush1.bf16.msra.mxu0 %v312
      %347 = vmatprep.subr.bf16.mxu0 0
      %348 = vmatpush1.bf16.msra.mxu0 %v311
      %349 = vmatprep.subr.bf16.mxu0 0
      %350 = vmatpush1.bf16.msra.mxu0 %v310
      %351 = vmatprep.subr.bf16.mxu0 0
      %352 = vmatpush1.bf16.msra.mxu0 %v309
      %353 = vmatprep.subr.bf16.mxu0 0
      %354 = vmatpush2.bf16.msra.mxu0 0
      %355 = vmatprep.subr.bf16.mxu0 0
      %356 = vmatpush2.bf16.msra.mxu0 0
      %357 = vmatprep.subr.bf16.mxu0 0
      %358 = vmatpush2.bf16.msra.mxu0 0
      %359 = vmatprep.subr.bf16.mxu0 0
      %360 = vmatpush2.bf16.msra.mxu0 0
      %361 = vmatprep.subr.bf16.mxu0 0
      %362 = vmatpush2.bf16.msra.mxu0 %v320
      %363 = vmatprep.subr.bf16.mxu0 0
      %364 = vmatpush2.bf16.msra.mxu0 %v319
      %365 = vmatprep.subr.bf16.mxu0 0
      %366 = vmatpush2.bf16.msra.mxu0 %v318
      %367 = vmatprep.subr.bf16.mxu0 0
      %368 = vmatpush2.bf16.msra.mxu0 %v317
      %369 = vmatprep.mubr.bf16.mxu0 %v335
      %370 = vmatmul.mubr.bf16.gmra.mxu0 %v228
      %v371 = vpop.f32.mrf.mxu0
      %v372 = vadd.f32 %v259, %v371
      %v373 = vpop.f32.mrf.mxu0
      %v374 = vpop.f32.mrf.mxu0
      %v375 = vpop.f32.mrf.mxu0
      %376 = vdwg.mxu0
      %v377 = vld [vmem:[%s3] sm:$0x1]
      %v378 = vld [vmem:[%s4] sm:$0x1]
      %v379 = vadd.f32 %v377, %v378
      %380 = vst [vmem:[%s222] sm:$0x1] %v379
      %v381 = vld [vmem:[%s4 + $0x1] sm:$0xf]
      %v382 = vadd.f32 %v372, %v381
      %383 = vst [vmem:[%s222 + $0x1] sm:$0xf] %v382
      %p384 = scmp.lt.s32.totalorder %s16, 1
      %s385 = scalar_select %p384, %s16, 1
      %s386 = smul.addr %s385, 8
      %s387 = scalar_lea.vmem %s5, %s386
      // Predicated region
      $region41: #{vit_forward.3} parent=39 // pred_check
        %p388 = pneg %p144
      $region42: #{vit_forward.3} parent=39 // pred_check_branch
        %390 = sbr.rel (%p388) target = $region44
      $region43: #{vit_forward.3} parent=39 // pred_region
        _
      $region44: #{vit_forward.3} parent=39 // pred_fallthru
        _
    $region40: #{vit_forward.3} parent=5 // pred_fallthru
      _
    %p391 = scmp.le.s32.totalorder 2, %s11
    // Predicated region
    $region45: #{vit_forward.3} parent=5 // pred_check
      %p392 = pneg %p391
    $region46: #{vit_forward.3} parent=5 // pred_check_branch
      %394 = sbr.rel (%p392) target = $region48
    $region47: #{vit_forward.3} parent=5 // pred_region
      %s395 = ssub.s32 %s11, 2
      // Predicated region
      $region49: #{vit_forward.3} parent=47 // pred_check
        %p396 = pneg %p150
      $region50: #{vit_forward.3} parent=47 // pred_check_branch
        %398 = sbr.rel (%p396) target = $region52
      $region51: #{vit_forward.3} parent=47 // pred_region
        %p399 = scmp.lt.s32.totalorder %s17, 1
        %s400 = scalar_select %p399, %s17, 1
        %s401 = smul.addr %s400, 8
        %s402 = scalar_lea.vmem %s5, %s401
      $region52: #{vit_forward.3} parent=47 // pred_fallthru
        _
    $region48: #{vit_forward.3} parent=5 // pred_fallthru
      _
  $region6: #{vit_forward.3} parent=0 // loop_footer
    %s15 = sadd.s32 1, %s11
  $region7: #{vit_forward.3} parent=0 // loop_footer_branch
    %10 = sbr.rel target = $region3
  $region8: #{vit_forward.3} parent=0 // loop_exit
    _

// kernel: vit_forward.5
$region0: #{vit_forward.5}
  #allocation0 [shape = 'u32[]', space=smem, size = 0x4, offset = 0x4, fixed_abs, tag = 'smem constant byte address 0x4 - core index']
  #allocation1 [shape = 'u32[144,128]{1,0:T(1,128)}', space=vmem, size = 0x12000, scoped, tag = 'internal scratch']
  %s0 = inlined_call_operand.vmem [shape: f32[2,128], index: 0, kind: input, shape index: {}]
  %s1 = inlined_call_operand.vmem [shape: f32[1,128], index: 1, kind: input, shape index: {}]
  %s2 = inlined_call_operand.vmem [shape: f32[1,128], index: 2, kind: input, shape index: {}]
  %s3 = inlined_call_operand.vmem [shape: f32[1,128], index: 3, kind: input, shape index: {}]
  %s4 = inlined_call_operand.vmem [shape: f32[1,128], index: 4, kind: input, shape index: {}]
  %s5 = inlined_call_operand.vmem [shape: bf16[128,256], index: 5, kind: input, shape index: {}]
  %s6 = inlined_call_operand.vmem [shape: f32[1,256], index: 6, kind: input, shape index: {}]
  %s7 = inlined_call_operand.vmem [shape: bf16[256,128], index: 7, kind: input, shape index: {}]
  %s8 = inlined_call_operand.vmem [shape: f32[1,128], index: 8, kind: input, shape index: {}]
  %s9 = inlined_call_operand.hbm [shape: f32[2,128], index: 9, kind: output, shape index: {}]
  %s10 = sld [smem:[#allocation0]]
  $region46: #{vit_forward.5} parent=0
    _
  %s12 = ssub.s32 1, %s10
  %s13 = scalar_select 0, %s12, %s10
  $region1: #{vit_forward.5} parent=0
    #allocation2 [shape = 'u8[1024]{0}', space=vmem, size = 0x400, scoped, tag = 'output window, operand 0, single buffered']
    #allocation3 [shape = 's32[1]{0}', space=sflag, size = 0x4, scoped, tag = 'scoped memory for vit_forward.5']
    %14 = vsyncpa [#allocation3], 0
    // Predicated region
    $region2: #{vit_forward.5} parent=1 // pred_check
      _
    $region3: #{vit_forward.5} parent=1 // pred_check_branch
      %16 = sbr.rel (0) target = $region5
    $region4: #{vit_forward.5} parent=1 // pred_region
      _
    $region5: #{vit_forward.5} parent=1 // pred_fallthru
      _
    // Predicated region
    $region6: #{vit_forward.5} parent=1 // pred_check
      _
    $region7: #{vit_forward.5} parent=1 // pred_check_branch
      %18 = sbr.rel (0) target = $region9
    $region8: #{vit_forward.5} parent=1 // pred_region
      _
    $region9: #{vit_forward.5} parent=1 // pred_fallthru
      _
    // Predicated region
    $region10: #{vit_forward.5} parent=1 // pred_check
      _
    $region11: #{vit_forward.5} parent=1 // pred_check_branch
      %20 = sbr.rel (0) target = $region13
    $region12: #{vit_forward.5} parent=1 // pred_region
      _
    $region13: #{vit_forward.5} parent=1 // pred_fallthru
      _
    // Predicated region
    $region14: #{vit_forward.5} parent=1 // pred_check
      _
    $region15: #{vit_forward.5} parent=1 // pred_check_branch
      %22 = sbr.rel (0) target = $region17
    $region16: #{vit_forward.5} parent=1 // pred_region
      _
    $region17: #{vit_forward.5} parent=1 // pred_fallthru
      _
    // Predicated region
    $region18: #{vit_forward.5} parent=1 // pred_check
      _
    $region19: #{vit_forward.5} parent=1 // pred_check_branch
      %24 = sbr.rel (0) target = $region21
    $region20: #{vit_forward.5} parent=1 // pred_region
      _
    $region21: #{vit_forward.5} parent=1 // pred_fallthru
      _
    // Predicated region
    $region22: #{vit_forward.5} parent=1 // pred_check
      _
    $region23: #{vit_forward.5} parent=1 // pred_check_branch
      %26 = sbr.rel (0) target = $region25
    $region24: #{vit_forward.5} parent=1 // pred_region
      _
    $region25: #{vit_forward.5} parent=1 // pred_fallthru
      _
    // Predicated region
    $region26: #{vit_forward.5} parent=1 // pred_check
      _
    $region27: #{vit_forward.5} parent=1 // pred_check_branch
      %28 = sbr.rel (0) target = $region29
    $region28: #{vit_forward.5} parent=1 // pred_region
      _
    $region29: #{vit_forward.5} parent=1 // pred_fallthru
      _
    // Predicated region
    $region30: #{vit_forward.5} parent=1 // pred_check
      _
    $region31: #{vit_forward.5} parent=1 // pred_check_branch
      %30 = sbr.rel (0) target = $region33
    $region32: #{vit_forward.5} parent=1 // pred_region
      _
    $region33: #{vit_forward.5} parent=1 // pred_fallthru
      _
    // Predicated region
    $region34: #{vit_forward.5} parent=1 // pred_check
      _
    $region35: #{vit_forward.5} parent=1 // pred_check_branch
      %32 = sbr.rel (0) target = $region37
    $region36: #{vit_forward.5} parent=1 // pred_region
      _
    $region37: #{vit_forward.5} parent=1 // pred_fallthru
      _
    %v34 = vld [vmem:[%s0] sm:$0x3]
    %v35 = vld [vmem:[%s1] sm:$0x1]
    %v36 = vld [vmem:[%s2] sm:$0x1]
    %vm37 = vcmask 1041408
    %v38 = vsel %vm37, %v34, 0.0
    %39 = vadd.xlane.f32.xlu0 %v38
    %v40 = vpop.xlane.xlu0 %39
    %v41 = vrcp.pop 128.0
    %v42 = vmul.f32 %v40, %v41
    %v43 = vsub.f32 %v34, %v42
    %v44 = vmul.f32 %v43, %v43
    %v45 = vsel %vm37, %v44, 0.0
    %46 = vadd.xlane.f32.xlu0 %v45
    %v47 = vpop.xlane.xlu0 %46
    %v48 = vmul.f32 %v47, %v41
    %v49 = vadd.f32 %v48, 1e-12
    %v50 = vrsqrt.pop %v49
    %v51 = vmul.f32 %v43, %v50
    %v53 = vlaneseq
    %v54 = vshrl.u32 %v53, 7
    %v55 = vsub.s32 0, %v54
    %v56 = vrot.slane %v35, %v55
    %v58 = vmul.f32 %v51, %v56
    %v60 = vlaneseq
    %v61 = vshrl.u32 %v60, 7
    %v62 = vsub.s32 0, %v61
    %v63 = vrot.slane %v36, %v62
    %v65 = vadd.f32 %v58, %v63
    %v66 = vld [vmem:[%s3] sm:$0x1]
    %v67 = vld [vmem:[%s4] sm:$0x1]
    %v68 = vsel %vm37, %v65, 0.0
    %69 = vadd.xlane.f32.xlu0 %v68
    %v70 = vpop.xlane.xlu0 %69
    %v71 = vmul.f32 %v70, %v41
    %v72 = vsub.f32 %v65, %v71
    %v73 = vmul.f32 %v72, %v72
    %v74 = vsel %vm37, %v73, 0.0
    %75 = vadd.xlane.f32.xlu0 %v74
    %v76 = vpop.xlane.xlu0 %75
    %v77 = vmul.f32 %v76, %v41
    %v78 = vadd.f32 %v77, 1e-12
    %v79 = vrsqrt.pop %v78
    %v80 = vmul.f32 %v72, %v79
    %v82 = vlaneseq
    %v83 = vshrl.u32 %v82, 7
    %v84 = vsub.s32 0, %v83
    %v85 = vrot.slane %v66, %v84
    %v87 = vmul.f32 %v80, %v85
    %v89 = vlaneseq
    %v90 = vshrl.u32 %v89, 7
    %v91 = vsub.s32 0, %v90
    %v92 = vrot.slane %v67, %v91
    %v94 = vadd.f32 %v87, %v92
    %v95 = vpack.c.bf16 %v94, %v94
    %v96 = vld [vmem:[%s5] sm:$0xff]
    %v97 = vld [vmem:[%s5 + $0x8] sm:$0xff]
    %v98 = vld [vmem:[%s5 + $0x10] sm:$0xff]
    %v99 = vld [vmem:[%s5 + $0x18] sm:$0xff]
    %v100 = vld [vmem:[%s5 + $0x20] sm:$0xff]
    %v101 = vld [vmem:[%s5 + $0x28] sm:$0xff]
    %v102 = vld [vmem:[%s5 + $0x30] sm:$0xff]
    %v103 = vld [vmem:[%s5 + $0x38] sm:$0xff]
    %v104 = vld [vmem:[%s5 + $0x40] sm:$0xff]
    %v105 = vld [vmem:[%s5 + $0x48] sm:$0xff]
    %v106 = vld [vmem:[%s5 + $0x50] sm:$0xff]
    %v107 = vld [vmem:[%s5 + $0x58] sm:$0xff]
    %v108 = vld [vmem:[%s5 + $0x60] sm:$0xff]
    %v109 = vld [vmem:[%s5 + $0x68] sm:$0xff]
    %v110 = vld [vmem:[%s5 + $0x70] sm:$0xff]
    %v111 = vld [vmem:[%s5 + $0x78] sm:$0xff]
    %v112 = vld [vmem:[%s6] sm:$0x3]
    %v114 = vlaneseq
    %v115 = vshrl.u32 %v114, 7
    %v116 = vsub.s32 0, %v115
    %v117 = vrot.slane %v112, %v116
    %v118 = vlaneseq
    %v119 = vshrl.u32 %v118, 7
    %v120 = vsub.s32 1, %v119
    %v121 = vrot.slane %v112, %v120
    %v140 = vunpack.c.l.b16 %v96
    %v141 = vunpack.c.h.b16 %v96
    %v142 = vunpack.c.l.b16 %v97
    %v143 = vunpack.c.h.b16 %v97
    %v144 = vunpack.c.l.b16 %v98
    %v145 = vunpack.c.h.b16 %v98
    %v146 = vunpack.c.l.b16 %v99
    %v147 = vunpack.c.h.b16 %v99
    %v148 = vunpack.c.l.b16 %v100
    %v149 = vunpack.c.h.b16 %v100
    %v150 = vunpack.c.l.b16 %v101
    %v151 = vunpack.c.h.b16 %v101
    %v152 = vunpack.c.l.b16 %v102
    %v153 = vunpack.c.h.b16 %v102
    %v154 = vunpack.c.l.b16 %v103
    %v155 = vunpack.c.h.b16 %v103
    %v156 = vunpack.c.l.b16 %v104
    %v157 = vunpack.c.h.b16 %v104
    %v158 = vunpack.c.l.b16 %v105
    %v159 = vunpack.c.h.b16 %v105
    %v160 = vunpack.c.l.b16 %v106
    %v161 = vunpack.c.h.b16 %v106
    %v162 = vunpack.c.l.b16 %v107
    %v163 = vunpack.c.h.b16 %v107
    %v164 = vunpack.c.l.b16 %v108
    %v165 = vunpack.c.h.b16 %v108
    %v166 = vunpack.c.l.b16 %v109
    %v167 = vunpack.c.h.b16 %v109
    %v168 = vunpack.c.l.b16 %v110
    %v169 = vunpack.c.h.b16 %v110
    %v170 = vunpack.c.l.b16 %v111
    %v171 = vunpack.c.h.b16 %v111
    %v172 = vpack.c.b16 %v142, %v140
    %v173 = vpack.c.b16 %v143, %v141
    %v174 = vpack.c.b16 %v146, %v144
    %v175 = vpack.c.b16 %v147, %v145
    %v176 = vpack.c.b16 %v150, %v148
    %v177 = vpack.c.b16 %v151, %v149
    %v178 = vpack.c.b16 %v154, %v152
    %v179 = vpack.c.b16 %v155, %v153
    %v180 = vpack.c.b16 %v158, %v156
    %v181 = vpack.c.b16 %v159, %v157
    %v182 = vpack.c.b16 %v162, %v160
    %v183 = vpack.c.b16 %v163, %v161
    %v184 = vpack.c.b16 %v166, %v164
    %v185 = vpack.c.b16 %v167, %v165
    %v186 = vpack.c.b16 %v170, %v168
    %v187 = vpack.c.b16 %v171, %v169
    %204 = vmatprep.subr.bf16.mxu0 %v187
    %205 = vmatpush1.bf16.msra.mxu0 %v186
    %206 = vmatprep.subr.bf16.mxu0 %v185
    %207 = vmatpush1.bf16.msra.mxu0 %v184
    %208 = vmatprep.subr.bf16.mxu0 %v183
    %209 = vmatpush1.bf16.msra.mxu0 %v182
    %210 = vmatprep.subr.bf16.mxu0 %v181
    %211 = vmatpush1.bf16.msra.mxu0 %v180
    %212 = vmatprep.subr.bf16.mxu0 %v179
    %213 = vmatpush1.bf16.msra.mxu0 %v178
    %214 = vmatprep.subr.bf16.mxu0 %v177
    %215 = vmatpush1.bf16.msra.mxu0 %v176
    %216 = vmatprep.subr.bf16.mxu0 %v175
    %217 = vmatpush1.bf16.msra.mxu0 %v174
    %218 = vmatprep.subr.bf16.mxu0 %v173
    %219 = vmatpush1.bf16.msra.mxu0 %v172
    %220 = vmatprep.subr.bf16.mxu0 0
    %221 = vmatpush2.bf16.msra.mxu0 0
    %222 = vmatprep.subr.bf16.mxu0 0
    %223 = vmatpush2.bf16.msra.mxu0 0
    %224 = vmatprep.subr.bf16.mxu0 0
    %225 = vmatpush2.bf16.msra.mxu0 0
    %226 = vmatprep.subr.bf16.mxu0 0
    %227 = vmatpush2.bf16.msra.mxu0 0
    %228 = vmatprep.subr.bf16.mxu0 0
    %229 = vmatpush2.bf16.msra.mxu0 0
    %230 = vmatprep.subr.bf16.mxu0 0
    %231 = vmatpush2.bf16.msra.mxu0 0
    %232 = vmatprep.subr.bf16.mxu0 0
    %233 = vmatpush2.bf16.msra.mxu0 0
    %234 = vmatprep.subr.bf16.mxu0 0
    %235 = vmatpush2.bf16.msra.mxu0 0
    %236 = vmatprep.mubr.bf16.mxu0 0
    %237 = vmatmul.mubr.bf16.gmra.mxu0 %v95
    %v238 = vpop.f32.mrf.mxu0
    %v239 = vadd.f32 %v117, %v238
    %v240 = vpop.f32.mrf.mxu0
    %v241 = vadd.f32 %v121, %v240
    %v242 = vpop.f32.mrf.mxu0
    %v243 = vpop.f32.mrf.mxu0
    %244 = vdwg.mxu0
    %v245 = vpack.c.bf16 %v239, %v239
    %v246 = vpack.c.bf16 %v241, %v241
    %v247 = vld [vmem:[%s7] sm:$0xf]
    %v248 = vld [vmem:[%s7 + $0x4] sm:$0xf]
    %v249 = vld [vmem:[%s7 + $0x8] sm:$0xf]
    %v250 = vld [vmem:[%s7 + $0xc] sm:$0xf]
    %v251 = vld [vmem:[%s7 + $0x10] sm:$0xf]
    %v252 = vld [vmem:[%s7 + $0x14] sm:$0xf]
    %v253 = vld [vmem:[%s7 + $0x18] sm:$0xf]
    %v254 = vld [vmem:[%s7 + $0x1c] sm:$0xf]
    %v255 = vld [vmem:[%s7 + $0x20] sm:$0xf]
    %v256 = vld [vmem:[%s7 + $0x24] sm:$0xf]
    %v257 = vld [vmem:[%s7 + $0x28] sm:$0xf]
    %v258 = vld [vmem:[%s7 + $0x2c] sm:$0xf]
    %v259 = vld [vmem:[%s7 + $0x30] sm:$0xf]
    %v260 = vld [vmem:[%s7 + $0x34] sm:$0xf]
    %v261 = vld [vmem:[%s7 + $0x38] sm:$0xf]
    %v262 = vld [vmem:[%s7 + $0x3c] sm:$0xf]
    %v263 = vld [vmem:[%s7 + $0x40] sm:$0xf]
    %v264 = vld [vmem:[%s7 + $0x44] sm:$0xf]
    %v265 = vld [vmem:[%s7 + $0x48] sm:$0xf]
    %v266 = vld [vmem:[%s7 + $0x4c] sm:$0xf]
    %v267 = vld [vmem:[%s7 + $0x50] sm:$0xf]
    %v268 = vld [vmem:[%s7 + $0x54] sm:$0xf]
    %v269 = vld [vmem:[%s7 + $0x58] sm:$0xf]
    %v270 = vld [vmem:[%s7 + $0x5c] sm:$0xf]
    %v271 = vld [vmem:[%s7 + $0x60] sm:$0xf]
    %v272 = vld [vmem:[%s7 + $0x64] sm:$0xf]
    %v273 = vld [vmem:[%s7 + $0x68] sm:$0xf]
    %v274 = vld [vmem:[%s7 + $0x6c] sm:$0xf]
    %v275 = vld [vmem:[%s7 + $0x70] sm:$0xf]
    %v276 = vld [vmem:[%s7 + $0x74] sm:$0xf]
    %v277 = vld [vmem:[%s7 + $0x78] sm:$0xf]
    %v278 = vld [vmem:[%s7 + $0x7c] sm:$0xf]
    %v279 = vld [vmem:[%s8] sm:$0x1]
    %v281 = vlaneseq
    %v282 = vshrl.u32 %v281, 7
    %v283 = vsub.s32 0, %v282
    %v284 = vrot.slane %v279, %v283
    %v318 = vunpack.c.l.b16 %v247
    %v319 = vunpack.c.l.b16 %v248
    %v320 = vunpack.c.l.b16 %v249
    %v321 = vunpack.c.l.b16 %v250
    %v322 = vunpack.c.l.b16 %v251
    %v323 = vunpack.c.l.b16 %v252
    %v324 = vunpack.c.l.b16 %v253
    %v325 = vunpack.c.l.b16 %v254
    %v326 = vunpack.c.l.b16 %v255
    %v327 = vunpack.c.l.b16 %v256
    %v328 = vunpack.c.l.b16 %v257
    %v329 = vunpack.c.l.b16 %v258
    %v330 = vunpack.c.l.b16 %v259
    %v331 = vunpack.c.l.b16 %v260
    %v332 = vunpack.c.l.b16 %v261
    %v333 = vunpack.c.l.b16 %v262
    %v334 = vunpack.c.l.b16 %v263
    %v335 = vunpack.c.l.b16 %v264
    %v336 = vunpack.c.l.b16 %v265
    %v337 = vunpack.c.l.b16 %v266
    %v338 = vunpack.c.l.b16 %v267
    %v339 = vunpack.c.l.b16 %v268
    %v340 = vunpack.c.l.b16 %v269
    %v341 = vunpack.c.l.b16 %v270
    %v342 = vunpack.c.l.b16 %v271
    %v343 = vunpack.c.l.b16 %v272
    %v344 = vunpack.c.l.b16 %v273
    %v345 = vunpack.c.l.b16 %v274
    %v346 = vunpack.c.l.b16 %v275
    %v347 = vunpack.c.l.b16 %v276
    %v348 = vunpack.c.l.b16 %v277
    %v349 = vunpack.c.l.b16 %v278
    %v350 = vpack.c.b16 %v319, %v318
    %v351 = vpack.c.b16 %v321, %v320
    %v352 = vpack.c.b16 %v323, %v322
    %v353 = vpack.c.b16 %v325, %v324
    %v354 = vpack.c.b16 %v327, %v326
    %v355 = vpack.c.b16 %v329, %v328
    %v356 = vpack.c.b16 %v331, %v330
    %v357 = vpack.c.b16 %v333, %v332
    %v358 = vpack.c.b16 %v335, %v334
    %v359 = vpack.c.b16 %v337, %v336
    %v360 = vpack.c.b16 %v339, %v338
    %v361 = vpack.c.b16 %v341, %v340
    %v362 = vpack.c.b16 %v343, %v342
    %v363 = vpack.c.b16 %v345, %v344
    %v364 = vpack.c.b16 %v347, %v346
    %v365 = vpack.c.b16 %v349, %v348
    %382 = vmatprep.subr.bf16.mxu0 0
    %383 = vmatpush1.bf16.msra.mxu0 %v357
    %384 = vmatprep.subr.bf16.mxu0 0
    %385 = vmatpush1.bf16.msra.mxu0 %v356
    %386 = vmatprep.subr.bf16.mxu0 0
    %387 = vmatpush1.bf16.msra.mxu0 %v355
    %388 = vmatprep.subr.bf16.mxu0 0
    %389 = vmatpush1.bf16.msra.mxu0 %v354
    %390 = vmatprep.subr.bf16.mxu0 0
    %391 = vmatpush1.bf16.msra.mxu0 %v353
    %392 = vmatprep.subr.bf16.mxu0 0
    %393 = vmatpush1.bf16.msra.mxu0 %v352
    %394 = vmatprep.subr.bf16.mxu0 0
    %395 = vmatpush1.bf16.msra.mxu0 %v351
    %396 = vmatprep.subr.bf16.mxu0 0
    %397 = vmatpush1.bf16.msra.mxu0 %v350
    %398 = vmatprep.subr.bf16.mxu0 0
    %399 = vmatpush2.bf16.msra.mxu0 %v365
    %400 = vmatprep.subr.bf16.mxu0 0
    %401 = vmatpush2.bf16.msra.mxu0 %v364
    %402 = vmatprep.subr.bf16.mxu0 0
    %403 = vmatpush2.bf16.msra.mxu0 %v363
    %404 = vmatprep.subr.bf16.mxu0 0
    %405 = vmatpush2.bf16.msra.mxu0 %v362
    %406 = vmatprep.subr.bf16.mxu0 0
    %407 = vmatpush2.bf16.msra.mxu0 %v361
    %408 = vmatprep.subr.bf16.mxu0 0
    %409 = vmatpush2.bf16.msra.mxu0 %v360
    %410 = vmatprep.subr.bf16.mxu0 0
    %411 = vmatpush2.bf16.msra.mxu0 %v359
    %412 = vmatprep.subr.bf16.mxu0 0
    %413 = vmatpush2.bf16.msra.mxu0 %v358
    %414 = vmatprep.mubr.bf16.mxu0 %v246
    %415 = vmatmul.mubr.bf16.gmra.mxu0 %v245
    %v416 = vpop.f32.mrf.mxu0
    %v417 = vadd.f32 %v284, %v416
    %v418 = vpop.f32.mrf.mxu0
    %v419 = vpop.f32.mrf.mxu0
    %v420 = vpop.f32.mrf.mxu0
    %421 = vdwg.mxu0
    %422 = vst [vmem:[#allocation2] sm:$0x3] %v417
    // Predicated region
    $region38: #{vit_forward.5} parent=1 // pred_check
      _
    $region39: #{vit_forward.5} parent=1 // pred_check_branch
      %424 = sbr.rel (0) target = $region41
    $region40: #{vit_forward.5} parent=1 // pred_region
      %s426 = ssub.s32 32, 32
      %427 = vsyncadd [#allocation3], %s426
      %s429 = sshll.u32 [#allocation2], 4
      %s430 = int_to_ptr.vmem [resolvable:$true] %s429
      %432 = dma.vmem_to_hbm [thread:$0]  %s430, 32, %s9, [#allocation3]
    $region41: #{vit_forward.5} parent=1 // pred_fallthru
      _
    // Predicated region
    $region42: #{vit_forward.5} parent=1 // pred_check
      _
    $region43: #{vit_forward.5} parent=1 // pred_check_branch
      %434 = sbr.rel (0) target = $region45
    $region44: #{vit_forward.5} parent=1 // pred_region
      %435 = dma.done [#allocation3], 32
    $region45: #{vit_forward.5} parent=1 // pred_fallthru
      _
    %436 = vsyncpa [#allocation3], 1

// kernel: vit_forward.4
$region0: #{vit_forward.4}
  #allocation0 [shape = 'u32[]', space=smem, size = 0x4, offset = 0x4, fixed_abs, tag = 'smem constant byte address 0x4 - core index']
  #allocation1 [shape = 'u32[144,128]{1,0:T(1,128)}', space=vmem, size = 0x12000, scoped, tag = 'internal scratch']
  %s0 = inlined_call_operand.vmem [shape: f32[2,5,128], index: 0, kind: input, shape index: {}]
  %s1 = inlined_call_operand.vmem [shape: f32[2,1,128], index: 1, kind: input, shape index: {}]
  %s2 = inlined_call_operand.vmem [shape: f32[2,1,128], index: 2, kind: input, shape index: {}]
  %s3 = inlined_call_operand.vmem [shape: bf16[2,4,128,32], index: 3, kind: input, shape index: {}]
  %s4 = inlined_call_operand.vmem [shape: bf16[2,4,128,32], index: 4, kind: input, shape index: {}]
  %s5 = inlined_call_operand.vmem [shape: bf16[2,4,128,32], index: 5, kind: input, shape index: {}]
  %s6 = inlined_call_operand.vmem [shape: f32[2,4,1,32], index: 6, kind: input, shape index: {}]
  %s7 = inlined_call_operand.vmem [shape: f32[2,4,1,32], index: 7, kind: input, shape index: {}]
  %s8 = inlined_call_operand.vmem [shape: f32[2,4,1,32], index: 8, kind: input, shape index: {}]
  %s9 = inlined_call_operand.vmem [shape: bf16[2,4,32,128], index: 9, kind: input, shape index: {}]
  %s10 = inlined_call_operand.vmem [shape: f32[2,1,128], index: 10, kind: input, shape index: {}]
  %s11 = inlined_call_operand.vmem [shape: f32[2,1,128], index: 11, kind: input, shape index: {}]
  %s12 = inlined_call_operand.vmem [shape: f32[2,1,128], index: 12, kind: input, shape index: {}]
  %s13 = inlined_call_operand.vmem [shape: bf16[2,128,256], index: 13, kind: input, shape index: {}]
  %s14 = inlined_call_operand.vmem [shape: f32[2,1,256], index: 14, kind: input, shape index: {}]
  %s15 = inlined_call_operand.vmem [shape: bf16[2,256,128], index: 15, kind: input, shape index: {}]
  %s16 = inlined_call_operand.vmem [shape: f32[2,1,128], index: 16, kind: input, shape index: {}]
  %s17 = inlined_call_operand.vmem [shape: f32[2,5,128], index: 17, kind: output, shape index: {}]
  %s18 = sld [smem:[#allocation0]]
  $region105: #{vit_forward.4} parent=0
    _
  %s20 = ssub.s32 1, %s18
  %s21 = scalar_select 0, %s20, %s18
  loop: start=0, step=1, limit=6
  $region2: #{vit_forward.4} parent=0 // loop_pre_header
    _
  $region3: #{vit_forward.4} parent=0 // loop_header
    %s23 = sphi 0, %s27
    %p24 = scmp.ge.s32.totalorder %s23, 6
    %s30 = sphi 0, %s42
    %s31 = sphi 0, %s38
    %s32 = sphi 0, %s30
    %s33 = sphi 0, %s31
    %s34 = sphi 0, %s32
    %s35 = sphi 0, %s33
    %s45 = sphi 0, %s47
    %s48 = sphi 0, %s45
    %s49 = sphi 0, %s48
    %s65 = sphi 0, %s49
    %s71 = sphi 0, %s73
    %s74 = sphi 0, %s71
    %s75 = sphi 0, %s74
    %s91 = sphi 0, %s75
    %s97 = sphi 0, %s99
    %s100 = sphi 0, %s97
    %s101 = sphi 0, %s100
    %s117 = sphi 0, %s101
    %s123 = sphi 0, %s125
    %s126 = sphi 0, %s123
    %s127 = sphi 0, %s126
    %s143 = sphi 0, %s127
    %s149 = sphi 0, %s151
    %s152 = sphi 0, %s149
    %s153 = sphi 0, %s152
    %s169 = sphi 0, %s153
    %s175 = sphi 0, %s177
    %s178 = sphi 0, %s175
    %s179 = sphi 0, %s178
    %s195 = sphi 0, %s179
    %s201 = sphi 0, %s203
    %s204 = sphi 0, %s201
    %s205 = sphi 0, %s204
    %s221 = sphi 0, %s205
    %s227 = sphi 0, %s229
    %s230 = sphi 0, %s227
    %s231 = sphi 0, %s230
    %s247 = sphi 0, %s231
    %s253 = sphi 0, %s255
    %s256 = sphi 0, %s253
    %s257 = sphi 0, %s256
    %s273 = sphi 0, %s257
    %s279 = sphi 0, %s281
    %s282 = sphi 0, %s279
    %s283 = sphi 0, %s282
    %s299 = sphi 0, %s283
    %s305 = sphi 0, %s307
    %s308 = sphi 0, %s305
    %s309 = sphi 0, %s308
    %s325 = sphi 0, %s309
    %s331 = sphi 0, %s333
    %s334 = sphi 0, %s331
    %s335 = sphi 0, %s334
    %s351 = sphi 0, %s335
    %s357 = sphi 0, %s359
    %s360 = sphi 0, %s357
    %s361 = sphi 0, %s360
    %s377 = sphi 0, %s361
    %s383 = sphi 0, %s385
    %s386 = sphi 0, %s383
    %s387 = sphi 0, %s386
    %s403 = sphi 0, %s387
    %s409 = sphi 0, %s411
    %s412 = sphi 0, %s409
    %s413 = sphi 0, %s412
    %s429 = sphi 0, %s413
    %s435 = sphi 0, %s437
    %s438 = sphi 0, %s435
    %s439 = sphi 0, %s438
    %s455 = sphi 0, %s439
    %s461 = sphi 0, %s463
    %s464 = sphi 0, %s461
    %s465 = sphi 0, %s464
    %s481 = sphi 0, %s465
    %s487 = sphi 0, %s489
    %s490 = sphi 0, %s487
    %s491 = sphi 0, %s490
    %s507 = sphi 0, %s491
  $region4: #{vit_forward.4} parent=0 // loop_header_branch
    %26 = sbr.rel (%p24) target = $region8
  $region5: #{vit_forward.4} parent=0 // loop_body
    %s28 = ssub.s32 %s23, 1
    %s29 = ssub.s32 %s23, 2
    %s36 = sadd.s32 1, %s31
    %p37 = scmp.ge.s32.totalorder %s36, 2
    %s38 = scalar_select %p37, 0, %s36
    %s39 = sadd.s32 1, %s30
    %s40 = scalar_select %p37, %s39, %s30
    %p41 = scmp.ge.s32.totalorder %s40, 2
    %s42 = scalar_select %p41, 0, %s40
    %s43 = ssub.s32 %s30, %s42
    %p44 = scmp.eq.s32.totalorder %s43, 0
    %s46 = sadd.s32 %s45, 1
    %s47 = scalar_select %p44, %s45, %s46
    %p50 = pneg %p44
    %p51 = scmp.eq.s32.totalorder %s23, 3
    %p52 = por %p50, %p51
    %p53 = scmp.ne.s32.totalorder %s45, %s48
    %p54 = scmp.eq.s32.totalorder %s23, 0
    %p55 = por %p53, %p54
    %p56 = scmp.ne.s32.totalorder %s45, %s48
    %p57 = scmp.eq.s32.totalorder %s28, 3
    %p58 = por %p56, %p57
    %p59 = scmp.ne.s32.totalorder %s48, %s49
    %p60 = scmp.eq.s32.totalorder %s28, 0
    %p61 = por %p59, %p60
    %p62 = scmp.ne.s32.totalorder %s48, %s49
    %p63 = scmp.eq.s32.totalorder %s29, 3
    %p64 = por %p62, %p63
    %p66 = scmp.ne.s32.totalorder %s49, %s65
    %p67 = scmp.eq.s32.totalorder %s29, 0
    %p68 = por %p66, %p67
    %s69 = ssub.s32 %s31, %s38
    %p70 = scmp.eq.s32.totalorder %s69, 0
    %s72 = sadd.s32 %s71, 1
    %s73 = scalar_select %p70, %s71, %s72
    %p76 = pneg %p70
    %p77 = scmp.eq.s32.totalorder %s23, 3
    %p78 = por %p76, %p77
    %p79 = scmp.ne.s32.totalorder %s71, %s74
    %p80 = scmp.eq.s32.totalorder %s23, 0
    %p81 = por %p79, %p80
    %p82 = scmp.ne.s32.totalorder %s71, %s74
    %p83 = scmp.eq.s32.totalorder %s28, 3
    %p84 = por %p82, %p83
    %p85 = scmp.ne.s32.totalorder %s74, %s75
    %p86 = scmp.eq.s32.totalorder %s28, 0
    %p87 = por %p85, %p86
    %p88 = scmp.ne.s32.totalorder %s74, %s75
    %p89 = scmp.eq.s32.totalorder %s29, 3
    %p90 = por %p88, %p89
    %p92 = scmp.ne.s32.totalorder %s75, %s91
    %p93 = scmp.eq.s32.totalorder %s29, 0
    %p94 = por %p92, %p93
    %s95 = ssub.s32 %s31, %s38
    %p96 = scmp.eq.s32.totalorder %s95, 0
    %s98 = sadd.s32 %s97, 1
    %s99 = scalar_select %p96, %s97, %s98
    %p102 = pneg %p96
    %p103 = scmp.eq.s32.totalorder %s23, 3
    %p104 = por %p102, %p103
    %p105 = scmp.ne.s32.totalorder %s97, %s100
    %p106 = scmp.eq.s32.totalorder %s23, 0
    %p107 = por %p105, %p106
    %p108 = scmp.ne.s32.totalorder %s97, %s100
    %p109 = scmp.eq.s32.totalorder %s28, 3
    %p110 = por %p108, %p109
    %p111 = scmp.ne.s32.totalorder %s100, %s101
    %p112 = scmp.eq.s32.totalorder %s28, 0
    %p113 = por %p111, %p112
    %p114 = scmp.ne.s32.totalorder %s100, %s101
    %p115 = scmp.eq.s32.totalorder %s29, 3
    %p116 = por %p114, %p115
    %p118 = scmp.ne.s32.totalorder %s101, %s117
    %p119 = scmp.eq.s32.totalorder %s29, 0
    %p120 = por %p118, %p119
    %s121 = ssub.s32 %s31, %s38
    %p122 = scmp.eq.s32.totalorder %s121, 0
    %s124 = sadd.s32 %s123, 1
    %s125 = scalar_select %p122, %s123, %s124
    %p128 = pneg %p122
    %p129 = scmp.eq.s32.totalorder %s23, 3
    %p130 = por %p128, %p129
    %p131 = scmp.ne.s32.totalorder %s123, %s126
    %p132 = scmp.eq.s32.totalorder %s23, 0
    %p133 = por %p131, %p132
    %p134 = scmp.ne.s32.totalorder %s123, %s126
    %p135 = scmp.eq.s32.totalorder %s28, 3
    %p136 = por %p134, %p135
    %p137 = scmp.ne.s32.totalorder %s126, %s127
    %p138 = scmp.eq.s32.totalorder %s28, 0
    %p139 = por %p137, %p138
    %p140 = scmp.ne.s32.totalorder %s126, %s127
    %p141 = scmp.eq.s32.totalorder %s29, 3
    %p142 = por %p140, %p141
    %p144 = scmp.ne.s32.totalorder %s127, %s143
    %p145 = scmp.eq.s32.totalorder %s29, 0
    %p146 = por %p144, %p145
    %s147 = ssub.s32 %s31, %s38
    %p148 = scmp.eq.s32.totalorder %s147, 0
    %s150 = sadd.s32 %s149, 1
    %s151 = scalar_select %p148, %s149, %s150
    %p154 = pneg %p148
    %p155 = scmp.eq.s32.totalorder %s23, 3
    %p156 = por %p154, %p155
    %p157 = scmp.ne.s32.totalorder %s149, %s152
    %p158 = scmp.eq.s32.totalorder %s23, 0
    %p159 = por %p157, %p158
    %p160 = scmp.ne.s32.totalorder %s149, %s152
    %p161 = scmp.eq.s32.totalorder %s28, 3
    %p162 = por %p160, %p161
    %p163 = scmp.ne.s32.totalorder %s152, %s153
    %p164 = scmp.eq.s32.totalorder %s28, 0
    %p165 = por %p163, %p164
    %p166 = scmp.ne.s32.totalorder %s152, %s153
    %p167 = scmp.eq.s32.totalorder %s29, 3
    %p168 = por %p166, %p167
    %p170 = scmp.ne.s32.totalorder %s153, %s169
    %p171 = scmp.eq.s32.totalorder %s29, 0
    %p172 = por %p170, %p171
    %s173 = ssub.s32 %s31, %s38
    %p174 = scmp.eq.s32.totalorder %s173, 0
    %s176 = sadd.s32 %s175, 1
    %s177 = scalar_select %p174, %s175, %s176
    %p180 = pneg %p174
    %p181 = scmp.eq.s32.totalorder %s23, 3
    %p182 = por %p180, %p181
    %p183 = scmp.ne.s32.totalorder %s175, %s178
    %p184 = scmp.eq.s32.totalorder %s23, 0
    %p185 = por %p183, %p184
    %p186 = scmp.ne.s32.totalorder %s175, %s178
    %p187 = scmp.eq.s32.totalorder %s28, 3
    %p188 = por %p186, %p187
    %p189 = scmp.ne.s32.totalorder %s178, %s179
    %p190 = scmp.eq.s32.totalorder %s28, 0
    %p191 = por %p189, %p190
    %p192 = scmp.ne.s32.totalorder %s178, %s179
    %p193 = scmp.eq.s32.totalorder %s29, 3
    %p194 = por %p192, %p193
    %p196 = scmp.ne.s32.totalorder %s179, %s195
    %p197 = scmp.eq.s32.totalorder %s29, 0
    %p198 = por %p196, %p197
    %s199 = ssub.s32 %s31, %s38
    %p200 = scmp.eq.s32.totalorder %s199, 0
    %s202 = sadd.s32 %s201, 1
    %s203 = scalar_select %p200, %s201, %s202
    %p206 = pneg %p200
    %p207 = scmp.eq.s32.totalorder %s23, 3
    %p208 = por %p206, %p207
    %p209 = scmp.ne.s32.totalorder %s201, %s204
    %p210 = scmp.eq.s32.totalorder %s23, 0
    %p211 = por %p209, %p210
    %p212 = scmp.ne.s32.totalorder %s201, %s204
    %p213 = scmp.eq.s32.totalorder %s28, 3
    %p214 = por %p212, %p213
    %p215 = scmp.ne.s32.totalorder %s204, %s205
    %p216 = scmp.eq.s32.totalorder %s28, 0
    %p217 = por %p215, %p216
    %p218 = scmp.ne.s32.totalorder %s204, %s205
    %p219 = scmp.eq.s32.totalorder %s29, 3
    %p220 = por %p218, %p219
    %p222 = scmp.ne.s32.totalorder %s205, %s221
    %p223 = scmp.eq.s32.totalorder %s29, 0
    %p224 = por %p222, %p223
    %s225 = ssub.s32 %s31, %s38
    %p226 = scmp.eq.s32.totalorder %s225, 0
    %s228 = sadd.s32 %s227, 1
    %s229 = scalar_select %p226, %s227, %s228
    %p232 = pneg %p226
    %p233 = scmp.eq.s32.totalorder %s23, 3
    %p234 = por %p232, %p233
    %p235 = scmp.ne.s32.totalorder %s227, %s230
    %p236 = scmp.eq.s32.totalorder %s23, 0
    %p237 = por %p235, %p236
    %p238 = scmp.ne.s32.totalorder %s227, %s230
    %p239 = scmp.eq.s32.totalorder %s28, 3
    %p240 = por %p238, %p239
    %p241 = scmp.ne.s32.totalorder %s230, %s231
    %p242 = scmp.eq.s32.totalorder %s28, 0
    %p243 = por %p241, %p242
    %p244 = scmp.ne.s32.totalorder %s230, %s231
    %p245 = scmp.eq.s32.totalorder %s29, 3
    %p246 = por %p244, %p245
    %p248 = scmp.ne.s32.totalorder %s231, %s247
    %p249 = scmp.eq.s32.totalorder %s29, 0
    %p250 = por %p248, %p249
    %s251 = ssub.s32 %s31, %s38
    %p252 = scmp.eq.s32.totalorder %s251, 0
    %s254 = sadd.s32 %s253, 1
    %s255 = scalar_select %p252, %s253, %s254
    %p258 = pneg %p252
    %p259 = scmp.eq.s32.totalorder %s23, 3
    %p260 = por %p258, %p259
    %p261 = scmp.ne.s32.totalorder %s253, %s256
    %p262 = scmp.eq.s32.totalorder %s23, 0
    %p263 = por %p261, %p262
    %p264 = scmp.ne.s32.totalorder %s253, %s256
    %p265 = scmp.eq.s32.totalorder %s28, 3
    %p266 = por %p264, %p265
    %p267 = scmp.ne.s32.totalorder %s256, %s257
    %p268 = scmp.eq.s32.totalorder %s28, 0
    %p269 = por %p267, %p268
    %p270 = scmp.ne.s32.totalorder %s256, %s257
    %p271 = scmp.eq.s32.totalorder %s29, 3
    %p272 = por %p270, %p271
    %p274 = scmp.ne.s32.totalorder %s257, %s273
    %p275 = scmp.eq.s32.totalorder %s29, 0
    %p276 = por %p274, %p275
    %s277 = ssub.s32 %s31, %s38
    %p278 = scmp.eq.s32.totalorder %s277, 0
    %s280 = sadd.s32 %s279, 1
    %s281 = scalar_select %p278, %s279, %s280
    %p284 = pneg %p278
    %p285 = scmp.eq.s32.totalorder %s23, 3
    %p286 = por %p284, %p285
    %p287 = scmp.ne.s32.totalorder %s279, %s282
    %p288 = scmp.eq.s32.totalorder %s23, 0
    %p289 = por %p287, %p288
    %p290 = scmp.ne.s32.totalorder %s279, %s282
    %p291 = scmp.eq.s32.totalorder %s28, 3
    %p292 = por %p290, %p291
    %p293 = scmp.ne.s32.totalorder %s282, %s283
    %p294 = scmp.eq.s32.totalorder %s28, 0
    %p295 = por %p293, %p294
    %p296 = scmp.ne.s32.totalorder %s282, %s283
    %p297 = scmp.eq.s32.totalorder %s29, 3
    %p298 = por %p296, %p297
    %p300 = scmp.ne.s32.totalorder %s283, %s299
    %p301 = scmp.eq.s32.totalorder %s29, 0
    %p302 = por %p300, %p301
    %s303 = ssub.s32 %s31, %s38
    %p304 = scmp.eq.s32.totalorder %s303, 0
    %s306 = sadd.s32 %s305, 1
    %s307 = scalar_select %p304, %s305, %s306
    %p310 = pneg %p304
    %p311 = scmp.eq.s32.totalorder %s23, 3
    %p312 = por %p310, %p311
    %p313 = scmp.ne.s32.totalorder %s305, %s308
    %p314 = scmp.eq.s32.totalorder %s23, 0
    %p315 = por %p313, %p314
    %p316 = scmp.ne.s32.totalorder %s305, %s308
    %p317 = scmp.eq.s32.totalorder %s28, 3
    %p318 = por %p316, %p317
    %p319 = scmp.ne.s32.totalorder %s308, %s309
    %p320 = scmp.eq.s32.totalorder %s28, 0
    %p321 = por %p319, %p320
    %p322 = scmp.ne.s32.totalorder %s308, %s309
    %p323 = scmp.eq.s32.totalorder %s29, 3
    %p324 = por %p322, %p323
    %p326 = scmp.ne.s32.totalorder %s309, %s325
    %p327 = scmp.eq.s32.totalorder %s29, 0
    %p328 = por %p326, %p327
    %s329 = ssub.s32 %s31, %s38
    %p330 = scmp.eq.s32.totalorder %s329, 0
    %s332 = sadd.s32 %s331, 1
    %s333 = scalar_select %p330, %s331, %s332
    %p336 = pneg %p330
    %p337 = scmp.eq.s32.totalorder %s23, 3
    %p338 = por %p336, %p337
    %p339 = scmp.ne.s32.totalorder %s331, %s334
    %p340 = scmp.eq.s32.totalorder %s23, 0
    %p341 = por %p339, %p340
    %p342 = scmp.ne.s32.totalorder %s331, %s334
    %p343 = scmp.eq.s32.totalorder %s28, 3
    %p344 = por %p342, %p343
    %p345 = scmp.ne.s32.totalorder %s334, %s335
    %p346 = scmp.eq.s32.totalorder %s28, 0
    %p347 = por %p345, %p346
    %p348 = scmp.ne.s32.totalorder %s334, %s335
    %p349 = scmp.eq.s32.totalorder %s29, 3
    %p350 = por %p348, %p349
    %p352 = scmp.ne.s32.totalorder %s335, %s351
    %p353 = scmp.eq.s32.totalorder %s29, 0
    %p354 = por %p352, %p353
    %s355 = ssub.s32 %s31, %s38
    %p356 = scmp.eq.s32.totalorder %s355, 0
    %s358 = sadd.s32 %s357, 1
    %s359 = scalar_select %p356, %s357, %s358
    %p362 = pneg %p356
    %p363 = scmp.eq.s32.totalorder %s23, 3
    %p364 = por %p362, %p363
    %p365 = scmp.ne.s32.totalorder %s357, %s360
    %p366 = scmp.eq.s32.totalorder %s23, 0
    %p367 = por %p365, %p366
    %p368 = scmp.ne.s32.totalorder %s357, %s360
    %p369 = scmp.eq.s32.totalorder %s28, 3
    %p370 = por %p368, %p369
    %p371 = scmp.ne.s32.totalorder %s360, %s361
    %p372 = scmp.eq.s32.totalorder %s28, 0
    %p373 = por %p371, %p372
    %p374 = scmp.ne.s32.totalorder %s360, %s361
    %p375 = scmp.eq.s32.totalorder %s29, 3
    %p376 = por %p374, %p375
    %p378 = scmp.ne.s32.totalorder %s361, %s377
    %p379 = scmp.eq.s32.totalorder %s29, 0
    %p380 = por %p378, %p379
    %s381 = ssub.s32 %s31, %s38
    %p382 = scmp.eq.s32.totalorder %s381, 0
    %s384 = sadd.s32 %s383, 1
    %s385 = scalar_select %p382, %s383, %s384
    %p388 = pneg %p382
    %p389 = scmp.eq.s32.totalorder %s23, 3
    %p390 = por %p388, %p389
    %p391 = scmp.ne.s32.totalorder %s383, %s386
    %p392 = scmp.eq.s32.totalorder %s23, 0
    %p393 = por %p391, %p392
    %p394 = scmp.ne.s32.totalorder %s383, %s386
    %p395 = scmp.eq.s32.totalorder %s28, 3
    %p396 = por %p394, %p395
    %p397 = scmp.ne.s32.totalorder %s386, %s387
    %p398 = scmp.eq.s32.totalorder %s28, 0
    %p399 = por %p397, %p398
    %p400 = scmp.ne.s32.totalorder %s386, %s387
    %p401 = scmp.eq.s32.totalorder %s29, 3
    %p402 = por %p400, %p401
    %p404 = scmp.ne.s32.totalorder %s387, %s403
    %p405 = scmp.eq.s32.totalorder %s29, 0
    %p406 = por %p404, %p405
    %s407 = ssub.s32 %s31, %s38
    %p408 = scmp.eq.s32.totalorder %s407, 0
    %s410 = sadd.s32 %s409, 1
    %s411 = scalar_select %p408, %s409, %s410
    %p414 = pneg %p408
    %p415 = scmp.eq.s32.totalorder %s23, 3
    %p416 = por %p414, %p415
    %p417 = scmp.ne.s32.totalorder %s409, %s412
    %p418 = scmp.eq.s32.totalorder %s23, 0
    %p419 = por %p417, %p418
    %p420 = scmp.ne.s32.totalorder %s409, %s412
    %p421 = scmp.eq.s32.totalorder %s28, 3
    %p422 = por %p420, %p421
    %p423 = scmp.ne.s32.totalorder %s412, %s413
    %p424 = scmp.eq.s32.totalorder %s28, 0
    %p425 = por %p423, %p424
    %p426 = scmp.ne.s32.totalorder %s412, %s413
    %p427 = scmp.eq.s32.totalorder %s29, 3
    %p428 = por %p426, %p427
    %p430 = scmp.ne.s32.totalorder %s413, %s429
    %p431 = scmp.eq.s32.totalorder %s29, 0
    %p432 = por %p430, %p431
    %s433 = ssub.s32 %s31, %s38
    %p434 = scmp.eq.s32.totalorder %s433, 0
    %s436 = sadd.s32 %s435, 1
    %s437 = scalar_select %p434, %s435, %s436
    %p440 = pneg %p434
    %p441 = scmp.eq.s32.totalorder %s23, 3
    %p442 = por %p440, %p441
    %p443 = scmp.ne.s32.totalorder %s435, %s438
    %p444 = scmp.eq.s32.totalorder %s23, 0
    %p445 = por %p443, %p444
    %p446 = scmp.ne.s32.totalorder %s435, %s438
    %p447 = scmp.eq.s32.totalorder %s28, 3
    %p448 = por %p446, %p447
    %p449 = scmp.ne.s32.totalorder %s438, %s439
    %p450 = scmp.eq.s32.totalorder %s28, 0
    %p451 = por %p449, %p450
    %p452 = scmp.ne.s32.totalorder %s438, %s439
    %p453 = scmp.eq.s32.totalorder %s29, 3
    %p454 = por %p452, %p453
    %p456 = scmp.ne.s32.totalorder %s439, %s455
    %p457 = scmp.eq.s32.totalorder %s29, 0
    %p458 = por %p456, %p457
    %s459 = ssub.s32 %s31, %s38
    %p460 = scmp.eq.s32.totalorder %s459, 0
    %s462 = sadd.s32 %s461, 1
    %s463 = scalar_select %p460, %s461, %s462
    %p466 = pneg %p460
    %p467 = scmp.eq.s32.totalorder %s23, 3
    %p468 = por %p466, %p467
    %p469 = scmp.ne.s32.totalorder %s461, %s464
    %p470 = scmp.eq.s32.totalorder %s23, 0
    %p471 = por %p469, %p470
    %p472 = scmp.ne.s32.totalorder %s461, %s464
    %p473 = scmp.eq.s32.totalorder %s28, 3
    %p474 = por %p472, %p473
    %p475 = scmp.ne.s32.totalorder %s464, %s465
    %p476 = scmp.eq.s32.totalorder %s28, 0
    %p477 = por %p475, %p476
    %p478 = scmp.ne.s32.totalorder %s464, %s465
    %p479 = scmp.eq.s32.totalorder %s29, 3
    %p480 = por %p478, %p479
    %p482 = scmp.ne.s32.totalorder %s465, %s481
    %p483 = scmp.eq.s32.totalorder %s29, 0
    %p484 = por %p482, %p483
    %s485 = ssub.s32 %s30, %s42
    %p486 = scmp.eq.s32.totalorder %s485, 0
    %s488 = sadd.s32 %s487, 1
    %s489 = scalar_select %p486, %s487, %s488
    %p492 = pneg %p486
    %p493 = scmp.eq.s32.totalorder %s23, 3
    %p494 = por %p492, %p493
    %p495 = scmp.ne.s32.totalorder %s487, %s490
    %p496 = scmp.eq.s32.totalorder %s23, 0
    %p497 = por %p495, %p496
    %p498 = scmp.ne.s32.totalorder %s487, %s490
    %p499 = scmp.eq.s32.totalorder %s28, 3
    %p500 = por %p498, %p499
    %p501 = scmp.ne.s32.totalorder %s490, %s491
    %p502 = scmp.eq.s32.totalorder %s28, 0
    %p503 = por %p501, %p502
    %p504 = scmp.ne.s32.totalorder %s490, %s491
    %p505 = scmp.eq.s32.totalorder %s29, 3
    %p506 = por %p504, %p505
    %p508 = scmp.ne.s32.totalorder %s491, %s507
    %p509 = scmp.eq.s32.totalorder %s29, 0
    %p510 = por %p508, %p509
    %p511 = scmp.le.s32.totalorder 1, %s23
    %p512 = scmp.lt.s32.totalorder %s23, 5
    %p513 = pnand %p511, %p512
    %p514 = pneg %p513
    // Predicated region
    $region9: #{vit_forward.4} parent=5 // pred_check
      _
    $region10: #{vit_forward.4} parent=5 // pred_check_branch
      %516 = sbr.rel (%p513) target = $region12
    $region11: #{vit_forward.4} parent=5 // pred_region
      %s517 = ssub.s32 %s23, 1
    $region12: #{vit_forward.4} parent=5 // pred_fallthru
      _
    %p518 = scmp.lt.s32.totalorder %s23, 4
    // Predicated region
    $region13: #{vit_forward.4} parent=5 // pred_check
      %p519 = pneg %p518
    $region14: #{vit_forward.4} parent=5 // pred_check_branch
      %521 = sbr.rel (%p519) target = $region16
    $region15: #{vit_forward.4} parent=5 // pred_region
      // Predicated region
      $region17: #{vit_forward.4} parent=15 // pred_check
        %p522 = pneg %p55
      $region18: #{vit_forward.4} parent=15 // pred_check_branch
        %524 = sbr.rel (%p522) target = $region20
      $region19: #{vit_forward.4} parent=15 // pred_region
        %p525 = scmp.lt.s32.totalorder %s30, 1
        %s526 = scalar_select %p525, %s30, 1
        %s527 = smul.addr %s526, 8
        %s528 = scalar_lea.vmem %s0, %s527
      $region20: #{vit_forward.4} parent=15 // pred_fallthru
        _
      // Predicated region
      $region21: #{vit_forward.4} parent=15 // pred_check
        %p529 = pneg %p81
      $region22: #{vit_forward.4} parent=15 // pred_check_branch
        %531 = sbr.rel (%p529) target = $region24
      $region23: #{vit_forward.4} parent=15 // pred_region
        %p532 = scmp.lt.s32.totalorder %s31, 1
        %s533 = scalar_select %p532, %s31, 1
        %s534 = scalar_lea.vmem %s1, %s533
      $region24: #{vit_forward.4} parent=15 // pred_fallthru
        _
      // Predicated region
      $region25: #{vit_forward.4} parent=15 // pred_check
        %p535 = pneg %p107
      $region26: #{vit_forward.4} parent=15 // pred_check_branch
        %537 = sbr.rel (%p535) target = $region28
      $region27: #{vit_forward.4} parent=15 // pred_region
        %p538 = scmp.lt.s32.totalorder %s31, 1
        %s539 = scalar_select %p538, %s31, 1
        %s540 = scalar_lea.vmem %s2, %s539
      $region28: #{vit_forward.4} parent=15 // pred_fallthru
        _
      // Predicated region
      $region29: #{vit_forward.4} parent=15 // pred_check
        %p541 = pneg %p133
      $region30: #{vit_forward.4} parent=15 // pred_check_branch
        %543 = sbr.rel (%p541) target = $region32
      $region31: #{vit_forward.4} parent=15 // pred_region
        %p544 = scmp.lt.s32.totalorder %s31, 1
        %s545 = scalar_select %p544, %s31, 1
        %s546 = smul.addr %s545, 64
        %s547 = smul.addr %s546, 4
        %s548 = scalar_lea.vmem %s3, %s547
      $region32: #{vit_forward.4} parent=15 // pred_fallthru
        _
      // Predicated region
      $region33: #{vit_forward.4} parent=15 // pred_check
        %p549 = pneg %p159
      $region34: #{vit_forward.4} parent=15 // pred_check_branch
        %551 = sbr.rel (%p549) target = $region36
      $region35: #{vit_forward.4} parent=15 // pred_region
        %p552 = scmp.lt.s32.totalorder %s31, 1
        %s553 = scalar_select %p552, %s31, 1
        %s554 = smul.addr %s553, 64
        %s555 = smul.addr %s554, 4
        %s556 = scalar_lea.vmem %s4, %s555
      $region36: #{vit_forward.4} parent=15 // pred_fallthru
        _
      // Predicated region
      $region37: #{vit_forward.4} parent=15 // pred_check
        %p557 = pneg %p185
      $region38: #{vit_forward.4} parent=15 // pred_check_branch
        %559 = sbr.rel (%p557) target = $region40
      $region39: #{vit_forward.4} parent=15 // pred_region
        %p560 = scmp.lt.s32.totalorder %s31, 1
        %s561 = scalar_select %p560, %s31, 1
        %s562 = smul.addr %s561, 64
        %s563 = smul.addr %s562, 4
        %s564 = scalar_lea.vmem %s5, %s563
      $region40: #{vit_forward.4} parent=15 // pred_fallthru
        _
      // Predicated region
      $region41: #{vit_forward.4} parent=15 // pred_check
        %p565 = pneg %p211
      $region42: #{vit_forward.4} parent=15 // pred_check_branch
        %567 = sbr.rel (%p565) target = $region44
      $region43: #{vit_forward.4} parent=15 // pred_region
        %p568 = scmp.lt.s32.totalorder %s31, 1
        %s569 = scalar_select %p568, %s31, 1
        %s570 = smul.addr %s569, 4
        %s571 = scalar_lea.vmem %s6, %s570
      $region44: #{vit_forward.4} parent=15 // pred_fallthru
        _
      // Predicated region
      $region45: #{vit_forward.4} parent=15 // pred_check
        %p572 = pneg %p237
      $region46: #{vit_forward.4} parent=15 // pred_check_branch
        %574 = sbr.rel (%p572) target = $region48
      $region47: #{vit_forward.4} parent=15 // pred_region
        %p575 = scmp.lt.s32.totalorder %s31, 1
        %s576 = scalar_select %p575, %s31, 1
        %s577 = smul.addr %s576, 4
        %s578 = scalar_lea.vmem %s7, %s577
      $region48: #{vit_forward.4} parent=15 // pred_fallthru
        _
      // Predicated region
      $region49: #{vit_forward.4} parent=15 // pred_check
        %p579 = pneg %p263
      $region50: #{vit_forward.4} parent=15 // pred_check_branch
        %581 = sbr.rel (%p579) target = $region52
      $region51: #{vit_forward.4} parent=15 // pred_region
        %p582 = scmp.lt.s32.totalorder %s31, 1
        %s583 = scalar_select %p582, %s31, 1
        %s584 = smul.addr %s583, 4
        %s585 = scalar_lea.vmem %s8, %s584
      $region52: #{vit_forward.4} parent=15 // pred_fallthru
        _
      // Predicated region
      $region53: #{vit_forward.4} parent=15 // pred_check
        %p586 = pneg %p289
      $region54: #{vit_forward.4} parent=15 // pred_check_branch
        %588 = sbr.rel (%p586) target = $region56
      $region55: #{vit_forward.4} parent=15 // pred_region
        %p589 = scmp.lt.s32.totalorder %s31, 1
        %s590 = scalar_select %p589, %s31, 1
        %s591 = smul.addr %s590, 16
        %s592 = smul.addr %s591, 4
        %s593 = scalar_lea.vmem %s9, %s592
      $region56: #{vit_forward.4} parent=15 // pred_fallthru
        _
      // Predicated region
      $region57: #{vit_forward.4} parent=15 // pred_check
        %p594 = pneg %p315
      $region58: #{vit_forward.4} parent=15 // pred_check_branch
        %596 = sbr.rel (%p594) target = $region60
      $region59: #{vit_forward.4} parent=15 // pred_region
        %p597 = scmp.lt.s32.totalorder %s31, 1
        %s598 = scalar_select %p597, %s31, 1
        %s599 = scalar_lea.vmem %s10, %s598
      $region60: #{vit_forward.4} parent=15 // pred_fallthru
        _
      // Predicated region
      $region61: #{vit_forward.4} parent=15 // pred_check
        %p600 = pneg %p341
      $region62: #{vit_forward.4} parent=15 // pred_check_branch
        %602 = sbr.rel (%p600) target = $region64
      $region63: #{vit_forward.4} parent=15 // pred_region
        %p603 = scmp.lt.s32.totalorder %s31, 1
        %s604 = scalar_select %p603, %s31, 1
        %s605 = scalar_lea.vmem %s11, %s604
      $region64: #{vit_forward.4} parent=15 // pred_fallthru
        _
      // Predicated region
      $region65: #{vit_forward.4} parent=15 // pred_check
        %p606 = pneg %p367
      $region66: #{vit_forward.4} parent=15 // pred_check_branch
        %608 = sbr.rel (%p606) target = $region68
      $region67: #{vit_forward.4} parent=15 // pred_region
        %p609 = scmp.lt.s32.totalorder %s31, 1
        %s610 = scalar_select %p609, %s31, 1
        %s611 = scalar_lea.vmem %s12, %s610
      $region68: #{vit_forward.4} parent=15 // pred_fallthru
        _
      // Predicated region
      $region69: #{vit_forward.4} parent=15 // pred_check
        %p612 = pneg %p393
      $region70: #{vit_forward.4} parent=15 // pred_check_branch
        %614 = sbr.rel (%p612) target = $region72
      $region71: #{vit_forward.4} parent=15 // pred_region
        %p615 = scmp.lt.s32.totalorder %s31, 1
        %s616 = scalar_select %p615, %s31, 1
        %s617 = smul.addr %s616, 32
        %s618 = smul.addr %s617, 4
        %s619 = scalar_lea.vmem %s13, %s618
      $region72: #{vit_forward.4} parent=15 // pred_fallthru
        _
      // Predicated region
      $region73: #{vit_forward.4} parent=15 // pred_check
        %p620 = pneg %p419
      $region74: #{vit_forward.4} parent=15 // pred_check_branch
        %622 = sbr.rel (%p620) target = $region76
      $region75: #{vit_forward.4} parent=15 // pred_region
        %p623 = scmp.lt.s32.totalorder %s31, 1
        %s624 = scalar_select %p623, %s31, 1
        %s625 = smul.addr %s624, 2
        %s626 = scalar_lea.vmem %s14, %s625
      $region76: #{vit_forward.4} parent=15 // pred_fallthru
        _
      // Predicated region
      $region77: #{vit_forward.4} parent=15 // pred_check
        %p627 = pneg %p445
      $region78: #{vit_forward.4} parent=15 // pred_check_branch
        %629 = sbr.rel (%p627) target = $region80
      $region79: #{vit_forward.4} parent=15 // pred_region
        %p630 = scmp.lt.s32.totalorder %s31, 1
        %s631 = scalar_select %p630, %s31, 1
        %s632 = smul.addr %s631, 32
        %s633 = smul.addr %s632, 4
        %s634 = scalar_lea.vmem %s15, %s633
      $region80: #{vit_forward.4} parent=15 // pred_fallthru
        _
      // Predicated region
      $region81: #{vit_forward.4} parent=15 // pred_check
        %p635 = pneg %p471
      $region82: #{vit_forward.4} parent=15 // pred_check_branch
        %637 = sbr.rel (%p635) target = $region84
      $region83: #{vit_forward.4} parent=15 // pred_region
        %p638 = scmp.lt.s32.totalorder %s31, 1
        %s639 = scalar_select %p638, %s31, 1
        %s640 = scalar_lea.vmem %s16, %s639
      $region84: #{vit_forward.4} parent=15 // pred_fallthru
        _
    $region16: #{vit_forward.4} parent=5 // pred_fallthru
      _
    %p641 = scmp.le.s32.totalorder 1, %s23
    %p642 = scmp.lt.s32.totalorder %s23, 5
    %p643 = pnand %p641, %p642
    %p644 = pneg %p643
    // Predicated region
    $region85: #{vit_forward.4} parent=5 // pred_check
      _
    $region86: #{vit_forward.4} parent=5 // pred_check_branch
      %646 = sbr.rel (%p643) target = $region88
    $region87: #{vit_forward.4} parent=5 // pred_region
      %s647 = ssub.s32 %s23, 1
      %p648 = scmp.lt.s32.totalorder %s32, 1
      %s649 = scalar_select %p648, %s32, 1
      %s650 = smul.addr %s649, 8
      %s651 = scalar_lea.vmem %s0, %s650
      %p652 = pneg %p61
      %p653 = pneg %p58
      %p654 = scmp.lt.s32.totalorder %s33, 1
      %s655 = scalar_select %p654, %s33, 1
      %s656 = scalar_lea.vmem %s1, %s655
      %p657 = pneg %p87
      %p658 = pneg %p84
      %p659 = scmp.lt.s32.totalorder %s33, 1
      %s660 = scalar_select %p659, %s33, 1
      %s661 = scalar_lea.vmem %s2, %s660
      %p662 = pneg %p113
      %p663 = pneg %p110
      %p664 = scmp.lt.s32.totalorder %s33, 1
      %s665 = scalar_select %p664, %s33, 1
      %s666 = smul.addr %s665, 64
      %s667 = smul.addr %s666, 4
      %s668 = scalar_lea.vmem %s3, %s667
      %p669 = pneg %p139
      %p670 = pneg %p136
      %p671 = scmp.lt.s32.totalorder %s33, 1
      %s672 = scalar_select %p671, %s33, 1
      %s673 = smul.addr %s672, 64
      %s674 = smul.addr %s673, 4
      %s675 = scalar_lea.vmem %s4, %s674
      %p676 = pneg %p165
      %p677 = pneg %p162
      %p678 = scmp.lt.s32.totalorder %s33, 1
      %s679 = scalar_select %p678, %s33, 1
      %s680 = smul.addr %s679, 64
      %s681 = smul.addr %s680, 4
      %s682 = scalar_lea.vmem %s5, %s681
      %p683 = pneg %p191
      %p684 = pneg %p188
      %p685 = scmp.lt.s32.totalorder %s33, 1
      %s686 = scalar_select %p685, %s33, 1
      %s687 = smul.addr %s686, 4
      %s688 = scalar_lea.vmem %s6, %s687
      %p689 = pneg %p217
      %p690 = pneg %p214
      %p691 = scmp.lt.s32.totalorder %s33, 1
      %s692 = scalar_select %p691, %s33, 1
      %s693 = smul.addr %s692, 4
      %s694 = scalar_lea.vmem %s7, %s693
      %p695 = pneg %p243
      %p696 = pneg %p240
      %p697 = scmp.lt.s32.totalorder %s33, 1
      %s698 = scalar_select %p697, %s33, 1
      %s699 = smul.addr %s698, 4
      %s700 = scalar_lea.vmem %s8, %s699
      %p701 = pneg %p269
      %p702 = pneg %p266
      %p703 = scmp.lt.s32.totalorder %s33, 1
      %s704 = scalar_select %p703, %s33, 1
      %s705 = smul.addr %s704, 16
      %s706 = smul.addr %s705, 4
      %s707 = scalar_lea.vmem %s9, %s706
      %p708 = pneg %p295
      %p709 = pneg %p292
      %p710 = scmp.lt.s32.totalorder %s33, 1
      %s711 = scalar_select %p710, %s33, 1
      %s712 = scalar_lea.vmem %s10, %s711
      %p713 = pneg %p321
      %p714 = pneg %p318
      %p715 = scmp.lt.s32.totalorder %s33, 1
      %s716 = scalar_select %p715, %s33, 1
      %s717 = scalar_lea.vmem %s11, %s716
      %p718 = pneg %p347
      %p719 = pneg %p344
      %p720 = scmp.lt.s32.totalorder %s33, 1
      %s721 = scalar_select %p720, %s33, 1
      %s722 = scalar_lea.vmem %s12, %s721
      %p723 = pneg %p373
      %p724 = pneg %p370
      %p725 = scmp.lt.s32.totalorder %s33, 1
      %s726 = scalar_select %p725, %s33, 1
      %s727 = smul.addr %s726, 32
      %s728 = smul.addr %s727, 4
      %s729 = scalar_lea.vmem %s13, %s728
      %p730 = pneg %p399
      %p731 = pneg %p396
      %p732 = scmp.lt.s32.totalorder %s33, 1
      %s733 = scalar_select %p732, %s33, 1
      %s734 = smul.addr %s733, 2
      %s735 = scalar_lea.vmem %s14, %s734
      %p736 = pneg %p425
      %p737 = pneg %p422
      %p738 = scmp.lt.s32.totalorder %s33, 1
      %s739 = scalar_select %p738, %s33, 1
      %s740 = smul.addr %s739, 32
      %s741 = smul.addr %s740, 4
      %s742 = scalar_lea.vmem %s15, %s741
      %p743 = pneg %p451
      %p744 = pneg %p448
      %p745 = scmp.lt.s32.totalorder %s33, 1
      %s746 = scalar_select %p745, %s33, 1
      %s747 = scalar_lea.vmem %s16, %s746
      %p748 = pneg %p477
      %p749 = pneg %p474
      %p750 = pneg %p503
      %p751 = pneg %p500
      %p752 = scmp.lt.s32.totalorder %s32, 1
      %s753 = scalar_select %p752, %s32, 1
      %s754 = smul.addr %s753, 8
      %s755 = scalar_lea.vmem %s17, %s754
      %p756 = scmp.lt.s32.totalorder %s32, 1
      %s757 = scalar_select %p756, %s32, 1
      %s758 = smul.addr %s757, 8
      %s759 = scalar_lea.vmem %s0, %s758
      %p760 = scmp.lt.s32.totalorder %s33, 1
      %s761 = scalar_select %p760, %s33, 1
      %s762 = scalar_lea.vmem %s1, %s761
      %p763 = scmp.lt.s32.totalorder %s33, 1
      %s764 = scalar_select %p763, %s33, 1
      %s765 = scalar_lea.vmem %s2, %s764
      %p766 = scmp.lt.s32.totalorder %s33, 1
      %s767 = scalar_select %p766, %s33, 1
      %s768 = smul.addr %s767, 64
      %s769 = smul.addr %s768, 4
      %s770 = scalar_lea.vmem %s3, %s769
      %p771 = scmp.lt.s32.totalorder %s33, 1
      %s772 = scalar_select %p771, %s33, 1
      %s773 = smul.addr %s772, 64
      %s774 = smul.addr %s773, 4
      %s775 = scalar_lea.vmem %s4, %s774
      %p776 = scmp.lt.s32.totalorder %s33, 1
      %s777 = scalar_select %p776, %s33, 1
      %s778 = smul.addr %s777, 64
      %s779 = smul.addr %s778, 4
      %s780 = scalar_lea.vmem %s5, %s779
      %p781 = scmp.lt.s32.totalorder %s33, 1
      %s782 = scalar_select %p781, %s33, 1
      %s783 = smul.addr %s782, 4
      %s784 = scalar_lea.vmem %s6, %s783
      %p785 = scmp.lt.s32.totalorder %s33, 1
      %s786 = scalar_select %p785, %s33, 1
      %s787 = smul.addr %s786, 4
      %s788 = scalar_lea.vmem %s7, %s787
      %p789 = scmp.lt.s32.totalorder %s33, 1
      %s790 = scalar_select %p789, %s33, 1
      %s791 = smul.addr %s790, 4
      %s792 = scalar_lea.vmem %s8, %s791
      %p793 = scmp.lt.s32.totalorder %s33, 1
      %s794 = scalar_select %p793, %s33, 1
      %s795 = smul.addr %s794, 16
      %s796 = smul.addr %s795, 4
      %s797 = scalar_lea.vmem %s9, %s796
      %p798 = scmp.lt.s32.totalorder %s33, 1
      %s799 = scalar_select %p798, %s33, 1
      %s800 = scalar_lea.vmem %s10, %s799
      %p801 = scmp.lt.s32.totalorder %s33, 1
      %s802 = scalar_select %p801, %s33, 1
      %s803 = scalar_lea.vmem %s11, %s802
      %p804 = scmp.lt.s32.totalorder %s33, 1
      %s805 = scalar_select %p804, %s33, 1
      %s806 = scalar_lea.vmem %s12, %s805
      %p807 = scmp.lt.s32.totalorder %s33, 1
      %s808 = scalar_select %p807, %s33, 1
      %s809 = smul.addr %s808, 32
      %s810 = smul.addr %s809, 4
      %s811 = scalar_lea.vmem %s13, %s810
      %p812 = scmp.lt.s32.totalorder %s33, 1
      %s813 = scalar_select %p812, %s33, 1
      %s814 = smul.addr %s813, 2
      %s815 = scalar_lea.vmem %s14, %s814
      %p816 = scmp.lt.s32.totalorder %s33, 1
      %s817 = scalar_select %p816, %s33, 1
      %s818 = smul.addr %s817, 32
      %s819 = smul.addr %s818, 4
      %s820 = scalar_lea.vmem %s15, %s819
      %p821 = scmp.lt.s32.totalorder %s33, 1
      %s822 = scalar_select %p821, %s33, 1
      %s823 = scalar_lea.vmem %s16, %s822
      %p824 = scmp.lt.s32.totalorder %s32, 1
      %s825 = scalar_select %p824, %s32, 1
      %s826 = smul.addr %s825, 8
      %s827 = scalar_lea.vmem %s17, %s826
      %p829 = scmp.eq.s32.totalorder %s33, 0
      // Predicated region
      $region89: #{vit_forward.4} parent=87 // pred_check
        %p830 = pneg %p829
      $region90: #{vit_forward.4} parent=87 // pred_check_branch
        %832 = sbr.rel (%p830) target = $region92
      $region91: #{vit_forward.4} parent=87 // pred_region
        %v833 = vld [vmem:[%s759] sm:$0x1f]
        %834 = vst [vmem:[%s827] sm:$0x1f] %v833
      $region92: #{vit_forward.4} parent=87 // pred_fallthru
        _
      %v835 = vld [vmem:[%s827] sm:$0x1f]
      %v836 = vld [vmem:[%s762] sm:$0x1]
      %v837 = vld [vmem:[%s765] sm:$0x1]
      %vm838 = vcmask 1044480
      %v839 = vsel %vm838, %v835, 0.0
      %840 = vadd.xlane.f32.xlu0 %v839
      %v841 = vpop.xlane.xlu0 %840
      %v842 = vrcp.pop 128.0
      %v843 = vmul.f32 %v841, %v842
      %v844 = vsub.f32 %v835, %v843
      %v845 = vmul.f32 %v844, %v844
      %v846 = vsel %vm838, %v845, 0.0
      %847 = vadd.xlane.f32.xlu0 %v846
      %v848 = vpop.xlane.xlu0 %847
      %v849 = vmul.f32 %v848, %v842
      %v850 = vadd.f32 %v849, 1e-12
      %v851 = vrsqrt.pop %v850
      %v852 = vmul.f32 %v844, %v851
      %v854 = vlaneseq
      %v855 = vshrl.u32 %v854, 7
      %v856 = vsub.s32 0, %v855
      %v857 = vrot.slane %v836, %v856
      %v859 = vmul.f32 %v852, %v857
      %v861 = vlaneseq
      %v862 = vshrl.u32 %v861, 7
      %v863 = vsub.s32 0, %v862
      %v864 = vrot.slane %v837, %v863
      %v866 = vadd.f32 %v859, %v864
      %v867 = vpack.c.bf16 %v866, %v866
      %v868 = vld [vmem:[%s770] sm:$0xf]
      %v869 = vld [vmem:[%s770 + $0x4] sm:$0xf]
      %v870 = vld [vmem:[%s770 + $0x8] sm:$0xf]
      %v871 = vld [vmem:[%s770 + $0xc] sm:$0xf]
      %v872 = vld [vmem:[%s770 + $0x10] sm:$0xf]
      %v873 = vld [vmem:[%s770 + $0x14] sm:$0xf]
      %v874 = vld [vmem:[%s770 + $0x18] sm:$0xf]
      %v875 = vld [vmem:[%s770 + $0x1c] sm:$0xf]
      %v876 = vld [vmem:[%s770 + $0x20] sm:$0xf]
      %v877 = vld [vmem:[%s770 + $0x24] sm:$0xf]
      %v878 = vld [vmem:[%s770 + $0x28] sm:$0xf]
      %v879 = vld [vmem:[%s770 + $0x2c] sm:$0xf]
      %v880 = vld [vmem:[%s770 + $0x30] sm:$0xf]
      %v881 = vld [vmem:[%s770 + $0x34] sm:$0xf]
      %v882 = vld [vmem:[%s770 + $0x38] sm:$0xf]
      %v883 = vld [vmem:[%s770 + $0x3c] sm:$0xf]
      %v884 = vld [vmem:[%s770 + $0x40] sm:$0xf]
      %v885 = vld [vmem:[%s770 + $0x44] sm:$0xf]
      %v886 = vld [vmem:[%s770 + $0x48] sm:$0xf]
      %v887 = vld [vmem:[%s770 + $0x4c] sm:$0xf]
      %v888 = vld [vmem:[%s770 + $0x50] sm:$0xf]
      %v889 = vld [vmem:[%s770 + $0x54] sm:$0xf]
      %v890 = vld [vmem:[%s770 + $0x58] sm:$0xf]
      %v891 = vld [vmem:[%s770 + $0x5c] sm:$0xf]
      %v892 = vld [vmem:[%s770 + $0x60] sm:$0xf]
      %v893 = vld [vmem:[%s770 + $0x64] sm:$0xf]
      %v894 = vld [vmem:[%s770 + $0x68] sm:$0xf]
      %v895 = vld [vmem:[%s770 + $0x6c] sm:$0xf]
      %v896 = vld [vmem:[%s770 + $0x70] sm:$0xf]
      %v897 = vld [vmem:[%s770 + $0x74] sm:$0xf]
      %v898 = vld [vmem:[%s770 + $0x78] sm:$0xf]
      %v899 = vld [vmem:[%s770 + $0x7c] sm:$0xf]
      %v900 = vld [vmem:[%s770 + $0x80] sm:$0xf]
      %v901 = vld [vmem:[%s770 + $0x84] sm:$0xf]
      %v902 = vld [vmem:[%s770 + $0x88] sm:$0xf]
      %v903 = vld [vmem:[%s770 + $0x8c] sm:$0xf]
      %v904 = vld [vmem:[%s770 + $0x90] sm:$0xf]
      %v905 = vld [vmem:[%s770 + $0x94] sm:$0xf]
      %v906 = vld [vmem:[%s770 + $0x98] sm:$0xf]
      %v907 = vld [vmem:[%s770 + $0x9c] sm:$0xf]
      %v908 = vld [vmem:[%s770 + $0xa0] sm:$0xf]
      %v909 = vld [vmem:[%s770 + $0xa4] sm:$0xf]
      %v910 = vld [vmem:[%s770 + $0xa8] sm:$0xf]
      %v911 = vld [vmem:[%s770 + $0xac] sm:$0xf]
      %v912 = vld [vmem:[%s770 + $0xb0] sm:$0xf]
      %v913 = vld [vmem:[%s770 + $0xb4] sm:$0xf]
      %v914 = vld [vmem:[%s770 + $0xb8] sm:$0xf]
      %v915 = vld [vmem:[%s770 + $0xbc] sm:$0xf]
      %v916 = vld [vmem:[%s770 + $0xc0] sm:$0xf]
      %v917 = vld [vmem:[%s770 + $0xc4] sm:$0xf]
      %v918 = vld [vmem:[%s770 + $0xc8] sm:$0xf]
      %v919 = vld [vmem:[%s770 + $0xcc] sm:$0xf]
      %v920 = vld [vmem:[%s770 + $0xd0] sm:$0xf]
      %v921 = vld [vmem:[%s770 + $0xd4] sm:$0xf]
      %v922 = vld [vmem:[%s770 + $0xd8] sm:$0xf]
      %v923 = vld [vmem:[%s770 + $0xdc] sm:$0xf]
      %v924 = vld [vmem:[%s770 + $0xe0] sm:$0xf]
      %v925 = vld [vmem:[%s770 + $0xe4] sm:$0xf]
      %v926 = vld [vmem:[%s770 + $0xe8] sm:$0xf]
      %v927 = vld [vmem:[%s770 + $0xec] sm:$0xf]
      %v928 = vld [vmem:[%s770 + $0xf0] sm:$0xf]
      %v929 = vld [vmem:[%s770 + $0xf4] sm:$0xf]
      %v930 = vld [vmem:[%s770 + $0xf8] sm:$0xf]
      %v931 = vld [vmem:[%s770 + $0xfc] sm:$0xf]
      %v932 = vld [vmem:[%s784] sm:$0x1]
      %v933 = vld [vmem:[%s784 + $0x1] sm:$0x1]
      %v934 = vld [vmem:[%s784 + $0x2] sm:$0x1]
      %v935 = vld [vmem:[%s784 + $0x3] sm:$0x1]
      %v940 = vlaneseq
      %v941 = vshrl.u32 %v940, 7
      %v942 = vsub.s32 0, %v941
      %v943 = vrot.slane %v932, %v942
      %v944 = vlaneseq
      %v945 = vshrl.u32 %v944, 7
      %v946 = vsub.s32 0, %v945
      %v947 = vrot.slane %v933, %v946
      %v948 = vlaneseq
      %v949 = vshrl.u32 %v948, 7
      %v950 = vsub.s32 0, %v949
      %v951 = vrot.slane %v934, %v950
      %v952 = vlaneseq
      %v953 = vshrl.u32 %v952, 7
      %v954 = vsub.s32 0, %v953
      %v955 = vrot.slane %v935, %v954
      %v976 = vunpack.c.l.b16 %v868
      %v977 = vunpack.c.l.b16 %v869
      %v978 = vunpack.c.l.b16 %v870
      %v979 = vunpack.c.l.b16 %v871
      %v980 = vunpack.c.l.b16 %v872
      %v981 = vunpack.c.l.b16 %v873
      %v982 = vunpack.c.l.b16 %v874
      %v983 = vunpack.c.l.b16 %v875
      %v984 = vunpack.c.l.b16 %v876
      %v985 = vunpack.c.l.b16 %v877
      %v986 = vunpack.c.l.b16 %v878
      %v987 = vunpack.c.l.b16 %v879
      %v988 = vunpack.c.l.b16 %v880
      %v989 = vunpack.c.l.b16 %v881
      %v990 = vunpack.c.l.b16 %v882
      %v991 = vunpack.c.l.b16 %v883
      %v992 = vpack.c.b16 %v977, %v976
      %v993 = vpack.c.b16 %v979, %v978
      %v994 = vpack.c.b16 %v981, %v980
      %v995 = vpack.c.b16 %v983, %v982
      %v996 = vpack.c.b16 %v985, %v984
      %v997 = vpack.c.b16 %v987, %v986
      %v998 = vpack.c.b16 %v989, %v988
      %v999 = vpack.c.b16 %v991, %v990
      %1008 = vmatprep.subr.bf16.mxu0 0
      %1009 = vmatpush1.bf16.msra.mxu0 %v999
      %1010 = vmatprep.subr.bf16.mxu0 0
      %1011 = vmatpush1.bf16.msra.mxu0 %v998
      %1012 = vmatprep.subr.bf16.mxu0 0
      %1013 = vmatpush1.bf16.msra.mxu0 %v997
      %1014 = vmatprep.subr.bf16.mxu0 0
      %1015 = vmatpush1.bf16.msra.mxu0 %v996
      %1016 = vmatprep.subr.bf16.mxu0 0
      %1017 = vmatpush1.bf16.msra.mxu0 %v995
      %1018 = vmatprep.subr.bf16.mxu0 0
      %1019 = vmatpush1.bf16.msra.mxu0 %v994
      %1020 = vmatprep.subr.bf16.mxu0 0
      %1021 = vmatpush1.bf16.msra.mxu0 %v993
      %1022 = vmatprep.subr.bf16.mxu0 0
      %1023 = vmatpush1.bf16.msra.mxu0 %v992
      %1024 = vmatprep.subr.bf16.mxu0 0
      %1025 = vmatpush2.bf16.msra.mxu0 0
      %1026 = vmatprep.subr.bf16.mxu0 0
      %1027 = vmatpush2.bf16.msra.mxu0 0
      %1028 = vmatprep.subr.bf16.mxu0 0
      %1029 = vmatpush2.bf16.msra.mxu0 0
      %1030 = vmatprep.subr.bf16.mxu0 0
      %1031 = vmatpush2.bf16.msra.mxu0 0
      %1032 = vmatprep.subr.bf16.mxu0 0
      %1033 = vmatpush2.bf16.msra.mxu0 0
      %1034 = vmatprep.subr.bf16.mxu0 0
      %1035 = vmatpush2.bf16.msra.mxu0 0
      %1036 = vmatprep.subr.bf16.mxu0 0
      %1037 = vmatpush2.bf16.msra.mxu0 0
      %1038 = vmatprep.subr.bf16.mxu0 0
      %1039 = vmatpush2.bf16.msra.mxu0 0
      %1040 = vmatprep.mubr.bf16.mxu0 0
      %1041 = vmatmul.mubr.bf16.gmra.mxu0 %v867
      %v1042 = vpop.f32.mrf.mxu0
      %v1043 = vadd.f32 %v943, %v1042
      %v1044 = vpop.f32.mrf.mxu0
      %v1045 = vpop.f32.mrf.mxu0
      %v1046 = vpop.f32.mrf.mxu0
      %1047 = vdwg.mxu0
      %v1064 = vunpack.c.l.b16 %v884
      %v1065 = vunpack.c.l.b16 %v885
      %v1066 = vunpack.c.l.b16 %v886
      %v1067 = vunpack.c.l.b16 %v887
      %v1068 = vunpack.c.l.b16 %v888
      %v1069 = vunpack.c.l.b16 %v889
      %v1070 = vunpack.c.l.b16 %v890
      %v1071 = vunpack.c.l.b16 %v891
      %v1072 = vunpack.c.l.b16 %v892
      %v1073 = vunpack.c.l.b16 %v893
      %v1074 = vunpack.c.l.b16 %v894
      %v1075 = vunpack.c.l.b16 %v895
      %v1076 = vunpack.c.l.b16 %v896
      %v1077 = vunpack.c.l.b16 %v897
      %v1078 = vunpack.c.l.b16 %v898
      %v1079 = vunpack.c.l.b16 %v899
      %v1080 = vpack.c.b16 %v1065, %v1064
      %v1081 = vpack.c.b16 %v1067, %v1066
      %v1082 = vpack.c.b16 %v1069, %v1068
      %v1083 = vpack.c.b16 %v1071, %v1070
      %v1084 = vpack.c.b16 %v1073, %v1072
      %v1085 = vpack.c.b16 %v1075, %v1074
      %v1086 = vpack.c.b16 %v1077, %v1076
      %v1087 = vpack.c.b16 %v1079, %v1078
      %1096 = vmatprep.subr.bf16.mxu0 0
      %1097 = vmatpush1.bf16.msra.mxu0 %v1087
      %1098 = vmatprep.subr.bf16.mxu0 0
      %1099 = vmatpush1.bf16.msra.mxu0 %v1086
      %1100 = vmatprep.subr.bf16.mxu0 0
      %1101 = vmatpush1.bf16.msra.mxu0 %v1085
      %1102 = vmatprep.subr.bf16.mxu0 0
      %1103 = vmatpush1.bf16.msra.mxu0 %v1084
      %1104 = vmatprep.subr.bf16.mxu0 0
      %1105 = vmatpush1.bf16.msra.mxu0 %v1083
      %1106 = vmatprep.subr.bf16.mxu0 0
      %1107 = vmatpush1.bf16.msra.mxu0 %v1082
      %1108 = vmatprep.subr.bf16.mxu0 0
      %1109 = vmatpush1.bf16.msra.mxu0 %v1081
      %1110 = vmatprep.subr.bf16.mxu0 0
      %1111 = vmatpush1.bf16.msra.mxu0 %v1080
      %1112 = vmatprep.subr.bf16.mxu0 0
      %1113 = vmatpush2.bf16.msra.mxu0 0
      %1114 = vmatprep.subr.bf16.mxu0 0
      %1115 = vmatpush2.bf16.msra.mxu0 0
      %1116 = vmatprep.subr.bf16.mxu0 0
      %1117 = vmatpush2.bf16.msra.mxu0 0
      %1118 = vmatprep.subr.bf16.mxu0 0
      %1119 = vmatpush2.bf16.msra.mxu0 0
      %1120 = vmatprep.subr.bf16.mxu0 0
      %1121 = vmatpush2.bf16.msra.mxu0 0
      %1122 = vmatprep.subr.bf16.mxu0 0
      %1123 = vmatpush2.bf16.msra.mxu0 0
      %1124 = vmatprep.subr.bf16.mxu0 0
      %1125 = vmatpush2.bf16.msra.mxu0 0
      %1126 = vmatprep.subr.bf16.mxu0 0
      %1127 = vmatpush2.bf16.msra.mxu0 0
      %1128 = vmatprep.mubr.bf16.mxu0 0
      %1129 = vmatmul.mubr.bf16.gmra.mxu0 %v867
      %v1130 = vpop.f32.mrf.mxu0
      %v1131 = vadd.f32 %v947, %v1130
      %v1132 = vpop.f32.mrf.mxu0
      %v1133 = vpop.f32.mrf.mxu0
      %v1134 = vpop.f32.mrf.mxu0
      %1135 = vdwg.mxu0
      %v1152 = vunpack.c.l.b16 %v900
      %v1153 = vunpack.c.l.b16 %v901
      %v1154 = vunpack.c.l.b16 %v902
      %v1155 = vunpack.c.l.b16 %v903
      %v1156 = vunpack.c.l.b16 %v904
      %v1157 = vunpack.c.l.b16 %v905
      %v1158 = vunpack.c.l.b16 %v906
      %v1159 = vunpack.c.l.b16 %v907
      %v1160 = vunpack.c.l.b16 %v908
      %v1161 = vunpack.c.l.b16 %v909
      %v1162 = vunpack.c.l.b16 %v910
      %v1163 = vunpack.c.l.b16 %v911
      %v1164 = vunpack.c.l.b16 %v912
      %v1165 = vunpack.c.l.b16 %v913
      %v1166 = vunpack.c.l.b16 %v914
      %v1167 = vunpack.c.l.b16 %v915
      %v1168 = vpack.c.b16 %v1153, %v1152
      %v1169 = vpack.c.b16 %v1155, %v1154
      %v1170 = vpack.c.b16 %v1157, %v1156
      %v1171 = vpack.c.b16 %v1159, %v1158
      %v1172 = vpack.c.b16 %v1161, %v1160
      %v1173 = vpack.c.b16 %v1163, %v1162
      %v1174 = vpack.c.b16 %v1165, %v1164
      %v1175 = vpack.c.b16 %v1167, %v1166
      %1184 = vmatprep.subr.bf16.mxu0 0
      %1185 = vmatpush1.bf16.msra.mxu0 %v1175
      %1186 = vmatprep.subr.bf16.mxu0 0
      %1187 = vmatpush1.bf16.msra.mxu0 %v1174
      %1188 = vmatprep.subr.bf16.mxu0 0
      %1189 = vmatpush1.bf16.msra.mxu0 %v1173
      %1190 = vmatprep.subr.bf16.mxu0 0
      %1191 = vmatpush1.bf16.msra.mxu0 %v1172
      %1192 = vmatprep.subr.bf16.mxu0 0
      %1193 = vmatpush1.bf16.msra.mxu0 %v1171
      %1194 = vmatprep.subr.bf16.mxu0 0
      %1195 = vmatpush1.bf16.msra.mxu0 %v1170
      %1196 = vmatprep.subr.bf16.mxu0 0
      %1197 = vmatpush1.bf16.msra.mxu0 %v1169
      %1198 = vmatprep.subr.bf16.mxu0 0
      %1199 = vmatpush1.bf16.msra.mxu0 %v1168
      %1200 = vmatprep.subr.bf16.mxu0 0
      %1201 = vmatpush2.bf16.msra.mxu0 0
      %1202 = vmatprep.subr.bf16.mxu0 0
      %1203 = vmatpush2.bf16.msra.mxu0 0
      %1204 = vmatprep.subr.bf16.mxu0 0
      %1205 = vmatpush2.bf16.msra.mxu0 0
      %1206 = vmatprep.subr.bf16.mxu0 0
      %1207 = vmatpush2.bf16.msra.mxu0 0
      %1208 = vmatprep.subr.bf16.mxu0 0
      %1209 = vmatpush2.bf16.msra.mxu0 0
      %1210 = vmatprep.subr.bf16.mxu0 0
      %1211 = vmatpush2.bf16.msra.mxu0 0
      %1212 = vmatprep.subr.bf16.mxu0 0
      %1213 = vmatpush2.bf16.msra.mxu0 0
      %1214 = vmatprep.subr.bf16.mxu0 0
      %1215 = vmatpush2.bf16.msra.mxu0 0
      %1216 = vmatprep.mubr.bf16.mxu0 0
      %1217 = vmatmul.mubr.bf16.gmra.mxu0 %v867
      %v1218 = vpop.f32.mrf.mxu0
      %v1219 = vadd.f32 %v951, %v1218
      %v1220 = vpop.f32.mrf.mxu0
      %v1221 = vpop.f32.mrf.mxu0
      %v1222 = vpop.f32.mrf.mxu0
      %1223 = vdwg.mxu0
      %v1240 = vunpack.c.l.b16 %v916
      %v1241 = vunpack.c.l.b16 %v917
      %v1242 = vunpack.c.l.b16 %v918
      %v1243 = vunpack.c.l.b16 %v919
      %v1244 = vunpack.c.l.b16 %v920
      %v1245 = vunpack.c.l.b16 %v921
      %v1246 = vunpack.c.l.b16 %v922
      %v1247 = vunpack.c.l.b16 %v923
      %v1248 = vunpack.c.l.b16 %v924
      %v1249 = vunpack.c.l.b16 %v925
      %v1250 = vunpack.c.l.b16 %v926
      %v1251 = vunpack.c.l.b16 %v927
      %v1252 = vunpack.c.l.b16 %v928
      %v1253 = vunpack.c.l.b16 %v929
      %v1254 = vunpack.c.l.b16 %v930
      %v1255 = vunpack.c.l.b16 %v931
      %v1256 = vpack.c.b16 %v1241, %v1240
      %v1257 = vpack.c.b16 %v1243, %v1242
      %v1258 = vpack.c.b16 %v1245, %v1244
      %v1259 = vpack.c.b16 %v1247, %v1246
      %v1260 = vpack.c.b16 %v1249, %v1248
      %v1261 = vpack.c.b16 %v1251, %v1250
      %v1262 = vpack.c.b16 %v1253, %v1252
      %v1263 = vpack.c.b16 %v1255, %v1254
      %1272 = vmatprep.subr.bf16.mxu0 0
      %1273 = vmatpush1.bf16.msra.mxu0 %v1263
      %1274 = vmatprep.subr.bf16.mxu0 0
      %1275 = vmatpush1.bf16.msra.mxu0 %v1262
      %1276 = vmatprep.subr.bf16.mxu0 0
      %1277 = vmatpush1.bf16.msra.mxu0 %v1261
      %1278 = vmatprep.subr.bf16.mxu0 0
      %1279 = vmatpush1.bf16.msra.mxu0 %v1260
      %1280 = vmatprep.subr.bf16.mxu0 0
      %1281 = vmatpush1.bf16.msra.mxu0 %v1259
      %1282 = vmatprep.subr.bf16.mxu0 0
      %1283 = vmatpush1.bf16.msra.mxu0 %v1258
      %1284 = vmatprep.subr.bf16.mxu0 0
      %1285 = vmatpush1.bf16.msra.mxu0 %v1257
      %1286 = vmatprep.subr.bf16.mxu0 0
      %1287 = vmatpush1.bf16.msra.mxu0 %v1256
      %1288 = vmatprep.subr.bf16.mxu0 0
      %1289 = vmatpush2.bf16.msra.mxu0 0
      %1290 = vmatprep.subr.bf16.mxu0 0
      %1291 = vmatpush2.bf16.msra.mxu0 0
      %1292 = vmatprep.subr.bf16.mxu0 0
      %1293 = vmatpush2.bf16.msra.mxu0 0
      %1294 = vmatprep.subr.bf16.mxu0 0
      %1295 = vmatpush2.bf16.msra.mxu0 0
      %1296 = vmatprep.subr.bf16.mxu0 0
      %1297 = vmatpush2.bf16.msra.mxu0 0
      %1298 = vmatprep.subr.bf16.mxu0 0
      %1299 = vmatpush2.bf16.msra.mxu0 0
      %1300 = vmatprep.subr.bf16.mxu0 0
      %1301 = vmatpush2.bf16.msra.mxu0 0
      %1302 = vmatprep.subr.bf16.mxu0 0
      %1303 = vmatpush2.bf16.msra.mxu0 0
      %1304 = vmatprep.mubr.bf16.mxu0 0
      %1305 = vmatmul.mubr.bf16.gmra.mxu0 %v867
      %v1306 = vpop.f32.mrf.mxu0
      %v1307 = vadd.f32 %v955, %v1306
      %v1308 = vpop.f32.mrf.mxu0
      %v1309 = vpop.f32.mrf.mxu0
      %v1310 = vpop.f32.mrf.mxu0
      %1311 = vdwg.mxu0
      %v1312 = vld [vmem:[%s775] sm:$0xf]
      %v1313 = vld [vmem:[%s775 + $0x4] sm:$0xf]
      %v1314 = vld [vmem:[%s775 + $0x8] sm:$0xf]
      %v1315 = vld [vmem:[%s775 + $0xc] sm:$0xf]
      %v1316 = vld [vmem:[%s775 + $0x10] sm:$0xf]
      %v1317 = vld [vmem:[%s775 + $0x14] sm:$0xf]
      %v1318 = vld [vmem:[%s775 + $0x18] sm:$0xf]
      %v1319 = vld [vmem:[%s775 + $0x1c] sm:$0xf]
      %v1320 = vld [vmem:[%s775 + $0x20] sm:$0xf]
      %v1321 = vld [vmem:[%s775 + $0x24] sm:$0xf]
      %v1322 = vld [vmem:[%s775 + $0x28] sm:$0xf]
      %v1323 = vld [vmem:[%s775 + $0x2c] sm:$0xf]
      %v1324 = vld [vmem:[%s775 + $0x30] sm:$0xf]
      %v1325 = vld [vmem:[%s775 + $0x34] sm:$0xf]
      %v1326 = vld [vmem:[%s775 + $0x38] sm:$0xf]
      %v1327 = vld [vmem:[%s775 + $0x3c] sm:$0xf]
      %v1328 = vld [vmem:[%s775 + $0x40] sm:$0xf]
      %v1329 = vld [vmem:[%s775 + $0x44] sm:$0xf]
      %v1330 = vld [vmem:[%s775 + $0x48] sm:$0xf]
      %v1331 = vld [vmem:[%s775 + $0x4c] sm:$0xf]
      %v1332 = vld [vmem:[%s775 + $0x50] sm:$0xf]
      %v1333 = vld [vmem:[%s775 + $0x54] sm:$0xf]
      %v1334 = vld [vmem:[%s775 + $0x58] sm:$0xf]
      %v1335 = vld [vmem:[%s775 + $0x5c] sm:$0xf]
      %v1336 = vld [vmem:[%s775 + $0x60] sm:$0xf]
      %v1337 = vld [vmem:[%s775 + $0x64] sm:$0xf]
      %v1338 = vld [vmem:[%s775 + $0x68] sm:$0xf]
      %v1339 = vld [vmem:[%s775 + $0x6c] sm:$0xf]
      %v1340 = vld [vmem:[%s775 + $0x70] sm:$0xf]
      %v1341 = vld [vmem:[%s775 + $0x74] sm:$0xf]
      %v1342 = vld [vmem:[%s775 + $0x78] sm:$0xf]
      %v1343 = vld [vmem:[%s775 + $0x7c] sm:$0xf]
      %v1344 = vld [vmem:[%s775 + $0x80] sm:$0xf]
      %v1345 = vld [vmem:[%s775 + $0x84] sm:$0xf]
      %v1346 = vld [vmem:[%s775 + $0x88] sm:$0xf]
      %v1347 = vld [vmem:[%s775 + $0x8c] sm:$0xf]
      %v1348 = vld [vmem:[%s775 + $0x90] sm:$0xf]
      %v1349 = vld [vmem:[%s775 + $0x94] sm:$0xf]
      %v1350 = vld [vmem:[%s775 + $0x98] sm:$0xf]
      %v1351 = vld [vmem:[%s775 + $0x9c] sm:$0xf]
      %v1352 = vld [vmem:[%s775 + $0xa0] sm:$0xf]
      %v1353 = vld [vmem:[%s775 + $0xa4] sm:$0xf]
      %v1354 = vld [vmem:[%s775 + $0xa8] sm:$0xf]
      %v1355 = vld [vmem:[%s775 + $0xac] sm:$0xf]
      %v1356 = vld [vmem:[%s775 + $0xb0] sm:$0xf]
      %v1357 = vld [vmem:[%s775 + $0xb4] sm:$0xf]
      %v1358 = vld [vmem:[%s775 + $0xb8] sm:$0xf]
      %v1359 = vld [vmem:[%s775 + $0xbc] sm:$0xf]
      %v1360 = vld [vmem:[%s775 + $0xc0] sm:$0xf]
      %v1361 = vld [vmem:[%s775 + $0xc4] sm:$0xf]
      %v1362 = vld [vmem:[%s775 + $0xc8] sm:$0xf]
      %v1363 = vld [vmem:[%s775 + $0xcc] sm:$0xf]
      %v1364 = vld [vmem:[%s775 + $0xd0] sm:$0xf]
      %v1365 = vld [vmem:[%s775 + $0xd4] sm:$0xf]
      %v1366 = vld [vmem:[%s775 + $0xd8] sm:$0xf]
      %v1367 = vld [vmem:[%s775 + $0xdc] sm:$0xf]
      %v1368 = vld [vmem:[%s775 + $0xe0] sm:$0xf]
      %v1369 = vld [vmem:[%s775 + $0xe4] sm:$0xf]
      %v1370 = vld [vmem:[%s775 + $0xe8] sm:$0xf]
      %v1371 = vld [vmem:[%s775 + $0xec] sm:$0xf]
      %v1372 = vld [vmem:[%s775 + $0xf0] sm:$0xf]
      %v1373 = vld [vmem:[%s775 + $0xf4] sm:$0xf]
      %v1374 = vld [vmem:[%s775 + $0xf8] sm:$0xf]
      %v1375 = vld [vmem:[%s775 + $0xfc] sm:$0xf]
      %v1376 = vld [vmem:[%s788] sm:$0x1]
      %v1377 = vld [vmem:[%s788 + $0x1] sm:$0x1]
      %v1378 = vld [vmem:[%s788 + $0x2] sm:$0x1]
      %v1379 = vld [vmem:[%s788 + $0x3] sm:$0x1]
      %v1384 = vlaneseq
      %v1385 = vshrl.u32 %v1384, 7
      %v1386 = vsub.s32 0, %v1385
      %v1387 = vrot.slane %v1376, %v1386
      %v1388 = vlaneseq
      %v1389 = vshrl.u32 %v1388, 7
      %v1390 = vsub.s32 0, %v1389
      %v1391 = vrot.slane %v1377, %v1390
      %v1392 = vlaneseq
      %v1393 = vshrl.u32 %v1392, 7
      %v1394 = vsub.s32 0, %v1393
      %v1395 = vrot.slane %v1378, %v1394
      %v1396 = vlaneseq
      %v1397 = vshrl.u32 %v1396, 7
      %v1398 = vsub.s32 0, %v1397
      %v1399 = vrot.slane %v1379, %v1398
      %v1420 = vunpack.c.l.b16 %v1312
      %v1421 = vunpack.c.l.b16 %v1313
      %v1422 = vunpack.c.l.b16 %v1314
      %v1423 = vunpack.c.l.b16 %v1315
      %v1424 = vunpack.c.l.b16 %v1316
      %v1425 = vunpack.c.l.b16 %v1317
      %v1426 = vunpack.c.l.b16 %v1318
      %v1427 = vunpack.c.l.b16 %v1319
      %v1428 = vunpack.c.l.b16 %v1320
      %v1429 = vunpack.c.l.b16 %v1321
      %v1430 = vunpack.c.l.b16 %v1322
      %v1431 = vunpack.c.l.b16 %v1323
      %v1432 = vunpack.c.l.b16 %v1324
      %v1433 = vunpack.c.l.b16 %v1325
      %v1434 = vunpack.c.l.b16 %v1326
      %v1435 = vunpack.c.l.b16 %v1327
      %v1436 = vpack.c.b16 %v1421, %v1420
      %v1437 = vpack.c.b16 %v1423, %v1422
      %v1438 = vpack.c.b16 %v1425, %v1424
      %v1439 = vpack.c.b16 %v1427, %v1426
      %v1440 = vpack.c.b16 %v1429, %v1428
      %v1441 = vpack.c.b16 %v1431, %v1430
      %v1442 = vpack.c.b16 %v1433, %v1432
      %v1443 = vpack.c.b16 %v1435, %v1434
      %1452 = vmatprep.subr.bf16.mxu0 0
      %1453 = vmatpush1.bf16.msra.mxu0 %v1443
      %1454 = vmatprep.subr.bf16.mxu0 0
      %1455 = vmatpush1.bf16.msra.mxu0 %v1442
      %1456 = vmatprep.subr.bf16.mxu0 0
      %1457 = vmatpush1.bf16.msra.mxu0 %v1441
      %1458 = vmatprep.subr.bf16.mxu0 0
      %1459 = vmatpush1.bf16.msra.mxu0 %v1440
      %1460 = vmatprep.subr.bf16.mxu0 0
      %1461 = vmatpush1.bf16.msra.mxu0 %v1439
      %1462 = vmatprep.subr.bf16.mxu0 0
      %1463 = vmatpush1.bf16.msra.mxu0 %v1438
      %1464 = vmatprep.subr.bf16.mxu0 0
      %1465 = vmatpush1.bf16.msra.mxu0 %v1437
      %1466 = vmatprep.subr.bf16.mxu0 0
      %1467 = vmatpush1.bf16.msra.mxu0 %v1436
      %1468 = vmatprep.subr.bf16.mxu0 0
      %1469 = vmatpush2.bf16.msra.mxu0 0
      %1470 = vmatprep.subr.bf16.mxu0 0
      %1471 = vmatpush2.bf16.msra.mxu0 0
      %1472 = vmatprep.subr.bf16.mxu0 0
      %1473 = vmatpush2.bf16.msra.mxu0 0
      %1474 = vmatprep.subr.bf16.mxu0 0
      %1475 = vmatpush2.bf16.msra.mxu0 0
      %1476 = vmatprep.subr.bf16.mxu0 0
      %1477 = vmatpush2.bf16.msra.mxu0 0
      %1478 = vmatprep.subr.bf16.mxu0 0
      %1479 = vmatpush2.bf16.msra.mxu0 0
      %1480 = vmatprep.subr.bf16.mxu0 0
      %1481 = vmatpush2.bf16.msra.mxu0 0
      %1482 = vmatprep.subr.bf16.mxu0 0
      %1483 = vmatpush2.bf16.msra.mxu0 0
      %1484 = vmatprep.mubr.bf16.mxu0 0
      %1485 = vmatmul.mubr.bf16.gmra.mxu0 %v867
      %v1486 = vpop.f32.mrf.mxu0
      %v1487 = vadd.f32 %v1387, %v1486
      %v1488 = vpop.f32.mrf.mxu0
      %v1489 = vpop.f32.mrf.mxu0
      %v1490 = vpop.f32.mrf.mxu0
      %1491 = vdwg.mxu0
      %v1508 = vunpack.c.l.b16 %v1328
      %v1509 = vunpack.c.l.b16 %v1329
      %v1510 = vunpack.c.l.b16 %v1330
      %v1511 = vunpack.c.l.b16 %v1331
      %v1512 = vunpack.c.l.b16 %v1332
      %v1513 = vunpack.c.l.b16 %v1333
      %v1514 = vunpack.c.l.b16 %v1334
      %v1515 = vunpack.c.l.b16 %v1335
      %v1516 = vunpack.c.l.b16 %v1336
      %v1517 = vunpack.c.l.b16 %v1337
      %v1518 = vunpack.c.l.b16 %v1338
      %v1519 = vunpack.c.l.b16 %v1339
      %v1520 = vunpack.c.l.b16 %v1340
      %v1521 = vunpack.c.l.b16 %v1341
      %v1522 = vunpack.c.l.b16 %v1342
      %v1523 = vunpack.c.l.b16 %v1343
      %v1524 = vpack.c.b16 %v1509, %v1508
      %v1525 = vpack.c.b16 %v1511, %v1510
      %v1526 = vpack.c.b16 %v1513, %v1512
      %v1527 = vpack.c.b16 %v1515, %v1514
      %v1528 = vpack.c.b16 %v1517, %v1516
      %v1529 = vpack.c.b16 %v1519, %v1518
      %v1530 = vpack.c.b16 %v1521, %v1520
      %v1531 = vpack.c.b16 %v1523, %v1522
      %1540 = vmatprep.subr.bf16.mxu0 0
      %1541 = vmatpush1.bf16.msra.mxu0 %v1531
      %1542 = vmatprep.subr.bf16.mxu0 0
      %1543 = vmatpush1.bf16.msra.mxu0 %v1530
      %1544 = vmatprep.subr.bf16.mxu0 0
      %1545 = vmatpush1.bf16.msra.mxu0 %v1529
      %1546 = vmatprep.subr.bf16.mxu0 0
      %1547 = vmatpush1.bf16.msra.mxu0 %v1528
      %1548 = vmatprep.subr.bf16.mxu0 0
      %1549 = vmatpush1.bf16.msra.mxu0 %v1527
      %1550 = vmatprep.subr.bf16.mxu0 0
      %1551 = vmatpush1.bf16.msra.mxu0 %v1526
      %1552 = vmatprep.subr.bf16.mxu0 0
      %1553 = vmatpush1.bf16.msra.mxu0 %v1525
      %1554 = vmatprep.subr.bf16.mxu0 0
      %1555 = vmatpush1.bf16.msra.mxu0 %v1524
      %1556 = vmatprep.subr.bf16.mxu0 0
      %1557 = vmatpush2.bf16.msra.mxu0 0
      %1558 = vmatprep.subr.bf16.mxu0 0
      %1559 = vmatpush2.bf16.msra.mxu0 0
      %1560 = vmatprep.subr.bf16.mxu0 0
      %1561 = vmatpush2.bf16.msra.mxu0 0
      %1562 = vmatprep.subr.bf16.mxu0 0
      %1563 = vmatpush2.bf16.msra.mxu0 0
      %1564 = vmatprep.subr.bf16.mxu0 0
      %1565 = vmatpush2.bf16.msra.mxu0 0
      %1566 = vmatprep.subr.bf16.mxu0 0
      %1567 = vmatpush2.bf16.msra.mxu0 0
      %1568 = vmatprep.subr.bf16.mxu0 0
      %1569 = vmatpush2.bf16.msra.mxu0 0
      %1570 = vmatprep.subr.bf16.mxu0 0
      %1571 = vmatpush2.bf16.msra.mxu0 0
      %1572 = vmatprep.mubr.bf16.mxu0 0
      %1573 = vmatmul.mubr.bf16.gmra.mxu0 %v867
      %v1574 = vpop.f32.mrf.mxu0
      %v1575 = vadd.f32 %v1391, %v1574
      %v1576 = vpop.f32.mrf.mxu0
      %v1577 = vpop.f32.mrf.mxu0
      %v1578 = vpop.f32.mrf.mxu0
      %1579 = vdwg.mxu0
      %v1596 = vunpack.c.l.b16 %v1344
      %v1597 = vunpack.c.l.b16 %v1345
      %v1598 = vunpack.c.l.b16 %v1346
      %v1599 = vunpack.c.l.b16 %v1347
      %v1600 = vunpack.c.l.b16 %v1348
      %v1601 = vunpack.c.l.b16 %v1349
      %v1602 = vunpack.c.l.b16 %v1350
      %v1603 = vunpack.c.l.b16 %v1351
      %v1604 = vunpack.c.l.b16 %v1352
      %v1605 = vunpack.c.l.b16 %v1353
      %v1606 = vunpack.c.l.b16 %v1354
      %v1607 = vunpack.c.l.b16 %v1355
      %v1608 = vunpack.c.l.b16 %v1356
      %v1609 = vunpack.c.l.b16 %v1357
      %v1610 = vunpack.c.l.b16 %v1358
      %v1611 = vunpack.c.l.b16 %v1359
      %v1612 = vpack.c.b16 %v1597, %v1596
      %v1613 = vpack.c.b16 %v1599, %v1598
      %v1614 = vpack.c.b16 %v1601, %v1600
      %v1615 = vpack.c.b16 %v1603, %v1602
      %v1616 = vpack.c.b16 %v1605, %v1604
      %v1617 = vpack.c.b16 %v1607, %v1606
      %v1618 = vpack.c.b16 %v1609, %v1608
      %v1619 = vpack.c.b16 %v1611, %v1610
      %1628 = vmatprep.subr.bf16.mxu0 0
      %1629 = vmatpush1.bf16.msra.mxu0 %v1619
      %1630 = vmatprep.subr.bf16.mxu0 0
      %1631 = vmatpush1.bf16.msra.mxu0 %v1618
      %1632 = vmatprep.subr.bf16.mxu0 0
      %1633 = vmatpush1.bf16.msra.mxu0 %v1617
      %1634 = vmatprep.subr.bf16.mxu0 0
      %1635 = vmatpush1.bf16.msra.mxu0 %v1616
      %1636 = vmatprep.subr.bf16.mxu0 0
      %1637 = vmatpush1.bf16.msra.mxu0 %v1615
      %1638 = vmatprep.subr.bf16.mxu0 0
      %1639 = vmatpush1.bf16.msra.mxu0 %v1614
      %1640 = vmatprep.subr.bf16.mxu0 0
      %1641 = vmatpush1.bf16.msra.mxu0 %v1613
      %1642 = vmatprep.subr.bf16.mxu0 0
      %1643 = vmatpush1.bf16.msra.mxu0 %v1612
      %1644 = vmatprep.subr.bf16.mxu0 0
      %1645 = vmatpush2.bf16.msra.mxu0 0
      %1646 = vmatprep.subr.bf16.mxu0 0
      %1647 = vmatpush2.bf16.msra.mxu0 0
      %1648 = vmatprep.subr.bf16.mxu0 0
      %1649 = vmatpush2.bf16.msra.mxu0 0
      %1650 = vmatprep.subr.bf16.mxu0 0
      %1651 = vmatpush2.bf16.msra.mxu0 0
      %1652 = vmatprep.subr.bf16.mxu0 0
      %1653 = vmatpush2.bf16.msra.mxu0 0
      %1654 = vmatprep.subr.bf16.mxu0 0
      %1655 = vmatpush2.bf16.msra.mxu0 0
      %1656 = vmatprep.subr.bf16.mxu0 0
      %1657 = vmatpush2.bf16.msra.mxu0 0
      %1658 = vmatprep.subr.bf16.mxu0 0
      %1659 = vmatpush2.bf16.msra.mxu0 0
      %1660 = vmatprep.mubr.bf16.mxu0 0
      %1661 = vmatmul.mubr.bf16.gmra.mxu0 %v867
      %v1662 = vpop.f32.mrf.mxu0
      %v1663 = vadd.f32 %v1395, %v1662
      %v1664 = vpop.f32.mrf.mxu0
      %v1665 = vpop.f32.mrf.mxu0
      %v1666 = vpop.f32.mrf.mxu0
      %1667 = vdwg.mxu0
      %v1684 = vunpack.c.l.b16 %v1360
      %v1685 = vunpack.c.l.b16 %v1361
      %v1686 = vunpack.c.l.b16 %v1362
      %v1687 = vunpack.c.l.b16 %v1363
      %v1688 = vunpack.c.l.b16 %v1364
      %v1689 = vunpack.c.l.b16 %v1365
      %v1690 = vunpack.c.l.b16 %v1366
      %v1691 = vunpack.c.l.b16 %v1367
      %v1692 = vunpack.c.l.b16 %v1368
      %v1693 = vunpack.c.l.b16 %v1369
      %v1694 = vunpack.c.l.b16 %v1370
      %v1695 = vunpack.c.l.b16 %v1371
      %v1696 = vunpack.c.l.b16 %v1372
      %v1697 = vunpack.c.l.b16 %v1373
      %v1698 = vunpack.c.l.b16 %v1374
      %v1699 = vunpack.c.l.b16 %v1375
      %v1700 = vpack.c.b16 %v1685, %v1684
      %v1701 = vpack.c.b16 %v1687, %v1686
      %v1702 = vpack.c.b16 %v1689, %v1688
      %v1703 = vpack.c.b16 %v1691, %v1690
      %v1704 = vpack.c.b16 %v1693, %v1692
      %v1705 = vpack.c.b16 %v1695, %v1694
      %v1706 = vpack.c.b16 %v1697, %v1696
      %v1707 = vpack.c.b16 %v1699, %v1698
      %1716 = vmatprep.subr.bf16.mxu0 0
      %1717 = vmatpush1.bf16.msra.mxu0 %v1707
      %1718 = vmatprep.subr.bf16.mxu0 0
      %1719 = vmatpush1.bf16.msra.mxu0 %v1706
      %1720 = vmatprep.subr.bf16.mxu0 0
      %1721 = vmatpush1.bf16.msra.mxu0 %v1705
      %1722 = vmatprep.subr.bf16.mxu0 0
      %1723 = vmatpush1.bf16.msra.mxu0 %v1704
      %1724 = vmatprep.subr.bf16.mxu0 0
      %1725 = vmatpush1.bf16.msra.mxu0 %v1703
      %1726 = vmatprep.subr.bf16.mxu0 0
      %1727 = vmatpush1.bf16.msra.mxu0 %v1702
      %1728 = vmatprep.subr.bf16.mxu0 0
      %1729 = vmatpush1.bf16.msra.mxu0 %v1701
      %1730 = vmatprep.subr.bf16.mxu0 0
      %1731 = vmatpush1.bf16.msra.mxu0 %v1700
      %1732 = vmatprep.subr.bf16.mxu0 0
      %1733 = vmatpush2.bf16.msra.mxu0 0
      %1734 = vmatprep.subr.bf16.mxu0 0
      %1735 = vmatpush2.bf16.msra.mxu0 0
      %1736 = vmatprep.subr.bf16.mxu0 0
      %1737 = vmatpush2.bf16.msra.mxu0 0
      %1738 = vmatprep.subr.bf16.mxu0 0
      %1739 = vmatpush2.bf16.msra.mxu0 0
      %1740 = vmatprep.subr.bf16.mxu0 0
      %1741 = vmatpush2.bf16.msra.mxu0 0
      %1742 = vmatprep.subr.bf16.mxu0 0
      %1743 = vmatpush2.bf16.msra.mxu0 0
      %1744 = vmatprep.subr.bf16.mxu0 0
      %1745 = vmatpush2.bf16.msra.mxu0 0
      %1746 = vmatprep.subr.bf16.mxu0 0
      %1747 = vmatpush2.bf16.msra.mxu0 0
      %1748 = vmatprep.mubr.bf16.mxu0 0
      %1749 = vmatmul.mubr.bf16.gmra.mxu0 %v867
      %v1750 = vpop.f32.mrf.mxu0
      %v1751 = vadd.f32 %v1399, %v1750
      %v1752 = vpop.f32.mrf.mxu0
      %v1753 = vpop.f32.mrf.mxu0
      %v1754 = vpop.f32.mrf.mxu0
      %1755 = vdwg.mxu0
      %v1756 = vld [vmem:[%s780] sm:$0xf]
      %v1757 = vld [vmem:[%s780 + $0x4] sm:$0xf]
      %v1758 = vld [vmem:[%s780 + $0x8] sm:$0xf]
      %v1759 = vld [vmem:[%s780 + $0xc] sm:$0xf]
      %v1760 = vld [vmem:[%s780 + $0x10] sm:$0xf]
      %v1761 = vld [vmem:[%s780 + $0x14] sm:$0xf]
      %v1762 = vld [vmem:[%s780 + $0x18] sm:$0xf]
      %v1763 = vld [vmem:[%s780 + $0x1c] sm:$0xf]
      %v1764 = vld [vmem:[%s780 + $0x20] sm:$0xf]
      %v1765 = vld [vmem:[%s780 + $0x24] sm:$0xf]
      %v1766 = vld [vmem:[%s780 + $0x28] sm:$0xf]
      %v1767 = vld [vmem:[%s780 + $0x2c] sm:$0xf]
      %v1768 = vld [vmem:[%s780 + $0x30] sm:$0xf]
      %v1769 = vld [vmem:[%s780 + $0x34] sm:$0xf]
      %v1770 = vld [vmem:[%s780 + $0x38] sm:$0xf]
      %v1771 = vld [vmem:[%s780 + $0x3c] sm:$0xf]
      %v1772 = vld [vmem:[%s780 + $0x40] sm:$0xf]
      %v1773 = vld [vmem:[%s780 + $0x44] sm:$0xf]
      %v1774 = vld [vmem:[%s780 + $0x48] sm:$0xf]
      %v1775 = vld [vmem:[%s780 + $0x4c] sm:$0xf]
      %v1776 = vld [vmem:[%s780 + $0x50] sm:$0xf]
      %v1777 = vld [vmem:[%s780 + $0x54] sm:$0xf]
      %v1778 = vld [vmem:[%s780 + $0x58] sm:$0xf]
      %v1779 = vld [vmem:[%s780 + $0x5c] sm:$0xf]
      %v1780 = vld [vmem:[%s780 + $0x60] sm:$0xf]
      %v1781 = vld [vmem:[%s780 + $0x64] sm:$0xf]
      %v1782 = vld [vmem:[%s780 + $0x68] sm:$0xf]
      %v1783 = vld [vmem:[%s780 + $0x6c] sm:$0xf]
      %v1784 = vld [vmem:[%s780 + $0x70] sm:$0xf]
      %v1785 = vld [vmem:[%s780 + $0x74] sm:$0xf]
      %v1786 = vld [vmem:[%s780 + $0x78] sm:$0xf]
      %v1787 = vld [vmem:[%s780 + $0x7c] sm:$0xf]
      %v1788 = vld [vmem:[%s780 + $0x80] sm:$0xf]
      %v1789 = vld [vmem:[%s780 + $0x84] sm:$0xf]
      %v1790 = vld [vmem:[%s780 + $0x88] sm:$0xf]
      %v1791 = vld [vmem:[%s780 + $0x8c] sm:$0xf]
      %v1792 = vld [vmem:[%s780 + $0x90] sm:$0xf]
      %v1793 = vld [vmem:[%s780 + $0x94] sm:$0xf]
      %v1794 = vld [vmem:[%s780 + $0x98] sm:$0xf]
      %v1795 = vld [vmem:[%s780 + $0x9c] sm:$0xf]
      %v1796 = vld [vmem:[%s780 + $0xa0] sm:$0xf]
      %v1797 = vld [vmem:[%s780 + $0xa4] sm:$0xf]
      %v1798 = vld [vmem:[%s780 + $0xa8] sm:$0xf]
      %v1799 = vld [vmem:[%s780 + $0xac] sm:$0xf]
      %v1800 = vld [vmem:[%s780 + $0xb0] sm:$0xf]
      %v1801 = vld [vmem:[%s780 + $0xb4] sm:$0xf]
      %v1802 = vld [vmem:[%s780 + $0xb8] sm:$0xf]
      %v1803 = vld [vmem:[%s780 + $0xbc] sm:$0xf]
      %v1804 = vld [vmem:[%s780 + $0xc0] sm:$0xf]
      %v1805 = vld [vmem:[%s780 + $0xc4] sm:$0xf]
      %v1806 = vld [vmem:[%s780 + $0xc8] sm:$0xf]
      %v1807 = vld [vmem:[%s780 + $0xcc] sm:$0xf]
      %v1808 = vld [vmem:[%s780 + $0xd0] sm:$0xf]
      %v1809 = vld [vmem:[%s780 + $0xd4] sm:$0xf]
      %v1810 = vld [vmem:[%s780 + $0xd8] sm:$0xf]
      %v1811 = vld [vmem:[%s780 + $0xdc] sm:$0xf]
      %v1812 = vld [vmem:[%s780 + $0xe0] sm:$0xf]
      %v1813 = vld [vmem:[%s780 + $0xe4] sm:$0xf]
      %v1814 = vld [vmem:[%s780 + $0xe8] sm:$0xf]
      %v1815 = vld [vmem:[%s780 + $0xec] sm:$0xf]
      %v1816 = vld [vmem:[%s780 + $0xf0] sm:$0xf]
      %v1817 = vld [vmem:[%s780 + $0xf4] sm:$0xf]
      %v1818 = vld [vmem:[%s780 + $0xf8] sm:$0xf]
      %v1819 = vld [vmem:[%s780 + $0xfc] sm:$0xf]
      %v1820 = vld [vmem:[%s792] sm:$0x1]
      %v1821 = vld [vmem:[%s792 + $0x1] sm:$0x1]
      %v1822 = vld [vmem:[%s792 + $0x2] sm:$0x1]
      %v1823 = vld [vmem:[%s792 + $0x3] sm:$0x1]
      %v1828 = vlaneseq
      %v1829 = vshrl.u32 %v1828, 7
      %v1830 = vsub.s32 0, %v1829
      %v1831 = vrot.slane %v1820, %v1830
      %v1832 = vlaneseq
      %v1833 = vshrl.u32 %v1832, 7
      %v1834 = vsub.s32 0, %v1833
      %v1835 = vrot.slane %v1821, %v1834
      %v1836 = vlaneseq
      %v1837 = vshrl.u32 %v1836, 7
      %v1838 = vsub.s32 0, %v1837
      %v1839 = vrot.slane %v1822, %v1838
      %v1840 = vlaneseq
      %v1841 = vshrl.u32 %v1840, 7
      %v1842 = vsub.s32 0, %v1841
      %v1843 = vrot.slane %v1823, %v1842
      %v1864 = vunpack.c.l.b16 %v1756
      %v1865 = vunpack.c.l.b16 %v1757
      %v1866 = vunpack.c.l.b16 %v1758
      %v1867 = vunpack.c.l.b16 %v1759
      %v1868 = vunpack.c.l.b16 %v1760
      %v1869 = vunpack.c.l.b16 %v1761
      %v1870 = vunpack.c.l.b16 %v1762
      %v1871 = vunpack.c.l.b16 %v1763
      %v1872 = vunpack.c.l.b16 %v1764
      %v1873 = vunpack.c.l.b16 %v1765
      %v1874 = vunpack.c.l.b16 %v1766
      %v1875 = vunpack.c.l.b16 %v1767
      %v1876 = vunpack.c.l.b16 %v1768
      %v1877 = vunpack.c.l.b16 %v1769
      %v1878 = vunpack.c.l.b16 %v1770
      %v1879 = vunpack.c.l.b16 %v1771
      %v1880 = vpack.c.b16 %v1865, %v1864
      %v1881 = vpack.c.b16 %v1867, %v1866
      %v1882 = vpack.c.b16 %v1869, %v1868
      %v1883 = vpack.c.b16 %v1871, %v1870
      %v1884 = vpack.c.b16 %v1873, %v1872
      %v1885 = vpack.c.b16 %v1875, %v1874
      %v1886 = vpack.c.b16 %v1877, %v1876
      %v1887 = vpack.c.b16 %v1879, %v1878
      %1896 = vmatprep.subr.bf16.mxu0 0
      %1897 = vmatpush1.bf16.msra.mxu0 %v1887
      %1898 = vmatprep.subr.bf16.mxu0 0
      %1899 = vmatpush1.bf16.msra.mxu0 %v1886
      %1900 = vmatprep.subr.bf16.mxu0 0
      %1901 = vmatpush1.bf16.msra.mxu0 %v1885
      %1902 = vmatprep.subr.bf16.mxu0 0
      %1903 = vmatpush1.bf16.msra.mxu0 %v1884
      %1904 = vmatprep.subr.bf16.mxu0 0
      %1905 = vmatpush1.bf16.msra.mxu0 %v1883
      %1906 = vmatprep.subr.bf16.mxu0 0
      %1907 = vmatpush1.bf16.msra.mxu0 %v1882
      %1908 = vmatprep.subr.bf16.mxu0 0
      %1909 = vmatpush1.bf16.msra.mxu0 %v1881
      %1910 = vmatprep.subr.bf16.mxu0 0
      %1911 = vmatpush1.bf16.msra.mxu0 %v1880
      %1912 = vmatprep.subr.bf16.mxu0 0
      %1913 = vmatpush2.bf16.msra.mxu0 0
      %1914 = vmatprep.subr.bf16.mxu0 0
      %1915 = vmatpush2.bf16.msra.mxu0 0
      %1916 = vmatprep.subr.bf16.mxu0 0
      %1917 = vmatpush2.bf16.msra.mxu0 0
      %1918 = vmatprep.subr.bf16.mxu0 0
      %1919 = vmatpush2.bf16.msra.mxu0 0
      %1920 = vmatprep.subr.bf16.mxu0 0
      %1921 = vmatpush2.bf16.msra.mxu0 0
      %1922 = vmatprep.subr.bf16.mxu0 0
      %1923 = vmatpush2.bf16.msra.mxu0 0
      %1924 = vmatprep.subr.bf16.mxu0 0
      %1925 = vmatpush2.bf16.msra.mxu0 0
      %1926 = vmatprep.subr.bf16.mxu0 0
      %1927 = vmatpush2.bf16.msra.mxu0 0
      %1928 = vmatprep.mubr.bf16.mxu0 0
      %1929 = vmatmul.mubr.bf16.gmra.mxu0 %v867
      %v1930 = vpop.f32.mrf.mxu0
      %v1931 = vadd.f32 %v1831, %v1930
      %v1932 = vpop.f32.mrf.mxu0
      %v1933 = vpop.f32.mrf.mxu0
      %v1934 = vpop.f32.mrf.mxu0
      %1935 = vdwg.mxu0
      %v1952 = vunpack.c.l.b16 %v1772
      %v1953 = vunpack.c.l.b16 %v1773
      %v1954 = vunpack.c.l.b16 %v1774
      %v1955 = vunpack.c.l.b16 %v1775
      %v1956 = vunpack.c.l.b16 %v1776
      %v1957 = vunpack.c.l.b16 %v1777
      %v1958 = vunpack.c.l.b16 %v1778
      %v1959 = vunpack.c.l.b16 %v1779
      %v1960 = vunpack.c.l.b16 %v1780
      %v1961 = vunpack.c.l.b16 %v1781
      %v1962 = vunpack.c.l.b16 %v1782
      %v1963 = vunpack.c.l.b16 %v1783
      %v1964 = vunpack.c.l.b16 %v1784
      %v1965 = vunpack.c.l.b16 %v1785
      %v1966 = vunpack.c.l.b16 %v1786
      %v1967 = vunpack.c.l.b16 %v1787
      %v1968 = vpack.c.b16 %v1953, %v1952
      %v1969 = vpack.c.b16 %v1955, %v1954
      %v1970 = vpack.c.b16 %v1957, %v1956
      %v1971 = vpack.c.b16 %v1959, %v1958
      %v1972 = vpack.c.b16 %v1961, %v1960
      %v1973 = vpack.c.b16 %v1963, %v1962
      %v1974 = vpack.c.b16 %v1965, %v1964
      %v1975 = vpack.c.b16 %v1967, %v1966
      %1984 = vmatprep.subr.bf16.mxu0 0
      %1985 = vmatpush1.bf16.msra.mxu0 %v1975
      %1986 = vmatprep.subr.bf16.mxu0 0
      %1987 = vmatpush1.bf16.msra.mxu0 %v1974
      %1988 = vmatprep.subr.bf16.mxu0 0
      %1989 = vmatpush1.bf16.msra.mxu0 %v1973
      %1990 = vmatprep.subr.bf16.mxu0 0
      %1991 = vmatpush1.bf16.msra.mxu0 %v1972
      %1992 = vmatprep.subr.bf16.mxu0 0
      %1993 = vmatpush1.bf16.msra.mxu0 %v1971
      %1994 = vmatprep.subr.bf16.mxu0 0
      %1995 = vmatpush1.bf16.msra.mxu0 %v1970
      %1996 = vmatprep.subr.bf16.mxu0 0
      %1997 = vmatpush1.bf16.msra.mxu0 %v1969
      %1998 = vmatprep.subr.bf16.mxu0 0
      %1999 = vmatpush1.bf16.msra.mxu0 %v1968
      %2000 = vmatprep.subr.bf16.mxu0 0
      %2001 = vmatpush2.bf16.msra.mxu0 0
      %2002 = vmatprep.subr.bf16.mxu0 0
      %2003 = vmatpush2.bf16.msra.mxu0 0
      %2004 = vmatprep.subr.bf16.mxu0 0
      %2005 = vmatpush2.bf16.msra.mxu0 0
      %2006 = vmatprep.subr.bf16.mxu0 0
      %2007 = vmatpush2.bf16.msra.mxu0 0
      %2008 = vmatprep.subr.bf16.mxu0 0
      %2009 = vmatpush2.bf16.msra.mxu0 0
      %2010 = vmatprep.subr.bf16.mxu0 0
      %2011 = vmatpush2.bf16.msra.mxu0 0
      %2012 = vmatprep.subr.bf16.mxu0 0
      %2013 = vmatpush2.bf16.msra.mxu0 0
      %2014 = vmatprep.subr.bf16.mxu0 0
      %2015 = vmatpush2.bf16.msra.mxu0 0
      %2016 = vmatprep.mubr.bf16.mxu0 0
      %2017 = vmatmul.mubr.bf16.gmra.mxu0 %v867
      %v2018 = vpop.f32.mrf.mxu0
      %v2019 = vadd.f32 %v1835, %v2018
      %v2020 = vpop.f32.mrf.mxu0
      %v2021 = vpop.f32.mrf.mxu0
      %v2022 = vpop.f32.mrf.mxu0
      %2023 = vdwg.mxu0
      %v2040 = vunpack.c.l.b16 %v1788
      %v2041 = vunpack.c.l.b16 %v1789
      %v2042 = vunpack.c.l.b16 %v1790
      %v2043 = vunpack.c.l.b16 %v1791
      %v2044 = vunpack.c.l.b16 %v1792
      %v2045 = vunpack.c.l.b16 %v1793
      %v2046 = vunpack.c.l.b16 %v1794
      %v2047 = vunpack.c.l.b16 %v1795
      %v2048 = vunpack.c.l.b16 %v1796
      %v2049 = vunpack.c.l.b16 %v1797
      %v2050 = vunpack.c.l.b16 %v1798
      %v2051 = vunpack.c.l.b16 %v1799
      %v2052 = vunpack.c.l.b16 %v1800
      %v2053 = vunpack.c.l.b16 %v1801
      %v2054 = vunpack.c.l.b16 %v1802
      %v2055 = vunpack.c.l.b16 %v1803
      %v2056 = vpack.c.b16 %v2041, %v2040
      %v2057 = vpack.c.b16 %v2043, %v2042
      %v2058 = vpack.c.b16 %v2045, %v2044
      %v2059 = vpack.c.b16 %v2047, %v2046
      %v2060 = vpack.c.b16 %v2049, %v2048
      %v2061 = vpack.c.b16 %v2051, %v2050
      %v2062 = vpack.c.b16 %v2053, %v2052
      %v2063 = vpack.c.b16 %v2055, %v2054
      %2072 = vmatprep.subr.bf16.mxu0 0
      %2073 = vmatpush1.bf16.msra.mxu0 %v2063
      %2074 = vmatprep.subr.bf16.mxu0 0
      %2075 = vmatpush1.bf16.msra.mxu0 %v2062
      %2076 = vmatprep.subr.bf16.mxu0 0
      %2077 = vmatpush1.bf16.msra.mxu0 %v2061
      %2078 = vmatprep.subr.bf16.mxu0 0
      %2079 = vmatpush1.bf16.msra.mxu0 %v2060
      %2080 = vmatprep.subr.bf16.mxu0 0
      %2081 = vmatpush1.bf16.msra.mxu0 %v2059
      %2082 = vmatprep.subr.bf16.mxu0 0
      %2083 = vmatpush1.bf16.msra.mxu0 %v2058
      %2084 = vmatprep.subr.bf16.mxu0 0
      %2085 = vmatpush1.bf16.msra.mxu0 %v2057
      %2086 = vmatprep.subr.bf16.mxu0 0
      %2087 = vmatpush1.bf16.msra.mxu0 %v2056
      %2088 = vmatprep.subr.bf16.mxu0 0
      %2089 = vmatpush2.bf16.msra.mxu0 0
      %2090 = vmatprep.subr.bf16.mxu0 0
      %2091 = vmatpush2.bf16.msra.mxu0 0
      %2092 = vmatprep.subr.bf16.mxu0 0
      %2093 = vmatpush2.bf16.msra.mxu0 0
      %2094 = vmatprep.subr.bf16.mxu0 0
      %2095 = vmatpush2.bf16.msra.mxu0 0
      %2096 = vmatprep.subr.bf16.mxu0 0
      %2097 = vmatpush2.bf16.msra.mxu0 0
      %2098 = vmatprep.subr.bf16.mxu0 0
      %2099 = vmatpush2.bf16.msra.mxu0 0
      %2100 = vmatprep.subr.bf16.mxu0 0
      %2101 = vmatpush2.bf16.msra.mxu0 0
      %2102 = vmatprep.subr.bf16.mxu0 0
      %2103 = vmatpush2.bf16.msra.mxu0 0
      %2104 = vmatprep.mubr.bf16.mxu0 0
      %2105 = vmatmul.mubr.bf16.gmra.mxu0 %v867
      %v2106 = vpop.f32.mrf.mxu0
      %v2107 = vadd.f32 %v1839, %v2106
      %v2108 = vpop.f32.mrf.mxu0
      %v2109 = vpop.f32.mrf.mxu0
      %v2110 = vpop.f32.mrf.mxu0
      %2111 = vdwg.mxu0
      %v2128 = vunpack.c.l.b16 %v1804
      %v2129 = vunpack.c.l.b16 %v1805
      %v2130 = vunpack.c.l.b16 %v1806
      %v2131 = vunpack.c.l.b16 %v1807
      %v2132 = vunpack.c.l.b16 %v1808
      %v2133 = vunpack.c.l.b16 %v1809
      %v2134 = vunpack.c.l.b16 %v1810
      %v2135 = vunpack.c.l.b16 %v1811
      %v2136 = vunpack.c.l.b16 %v1812
      %v2137 = vunpack.c.l.b16 %v1813
      %v2138 = vunpack.c.l.b16 %v1814
      %v2139 = vunpack.c.l.b16 %v1815
      %v2140 = vunpack.c.l.b16 %v1816
      %v2141 = vunpack.c.l.b16 %v1817
      %v2142 = vunpack.c.l.b16 %v1818
      %v2143 = vunpack.c.l.b16 %v1819
      %v2144 = vpack.c.b16 %v2129, %v2128
      %v2145 = vpack.c.b16 %v2131, %v2130
      %v2146 = vpack.c.b16 %v2133, %v2132
      %v2147 = vpack.c.b16 %v2135, %v2134
      %v2148 = vpack.c.b16 %v2137, %v2136
      %v2149 = vpack.c.b16 %v2139, %v2138
      %v2150 = vpack.c.b16 %v2141, %v2140
      %v2151 = vpack.c.b16 %v2143, %v2142
      %2160 = vmatprep.subr.bf16.mxu0 0
      %2161 = vmatpush1.bf16.msra.mxu0 %v2151
      %2162 = vmatprep.subr.bf16.mxu0 0
      %2163 = vmatpush1.bf16.msra.mxu0 %v2150
      %2164 = vmatprep.subr.bf16.mxu0 0
      %2165 = vmatpush1.bf16.msra.mxu0 %v2149
      %2166 = vmatprep.subr.bf16.mxu0 0
      %2167 = vmatpush1.bf16.msra.mxu0 %v2148
      %2168 = vmatprep.subr.bf16.mxu0 0
      %2169 = vmatpush1.bf16.msra.mxu0 %v2147
      %2170 = vmatprep.subr.bf16.mxu0 0
      %2171 = vmatpush1.bf16.msra.mxu0 %v2146
      %2172 = vmatprep.subr.bf16.mxu0 0
      %2173 = vmatpush1.bf16.msra.mxu0 %v2145
      %2174 = vmatprep.subr.bf16.mxu0 0
      %2175 = vmatpush1.bf16.msra.mxu0 %v2144
      %2176 = vmatprep.subr.bf16.mxu0 0
      %2177 = vmatpush2.bf16.msra.mxu0 0
      %2178 = vmatprep.subr.bf16.mxu0 0
      %2179 = vmatpush2.bf16.msra.mxu0 0
      %2180 = vmatprep.subr.bf16.mxu0 0
      %2181 = vmatpush2.bf16.msra.mxu0 0
      %2182 = vmatprep.subr.bf16.mxu0 0
      %2183 = vmatpush2.bf16.msra.mxu0 0
      %2184 = vmatprep.subr.bf16.mxu0 0
      %2185 = vmatpush2.bf16.msra.mxu0 0
      %2186 = vmatprep.subr.bf16.mxu0 0
      %2187 = vmatpush2.bf16.msra.mxu0 0
      %2188 = vmatprep.subr.bf16.mxu0 0
      %2189 = vmatpush2.bf16.msra.mxu0 0
      %2190 = vmatprep.subr.bf16.mxu0 0
      %2191 = vmatpush2.bf16.msra.mxu0 0
      %2192 = vmatprep.mubr.bf16.mxu0 0
      %2193 = vmatmul.mubr.bf16.gmra.mxu0 %v867
      %v2194 = vpop.f32.mrf.mxu0
      %v2195 = vadd.f32 %v1843, %v2194
      %v2196 = vpop.f32.mrf.mxu0
      %v2197 = vpop.f32.mrf.mxu0
      %v2198 = vpop.f32.mrf.mxu0
      %2199 = vdwg.mxu0
      %v2200 = vpack.c.bf16 %v1043, %v1043
      %v2201 = vpack.c.bf16 %v1131, %v1131
      %v2202 = vpack.c.bf16 %v1219, %v1219
      %v2203 = vpack.c.bf16 %v1307, %v1307
      %v2204 = vpack.c.bf16 %v1487, %v1487
      %v2205 = vpack.c.bf16 %v1575, %v1575
      %v2206 = vpack.c.bf16 %v1663, %v1663
      %v2207 = vpack.c.bf16 %v1751, %v1751
      %vm2208 = vcmask 261120
      %v2210 = vsel %vm2208, %v2200, 0
      %v2213 = vsel %vm2208, %v2204, 0
      %2215 = vmatprep.subr.bf16.mxu0 0
      %2216 = vmatpush1.bf16.xpose.msra.mxu0 0
      %2217 = vmatprep.subr.bf16.mxu0 0
      %2218 = vmatpush1.bf16.xpose.msra.mxu0 0
      %2219 = vmatprep.subr.bf16.mxu0 0
      %2220 = vmatpush1.bf16.xpose.msra.mxu0 0
      %2221 = vmatprep.subr.bf16.mxu0 0
      %2222 = vmatpush1.bf16.xpose.msra.mxu0 0
      %2223 = vmatprep.subr.bf16.mxu0 0
      %2224 = vmatpush1.bf16.xpose.msra.mxu0 0
      %2225 = vmatprep.subr.bf16.mxu0 0
      %2226 = vmatpush1.bf16.xpose.msra.mxu0 0
      %2227 = vmatprep.subr.bf16.mxu0 0
      %2228 = vmatpush1.bf16.xpose.msra.mxu0 0
      %2229 = vmatprep.subr.bf16.mxu0 0
      %2230 = vmatpush1.bf16.xpose.msra.mxu0 %v2213
      %2231 = vmatprep.subr.bf16.mxu0 0
      %2232 = vmatpush2.bf16.xpose.msra.mxu0 0
      %2233 = vmatprep.subr.bf16.mxu0 0
      %2234 = vmatpush2.bf16.xpose.msra.mxu0 0
      %2235 = vmatprep.subr.bf16.mxu0 0
      %2236 = vmatpush2.bf16.xpose.msra.mxu0 0
      %2237 = vmatprep.subr.bf16.mxu0 0
      %2238 = vmatpush2.bf16.xpose.msra.mxu0 0
      %2239 = vmatprep.subr.bf16.mxu0 0
      %2240 = vmatpush2.bf16.xpose.msra.mxu0 0
      %2241 = vmatprep.subr.bf16.mxu0 0
      %2242 = vmatpush2.bf16.xpose.msra.mxu0 0
      %2243 = vmatprep.subr.bf16.mxu0 0
      %2244 = vmatpush2.bf16.xpose.msra.mxu0 0
      %2245 = vmatprep.subr.bf16.mxu0 0
      %2246 = vmatpush2.bf16.xpose.msra.mxu0 0
      %2247 = vmatprep.mubr.bf16.mxu0 0
      %2248 = vmatmul.mubr.bf16.gmra.mxu0 %v2210
      %v2249 = vpop.f32.mrf.mxu0
      %v2250 = vadd.f32 0.0, %v2249
      %v2251 = vpop.f32.mrf.mxu0
      %v2252 = vpop.f32.mrf.mxu0
      %v2253 = vpop.f32.mrf.mxu0
      %2254 = vdwg.mxu0
      %v2256 = vsel %vm2208, %v2201, 0
      %v2259 = vsel %vm2208, %v2205, 0
      %2261 = vmatprep.subr.bf16.mxu0 0
      %2262 = vmatpush1.bf16.xpose.msra.mxu0 0
      %2263 = vmatprep.subr.bf16.mxu0 0
      %2264 = vmatpush1.bf16.xpose.msra.mxu0 0
      %2265 = vmatprep.subr.bf16.mxu0 0
      %2266 = vmatpush1.bf16.xpose.msra.mxu0 0
      %2267 = vmatprep.subr.bf16.mxu0 0
      %2268 = vmatpush1.bf16.xpose.msra.mxu0 0
      %2269 = vmatprep.subr.bf16.mxu0 0
      %2270 = vmatpush1.bf16.xpose.msra.mxu0 0
      %2271 = vmatprep.subr.bf16.mxu0 0
      %2272 = vmatpush1.bf16.xpose.msra.mxu0 0
      %2273 = vmatprep.subr.bf16.mxu0 0
      %2274 = vmatpush1.bf16.xpose.msra.mxu0 0
      %2275 = vmatprep.subr.bf16.mxu0 0
      %2276 = vmatpush1.bf16.xpose.msra.mxu0 %v2259
      %2277 = vmatprep.subr.bf16.mxu0 0
      %2278 = vmatpush2.bf16.xpose.msra.mxu0 0
      %2279 = vmatprep.subr.bf16.mxu0 0
      %2280 = vmatpush2.bf16.xpose.msra.mxu0 0
      %2281 = vmatprep.subr.bf16.mxu0 0
      %2282 = vmatpush2.bf16.xpose.msra.mxu0 0
      %2283 = vmatprep.subr.bf16.mxu0 0
      %2284 = vmatpush2.bf16.xpose.msra.mxu0 0
      %2285 = vmatprep.subr.bf16.mxu0 0
      %2286 = vmatpush2.bf16.xpose.msra.mxu0 0
      %2287 = vmatprep.subr.bf16.mxu0 0
      %2288 = vmatpush2.bf16.xpose.msra.mxu0 0
      %2289 = vmatprep.subr.bf16.mxu0 0
      %2290 = vmatpush2.bf16.xpose.msra.mxu0 0
      %2291 = vmatprep.subr.bf16.mxu0 0
      %2292 = vmatpush2.bf16.xpose.msra.mxu0 0
      %2293 = vmatprep.mubr.bf16.mxu0 0
      %2294 = vmatmul.mubr.bf16.gmra.mxu0 %v2256
      %v2295 = vpop.f32.mrf.mxu0
      %v2296 = vadd.f32 0.0, %v2295
      %v2297 = vpop.f32.mrf.mxu0
      %v2298 = vpop.f32.mrf.mxu0
      %v2299 = vpop.f32.mrf.mxu0
      %2300 = vdwg.mxu0
      %v2302 = vsel %vm2208, %v2202, 0
      %v2305 = vsel %vm2208, %v2206, 0
      %2307 = vmatprep.subr.bf16.mxu0 0
      %2308 = vmatpush1.bf16.xpose.msra.mxu0 0
      %2309 = vmatprep.subr.bf16.mxu0 0
      %2310 = vmatpush1.bf16.xpose.msra.mxu0 0
      %2311 = vmatprep.subr.bf16.mxu0 0
      %2312 = vmatpush1.bf16.xpose.msra.mxu0 0
      %2313 = vmatprep.subr.bf16.mxu0 0
      %2314 = vmatpush1.bf16.xpose.msra.mxu0 0
      %2315 = vmatprep.subr.bf16.mxu0 0
      %2316 = vmatpush1.bf16.xpose.msra.mxu0 0
      %2317 = vmatprep.subr.bf16.mxu0 0
      %2318 = vmatpush1.bf16.xpose.msra.mxu0 0
      %2319 = vmatprep.subr.bf16.mxu0 0
      %2320 = vmatpush1.bf16.xpose.msra.mxu0 0
      %2321 = vmatprep.subr.bf16.mxu0 0
      %2322 = vmatpush1.bf16.xpose.msra.mxu0 %v2305
      %2323 = vmatprep.subr.bf16.mxu0 0
      %2324 = vmatpush2.bf16.xpose.msra.mxu0 0
      %2325 = vmatprep.subr.bf16.mxu0 0
      %2326 = vmatpush2.bf16.xpose.msra.mxu0 0
      %2327 = vmatprep.subr.bf16.mxu0 0
      %2328 = vmatpush2.bf16.xpose.msra.mxu0 0
      %2329 = vmatprep.subr.bf16.mxu0 0
      %2330 = vmatpush2.bf16.xpose.msra.mxu0 0
      %2331 = vmatprep.subr.bf16.mxu0 0
      %2332 = vmatpush2.bf16.xpose.msra.mxu0 0
      %2333 = vmatprep.subr.bf16.mxu0 0
      %2334 = vmatpush2.bf16.xpose.msra.mxu0 0
      %2335 = vmatprep.subr.bf16.mxu0 0
      %2336 = vmatpush2.bf16.xpose.msra.mxu0 0
      %2337 = vmatprep.subr.bf16.mxu0 0
      %2338 = vmatpush2.bf16.xpose.msra.mxu0 0
      %2339 = vmatprep.mubr.bf16.mxu0 0
      %2340 = vmatmul.mubr.bf16.gmra.mxu0 %v2302
      %v2341 = vpop.f32.mrf.mxu0
      %v2342 = vadd.f32 0.0, %v2341
      %v2343 = vpop.f32.mrf.mxu0
      %v2344 = vpop.f32.mrf.mxu0
      %v2345 = vpop.f32.mrf.mxu0
      %2346 = vdwg.mxu0
      %v2348 = vsel %vm2208, %v2203, 0
      %v2351 = vsel %vm2208, %v2207, 0
      %2353 = vmatprep.subr.bf16.mxu0 0
      %2354 = vmatpush1.bf16.xpose.msra.mxu0 0
      %2355 = vmatprep.subr.bf16.mxu0 0
      %2356 = vmatpush1.bf16.xpose.msra.mxu0 0
      %2357 = vmatprep.subr.bf16.mxu0 0
      %2358 = vmatpush1.bf16.xpose.msra.mxu0 0
      %2359 = vmatprep.subr.bf16.mxu0 0
      %2360 = vmatpush1.bf16.xpose.msra.mxu0 0
      %2361 = vmatprep.subr.bf16.mxu0 0
      %2362 = vmatpush1.bf16.xpose.msra.mxu0 0
      %2363 = vmatprep.subr.bf16.mxu0 0
      %2364 = vmatpush1.bf16.xpose.msra.mxu0 0
      %2365 = vmatprep.subr.bf16.mxu0 0
      %2366 = vmatpush1.bf16.xpose.msra.mxu0 0
      %2367 = vmatprep.subr.bf16.mxu0 0
      %2368 = vmatpush1.bf16.xpose.msra.mxu0 %v2351
      %2369 = vmatprep.subr.bf16.mxu0 0
      %2370 = vmatpush2.bf16.xpose.msra.mxu0 0
      %2371 = vmatprep.subr.bf16.mxu0 0
      %2372 = vmatpush2.bf16.xpose.msra.mxu0 0
      %2373 = vmatprep.subr.bf16.mxu0 0
      %2374 = vmatpush2.bf16.xpose.msra.mxu0 0
      %2375 = vmatprep.subr.bf16.mxu0 0
      %2376 = vmatpush2.bf16.xpose.msra.mxu0 0
      %2377 = vmatprep.subr.bf16.mxu0 0
      %2378 = vmatpush2.bf16.xpose.msra.mxu0 0
      %2379 = vmatprep.subr.bf16.mxu0 0
      %2380 = vmatpush2.bf16.xpose.msra.mxu0 0
      %2381 = vmatprep.subr.bf16.mxu0 0
      %2382 = vmatpush2.bf16.xpose.msra.mxu0 0
      %2383 = vmatprep.subr.bf16.mxu0 0
      %2384 = vmatpush2.bf16.xpose.msra.mxu0 0
      %2385 = vmatprep.mubr.bf16.mxu0 0
      %2386 = vmatmul.mubr.bf16.gmra.mxu0 %v2348
      %v2387 = vpop.f32.mrf.mxu0
      %v2388 = vadd.f32 0.0, %v2387
      %v2389 = vpop.f32.mrf.mxu0
      %v2390 = vpop.f32.mrf.mxu0
      %v2391 = vpop.f32.mrf.mxu0
      %2392 = vdwg.mxu0
      %v2393 = vmul.f32 %v2250, 0.17677669
      %v2394 = vmul.f32 %v2296, 0.17677669
      %v2395 = vmul.f32 %v2342, 0.17677669
      %v2396 = vmul.f32 %v2388, 0.17677669
      %vm2397 = vcmask 36864
      %v2398 = vsel %vm2397, %v2393, -inf
      %2399 = vmax.xlane.f32.xlu0 %v2398
      %v2400 = vpop.xlane.xlu0 %2399
      %v2401 = vsel %vm2397, %v2394, -inf
      %2402 = vmax.xlane.f32.xlu0 %v2401
      %v2403 = vpop.xlane.xlu0 %2402
      %v2404 = vsel %vm2397, %v2395, -inf
      %2405 = vmax.xlane.f32.xlu0 %v2404
      %v2406 = vpop.xlane.xlu0 %2405
      %v2407 = vsel %vm2397, %v2396, -inf
      %2408 = vmax.xlane.f32.xlu0 %v2407
      %v2409 = vpop.xlane.xlu0 %2408
      %v2410 = vsub.f32 %v2393, %v2400
      %v2411 = vsub.f32 %v2394, %v2403
      %v2412 = vsub.f32 %v2395, %v2406
      %v2413 = vsub.f32 %v2396, %v2409
      %v2414 = vmul.f32 %v2410, 1.442695
      %v2415 = vpow.pop %v2414
      %v2416 = vmul.f32 %v2411, 1.442695
      %v2417 = vpow.pop %v2416
      %v2418 = vmul.f32 %v2412, 1.442695
      %v2419 = vpow.pop %v2418
      %v2420 = vmul.f32 %v2413, 1.442695
      %v2421 = vpow.pop %v2420
      %v2422 = vsel %vm2397, %v2415, 0.0
      %2423 = vadd.xlane.f32.xlu0 %v2422
      %v2424 = vpop.xlane.xlu0 %2423
      %v2425 = vsel %vm2397, %v2417, 0.0
      %2426 = vadd.xlane.f32.xlu0 %v2425
      %v2427 = vpop.xlane.xlu0 %2426
      %v2428 = vsel %vm2397, %v2419, 0.0
      %2429 = vadd.xlane.f32.xlu0 %v2428
      %v2430 = vpop.xlane.xlu0 %2429
      %v2431 = vsel %vm2397, %v2421, 0.0
      %2432 = vadd.xlane.f32.xlu0 %v2431
      %v2433 = vpop.xlane.xlu0 %2432
      %v2434 = vrcp.pop %v2424
      %v2435 = vrcp.pop %v2427
      %v2436 = vrcp.pop %v2430
      %v2437 = vrcp.pop %v2433
      %v2438 = vmul.f32 %v2415, %v2434
      %v2439 = vmul.f32 %v2417, %v2435
      %v2440 = vmul.f32 %v2419, %v2436
      %v2441 = vmul.f32 %v2421, %v2437
      %v2442 = vpack.c.bf16 %v2438, %v2438
      %v2443 = vpack.c.bf16 %v2439, %v2439
      %v2444 = vpack.c.bf16 %v2440, %v2440
      %v2445 = vpack.c.bf16 %v2441, %v2441
      %v2446 = vpack.c.bf16 %v1931, %v1931
      %v2447 = vpack.c.bf16 %v2019, %v2019
      %v2448 = vpack.c.bf16 %v2107, %v2107
      %v2449 = vpack.c.bf16 %v2195, %v2195
      %vm2450 = vcmask 39936
      %v2452 = vsel %vm2450, %v2442, 0
      %vm2454 = vcmask 1041408
      %vm2455 = vcmask 1042432
      %v2456 = vsel %vm2454, 4294967295, 65535
      %v2457 = vsel %vm2455, %v2456, 0
      %v2459 = vand.u32 %v2446, %v2457
      %2461 = vmatprep.subr.bf16.mxu0 0
      %2462 = vmatpush1.bf16.msra.mxu0 0
      %2463 = vmatprep.subr.bf16.mxu0 0
      %2464 = vmatpush1.bf16.msra.mxu0 0
      %2465 = vmatprep.subr.bf16.mxu0 0
      %2466 = vmatpush1.bf16.msra.mxu0 0
      %2467 = vmatprep.subr.bf16.mxu0 0
      %2468 = vmatpush1.bf16.msra.mxu0 0
      %2469 = vmatprep.subr.bf16.mxu0 0
      %2470 = vmatpush1.bf16.msra.mxu0 0
      %2471 = vmatprep.subr.bf16.mxu0 0
      %2472 = vmatpush1.bf16.msra.mxu0 0
      %2473 = vmatprep.subr.bf16.mxu0 0
      %2474 = vmatpush1.bf16.msra.mxu0 0
      %2475 = vmatprep.subr.bf16.mxu0 0
      %2476 = vmatpush1.bf16.msra.mxu0 %v2459
      %2477 = vmatprep.subr.bf16.mxu0 0
      %2478 = vmatpush2.bf16.msra.mxu0 0
      %2479 = vmatprep.subr.bf16.mxu0 0
      %2480 = vmatpush2.bf16.msra.mxu0 0
      %2481 = vmatprep.subr.bf16.mxu0 0
      %2482 = vmatpush2.bf16.msra.mxu0 0
      %2483 = vmatprep.subr.bf16.mxu0 0
      %2484 = vmatpush2.bf16.msra.mxu0 0
      %2485 = vmatprep.subr.bf16.mxu0 0
      %2486 = vmatpush2.bf16.msra.mxu0 0
      %2487 = vmatprep.subr.bf16.mxu0 0
      %2488 = vmatpush2.bf16.msra.mxu0 0
      %2489 = vmatprep.subr.bf16.mxu0 0
      %2490 = vmatpush2.bf16.msra.mxu0 0
      %2491 = vmatprep.subr.bf16.mxu0 0
      %2492 = vmatpush2.bf16.msra.mxu0 0
      %2493 = vmatprep.mubr.bf16.mxu0 0
      %2494 = vmatmul.mubr.bf16.gmra.mxu0 %v2452
      %v2495 = vpop.f32.mrf.mxu0
      %v2496 = vadd.f32 0.0, %v2495
      %v2497 = vpop.f32.mrf.mxu0
      %v2498 = vpop.f32.mrf.mxu0
      %v2499 = vpop.f32.mrf.mxu0
      %2500 = vdwg.mxu0
      %v2502 = vsel %vm2450, %v2443, 0
      %v2505 = vand.u32 %v2447, %v2457
      %2507 = vmatprep.subr.bf16.mxu0 0
      %2508 = vmatpush1.bf16.msra.mxu0 0
      %2509 = vmatprep.subr.bf16.mxu0 0
      %2510 = vmatpush1.bf16.msra.mxu0 0
      %2511 = vmatprep.subr.bf16.mxu0 0
      %2512 = vmatpush1.bf16.msra.mxu0 0
      %2513 = vmatprep.subr.bf16.mxu0 0
      %2514 = vmatpush1.bf16.msra.mxu0 0
      %2515 = vmatprep.subr.bf16.mxu0 0
      %2516 = vmatpush1.bf16.msra.mxu0 0
      %2517 = vmatprep.subr.bf16.mxu0 0
      %2518 = vmatpush1.bf16.msra.mxu0 0
      %2519 = vmatprep.subr.bf16.mxu0 0
      %2520 = vmatpush1.bf16.msra.mxu0 0
      %2521 = vmatprep.subr.bf16.mxu0 0
      %2522 = vmatpush1.bf16.msra.mxu0 %v2505
      %2523 = vmatprep.subr.bf16.mxu0 0
      %2524 = vmatpush2.bf16.msra.mxu0 0
      %2525 = vmatprep.subr.bf16.mxu0 0
      %2526 = vmatpush2.bf16.msra.mxu0 0
      %2527 = vmatprep.subr.bf16.mxu0 0
      %2528 = vmatpush2.bf16.msra.mxu0 0
      %2529 = vmatprep.subr.bf16.mxu0 0
      %2530 = vmatpush2.bf16.msra.mxu0 0
      %2531 = vmatprep.subr.bf16.mxu0 0
      %2532 = vmatpush2.bf16.msra.mxu0 0
      %2533 = vmatprep.subr.bf16.mxu0 0
      %2534 = vmatpush2.bf16.msra.mxu0 0
      %2535 = vmatprep.subr.bf16.mxu0 0
      %2536 = vmatpush2.bf16.msra.mxu0 0
      %2537 = vmatprep.subr.bf16.mxu0 0
      %2538 = vmatpush2.bf16.msra.mxu0 0
      %2539 = vmatprep.mubr.bf16.mxu0 0
      %2540 = vmatmul.mubr.bf16.gmra.mxu0 %v2502
      %v2541 = vpop.f32.mrf.mxu0
      %v2542 = vadd.f32 0.0, %v2541
      %v2543 = vpop.f32.mrf.mxu0
      %v2544 = vpop.f32.mrf.mxu0
      %v2545 = vpop.f32.mrf.mxu0
      %2546 = vdwg.mxu0
      %v2548 = vsel %vm2450, %v2444, 0
      %v2551 = vand.u32 %v2448, %v2457
      %2553 = vmatprep.subr.bf16.mxu0 0
      %2554 = vmatpush1.bf16.msra.mxu0 0
      %2555 = vmatprep.subr.bf16.mxu0 0
      %2556 = vmatpush1.bf16.msra.mxu0 0
      %2557 = vmatprep.subr.bf16.mxu0 0
      %2558 = vmatpush1.bf16.msra.mxu0 0
      %2559 = vmatprep.subr.bf16.mxu0 0
      %2560 = vmatpush1.bf16.msra.mxu0 0
      %2561 = vmatprep.subr.bf16.mxu0 0
      %2562 = vmatpush1.bf16.msra.mxu0 0
      %2563 = vmatprep.subr.bf16.mxu0 0
      %2564 = vmatpush1.bf16.msra.mxu0 0
      %2565 = vmatprep.subr.bf16.mxu0 0
      %2566 = vmatpush1.bf16.msra.mxu0 0
      %2567 = vmatprep.subr.bf16.mxu0 0
      %2568 = vmatpush1.bf16.msra.mxu0 %v2551
      %2569 = vmatprep.subr.bf16.mxu0 0
      %2570 = vmatpush2.bf16.msra.mxu0 0
      %2571 = vmatprep.subr.bf16.mxu0 0
      %2572 = vmatpush2.bf16.msra.mxu0 0
      %2573 = vmatprep.subr.bf16.mxu0 0
      %2574 = vmatpush2.bf16.msra.mxu0 0
      %2575 = vmatprep.subr.bf16.mxu0 0
      %2576 = vmatpush2.bf16.msra.mxu0 0
      %2577 = vmatprep.subr.bf16.mxu0 0
      %2578 = vmatpush2.bf16.msra.mxu0 0
      %2579 = vmatprep.subr.bf16.mxu0 0
      %2580 = vmatpush2.bf16.msra.mxu0 0
      %2581 = vmatprep.subr.bf16.mxu0 0
      %2582 = vmatpush2.bf16.msra.mxu0 0
      %2583 = vmatprep.subr.bf16.mxu0 0
      %2584 = vmatpush2.bf16.msra.mxu0 0
      %2585 = vmatprep.mubr.bf16.mxu0 0
      %2586 = vmatmul.mubr.bf16.gmra.mxu0 %v2548
      %v2587 = vpop.f32.mrf.mxu0
      %v2588 = vadd.f32 0.0, %v2587
      %v2589 = vpop.f32.mrf.mxu0
      %v2590 = vpop.f32.mrf.mxu0
      %v2591 = vpop.f32.mrf.mxu0
      %2592 = vdwg.mxu0
      %v2594 = vsel %vm2450, %v2445, 0
      %v2597 = vand.u32 %v2449, %v2457
      %2599 = vmatprep.subr.bf16.mxu0 0
      %2600 = vmatpush1.bf16.msra.mxu0 0
      %2601 = vmatprep.subr.bf16.mxu0 0
      %2602 = vmatpush1.bf16.msra.mxu0 0
      %2603 = vmatprep.subr.bf16.mxu0 0
      %2604 = vmatpush1.bf16.msra.mxu0 0
      %2605 = vmatprep.subr.bf16.mxu0 0
      %2606 = vmatpush1.bf16.msra.mxu0 0
      %2607 = vmatprep.subr.bf16.mxu0 0
      %2608 = vmatpush1.bf16.msra.mxu0 0
      %2609 = vmatprep.subr.bf16.mxu0 0
      %2610 = vmatpush1.bf16.msra.mxu0 0
      %2611 = vmatprep.subr.bf16.mxu0 0
      %2612 = vmatpush1.bf16.msra.mxu0 0
      %2613 = vmatprep.subr.bf16.mxu0 0
      %2614 = vmatpush1.bf16.msra.mxu0 %v2597
      %2615 = vmatprep.subr.bf16.mxu0 0
      %2616 = vmatpush2.bf16.msra.mxu0 0
      %2617 = vmatprep.subr.bf16.mxu0 0
      %2618 = vmatpush2.bf16.msra.mxu0 0
      %2619 = vmatprep.subr.bf16.mxu0 0
      %2620 = vmatpush2.bf16.msra.mxu0 0
      %2621 = vmatprep.subr.bf16.mxu0 0
      %2622 = vmatpush2.bf16.msra.mxu0 0
      %2623 = vmatprep.subr.bf16.mxu0 0
      %2624 = vmatpush2.bf16.msra.mxu0 0
      %2625 = vmatprep.subr.bf16.mxu0 0
      %2626 = vmatpush2.bf16.msra.mxu0 0
      %2627 = vmatprep.subr.bf16.mxu0 0
      %2628 = vmatpush2.bf16.msra.mxu0 0
      %2629 = vmatprep.subr.bf16.mxu0 0
      %2630 = vmatpush2.bf16.msra.mxu0 0
      %2631 = vmatprep.mubr.bf16.mxu0 0
      %2632 = vmatmul.mubr.bf16.gmra.mxu0 %v2594
      %v2633 = vpop.f32.mrf.mxu0
      %v2634 = vadd.f32 0.0, %v2633
      %v2635 = vpop.f32.mrf.mxu0
      %v2636 = vpop.f32.mrf.mxu0
      %v2637 = vpop.f32.mrf.mxu0
      %2638 = vdwg.mxu0
      %v2639 = vpack.c.bf16 %v2496, %v2496
      %v2640 = vpack.c.bf16 %v2542, %v2542
      %v2641 = vpack.c.bf16 %v2588, %v2588
      %v2642 = vpack.c.bf16 %v2634, %v2634
      %v2643 = vld [vmem:[%s797] sm:$0xf]
      %v2644 = vld [vmem:[%s797 + $0x4] sm:$0xf]
      %v2645 = vld [vmem:[%s797 + $0x8] sm:$0xf]
      %v2646 = vld [vmem:[%s797 + $0xc] sm:$0xf]
      %v2647 = vld [vmem:[%s797 + $0x10] sm:$0xf]
      %v2648 = vld [vmem:[%s797 + $0x14] sm:$0xf]
      %v2649 = vld [vmem:[%s797 + $0x18] sm:$0xf]
      %v2650 = vld [vmem:[%s797 + $0x1c] sm:$0xf]
      %v2651 = vld [vmem:[%s797 + $0x20] sm:$0xf]
      %v2652 = vld [vmem:[%s797 + $0x24] sm:$0xf]
      %v2653 = vld [vmem:[%s797 + $0x28] sm:$0xf]
      %v2654 = vld [vmem:[%s797 + $0x2c] sm:$0xf]
      %v2655 = vld [vmem:[%s797 + $0x30] sm:$0xf]
      %v2656 = vld [vmem:[%s797 + $0x34] sm:$0xf]
      %v2657 = vld [vmem:[%s797 + $0x38] sm:$0xf]
      %v2658 = vld [vmem:[%s797 + $0x3c] sm:$0xf]
      %v2663 = vunpack.c.l.b16 %v2643
      %v2664 = vunpack.c.l.b16 %v2644
      %v2665 = vunpack.c.l.b16 %v2645
      %v2666 = vunpack.c.l.b16 %v2646
      %v2667 = vpack.c.b16 %v2664, %v2663
      %v2668 = vpack.c.b16 %v2666, %v2665
      %v2672 = vsel %vm2208, %v2639, 0
      %2674 = vmatprep.subr.bf16.mxu0 0
      %2675 = vmatpush1.bf16.msra.mxu0 0
      %2676 = vmatprep.subr.bf16.mxu0 0
      %2677 = vmatpush1.bf16.msra.mxu0 0
      %2678 = vmatprep.subr.bf16.mxu0 0
      %2679 = vmatpush1.bf16.msra.mxu0 0
      %2680 = vmatprep.subr.bf16.mxu0 0
      %2681 = vmatpush1.bf16.msra.mxu0 0
      %2682 = vmatprep.subr.bf16.mxu0 0
      %2683 = vmatpush1.bf16.msra.mxu0 0
      %2684 = vmatprep.subr.bf16.mxu0 0
      %2685 = vmatpush1.bf16.msra.mxu0 0
      %2686 = vmatprep.subr.bf16.mxu0 0
      %2687 = vmatpush1.bf16.msra.mxu0 %v2668
      %2688 = vmatprep.subr.bf16.mxu0 0
      %2689 = vmatpush1.bf16.msra.mxu0 %v2667
      %2690 = vmatprep.subr.bf16.mxu0 0
      %2691 = vmatpush2.bf16.msra.mxu0 0
      %2692 = vmatprep.subr.bf16.mxu0 0
      %2693 = vmatpush2.bf16.msra.mxu0 0
      %2694 = vmatprep.subr.bf16.mxu0 0
      %2695 = vmatpush2.bf16.msra.mxu0 0
      %2696 = vmatprep.subr.bf16.mxu0 0
      %2697 = vmatpush2.bf16.msra.mxu0 0
      %2698 = vmatprep.subr.bf16.mxu0 0
      %2699 = vmatpush2.bf16.msra.mxu0 0
      %2700 = vmatprep.subr.bf16.mxu0 0
      %2701 = vmatpush2.bf16.msra.mxu0 0
      %2702 = vmatprep.subr.bf16.mxu0 0
      %2703 = vmatpush2.bf16.msra.mxu0 0
      %2704 = vmatprep.subr.bf16.mxu0 0
      %2705 = vmatpush2.bf16.msra.mxu0 0
      %2706 = vmatprep.mubr.bf16.mxu0 0
      %2707 = vmatmul.mubr.bf16.gmra.mxu0 %v2672
      %v2708 = vpop.f32.mrf.mxu0
      %v2709 = vadd.f32 0.0, %v2708
      %v2710 = vpop.f32.mrf.mxu0
      %v2711 = vpop.f32.mrf.mxu0
      %v2712 = vpop.f32.mrf.mxu0
      %2713 = vdwg.mxu0
      %v2718 = vunpack.c.l.b16 %v2647
      %v2719 = vunpack.c.l.b16 %v2648
      %v2720 = vunpack.c.l.b16 %v2649
      %v2721 = vunpack.c.l.b16 %v2650
      %v2722 = vpack.c.b16 %v2719, %v2718
      %v2723 = vpack.c.b16 %v2721, %v2720
      %v2727 = vsel %vm2208, %v2640, 0
      %2729 = vmatprep.subr.bf16.mxu0 0
      %2730 = vmatpush1.bf16.msra.mxu0 0
      %2731 = vmatprep.subr.bf16.mxu0 0
      %2732 = vmatpush1.bf16.msra.mxu0 0
      %2733 = vmatprep.subr.bf16.mxu0 0
      %2734 = vmatpush1.bf16.msra.mxu0 0
      %2735 = vmatprep.subr.bf16.mxu0 0
      %2736 = vmatpush1.bf16.msra.mxu0 0
      %2737 = vmatprep.subr.bf16.mxu0 0
      %2738 = vmatpush1.bf16.msra.mxu0 0
      %2739 = vmatprep.subr.bf16.mxu0 0
      %2740 = vmatpush1.bf16.msra.mxu0 0
      %2741 = vmatprep.subr.bf16.mxu0 0
      %2742 = vmatpush1.bf16.msra.mxu0 %v2723
      %2743 = vmatprep.subr.bf16.mxu0 0
      %2744 = vmatpush1.bf16.msra.mxu0 %v2722
      %2745 = vmatprep.subr.bf16.mxu0 0
      %2746 = vmatpush2.bf16.msra.mxu0 0
      %2747 = vmatprep.subr.bf16.mxu0 0
      %2748 = vmatpush2.bf16.msra.mxu0 0
      %2749 = vmatprep.subr.bf16.mxu0 0
      %2750 = vmatpush2.bf16.msra.mxu0 0
      %2751 = vmatprep.subr.bf16.mxu0 0
      %2752 = vmatpush2.bf16.msra.mxu0 0
      %2753 = vmatprep.subr.bf16.mxu0 0
      %2754 = vmatpush2.bf16.msra.mxu0 0
      %2755 = vmatprep.subr.bf16.mxu0 0
      %2756 = vmatpush2.bf16.msra.mxu0 0
      %2757 = vmatprep.subr.bf16.mxu0 0
      %2758 = vmatpush2.bf16.msra.mxu0 0
      %2759 = vmatprep.subr.bf16.mxu0 0
      %2760 = vmatpush2.bf16.msra.mxu0 0
      %2761 = vmatprep.mubr.bf16.mxu0 0
      %2762 = vmatmul.mubr.bf16.gmra.mxu0 %v2727
      %v2763 = vpop.f32.mrf.mxu0
      %v2764 = vadd.f32 0.0, %v2763
      %v2765 = vpop.f32.mrf.mxu0
      %v2766 = vpop.f32.mrf.mxu0
      %v2767 = vpop.f32.mrf.mxu0
      %2768 = vdwg.mxu0
      %v2773 = vunpack.c.l.b16 %v2651
      %v2774 = vunpack.c.l.b16 %v2652
      %v2775 = vunpack.c.l.b16 %v2653
      %v2776 = vunpack.c.l.b16 %v2654
      %v2777 = vpack.c.b16 %v2774, %v2773
      %v2778 = vpack.c.b16 %v2776, %v2775
      %v2782 = vsel %vm2208, %v2641, 0
      %2784 = vmatprep.subr.bf16.mxu0 0
      %2785 = vmatpush1.bf16.msra.mxu0 0
      %2786 = vmatprep.subr.bf16.mxu0 0
      %2787 = vmatpush1.bf16.msra.mxu0 0
      %2788 = vmatprep.subr.bf16.mxu0 0
      %2789 = vmatpush1.bf16.msra.mxu0 0
      %2790 = vmatprep.subr.bf16.mxu0 0
      %2791 = vmatpush1.bf16.msra.mxu0 0
      %2792 = vmatprep.subr.bf16.mxu0 0
      %2793 = vmatpush1.bf16.msra.mxu0 0
      %2794 = vmatprep.subr.bf16.mxu0 0
      %2795 = vmatpush1.bf16.msra.mxu0 0
      %2796 = vmatprep.subr.bf16.mxu0 0
      %2797 = vmatpush1.bf16.msra.mxu0 %v2778
      %2798 = vmatprep.subr.bf16.mxu0 0
      %2799 = vmatpush1.bf16.msra.mxu0 %v2777
      %2800 = vmatprep.subr.bf16.mxu0 0
      %2801 = vmatpush2.bf16.msra.mxu0 0
      %2802 = vmatprep.subr.bf16.mxu0 0
      %2803 = vmatpush2.bf16.msra.mxu0 0
      %2804 = vmatprep.subr.bf16.mxu0 0
      %2805 = vmatpush2.bf16.msra.mxu0 0
      %2806 = vmatprep.subr.bf16.mxu0 0
      %2807 = vmatpush2.bf16.msra.mxu0 0
      %2808 = vmatprep.subr.bf16.mxu0 0
      %2809 = vmatpush2.bf16.msra.mxu0 0
      %2810 = vmatprep.subr.bf16.mxu0 0
      %2811 = vmatpush2.bf16.msra.mxu0 0
      %2812 = vmatprep.subr.bf16.mxu0 0
      %2813 = vmatpush2.bf16.msra.mxu0 0
      %2814 = vmatprep.subr.bf16.mxu0 0
      %2815 = vmatpush2.bf16.msra.mxu0 0
      %2816 = vmatprep.mubr.bf16.mxu0 0
      %2817 = vmatmul.mubr.bf16.gmra.mxu0 %v2782
      %v2818 = vpop.f32.mrf.mxu0
      %v2819 = vadd.f32 0.0, %v2818
      %v2820 = vpop.f32.mrf.mxu0
      %v2821 = vpop.f32.mrf.mxu0
      %v2822 = vpop.f32.mrf.mxu0
      %2823 = vdwg.mxu0
      %v2828 = vunpack.c.l.b16 %v2655
      %v2829 = vunpack.c.l.b16 %v2656
      %v2830 = vunpack.c.l.b16 %v2657
      %v2831 = vunpack.c.l.b16 %v2658
      %v2832 = vpack.c.b16 %v2829, %v2828
      %v2833 = vpack.c.b16 %v2831, %v2830
      %v2837 = vsel %vm2208, %v2642, 0
      %2839 = vmatprep.subr.bf16.mxu0 0
      %2840 = vmatpush1.bf16.msra.mxu0 0
      %2841 = vmatprep.subr.bf16.mxu0 0
      %2842 = vmatpush1.bf16.msra.mxu0 0
      %2843 = vmatprep.subr.bf16.mxu0 0
      %2844 = vmatpush1.bf16.msra.mxu0 0
      %2845 = vmatprep.subr.bf16.mxu0 0
      %2846 = vmatpush1.bf16.msra.mxu0 0
      %2847 = vmatprep.subr.bf16.mxu0 0
      %2848 = vmatpush1.bf16.msra.mxu0 0
      %2849 = vmatprep.subr.bf16.mxu0 0
      %2850 = vmatpush1.bf16.msra.mxu0 0
      %2851 = vmatprep.subr.bf16.mxu0 0
      %2852 = vmatpush1.bf16.msra.mxu0 %v2833
      %2853 = vmatprep.subr.bf16.mxu0 0
      %2854 = vmatpush1.bf16.msra.mxu0 %v2832
      %2855 = vmatprep.subr.bf16.mxu0 0
      %2856 = vmatpush2.bf16.msra.mxu0 0
      %2857 = vmatprep.subr.bf16.mxu0 0
      %2858 = vmatpush2.bf16.msra.mxu0 0
      %2859 = vmatprep.subr.bf16.mxu0 0
      %2860 = vmatpush2.bf16.msra.mxu0 0
      %2861 = vmatprep.subr.bf16.mxu0 0
      %2862 = vmatpush2.bf16.msra.mxu0 0
      %2863 = vmatprep.subr.bf16.mxu0 0
      %2864 = vmatpush2.bf16.msra.mxu0 0
      %2865 = vmatprep.subr.bf16.mxu0 0
      %2866 = vmatpush2.bf16.msra.mxu0 0
      %2867 = vmatprep.subr.bf16.mxu0 0
      %2868 = vmatpush2.bf16.msra.mxu0 0
      %2869 = vmatprep.subr.bf16.mxu0 0
      %2870 = vmatpush2.bf16.msra.mxu0 0
      %2871 = vmatprep.mubr.bf16.mxu0 0
      %2872 = vmatmul.mubr.bf16.gmra.mxu0 %v2837
      %v2873 = vpop.f32.mrf.mxu0
      %v2874 = vadd.f32 0.0, %v2873
      %v2875 = vpop.f32.mrf.mxu0
      %v2876 = vpop.f32.mrf.mxu0
      %v2877 = vpop.f32.mrf.mxu0
      %2878 = vdwg.mxu0
      %v2879 = vsel %vm838, %v2709, 0.0
      %v2880 = vsel %vm838, %v2764, 0.0
      %v2881 = vadd.f32 %v2879, %v2880
      %v2882 = vsel %vm838, %v2819, 0.0
      %v2883 = vadd.f32 %v2881, %v2882
      %v2884 = vsel %vm838, %v2874, 0.0
      %v2885 = vadd.f32 %v2883, %v2884
      %v2886 = vld [vmem:[%s800] sm:$0x1]
      %v2888 = vlaneseq
      %v2889 = vshrl.u32 %v2888, 7
      %v2890 = vsub.s32 0, %v2889
      %v2891 = vrot.slane %v2886, %v2890
      %v2893 = vadd.f32 %v2885, %v2891
      %v2894 = vadd.f32 %v835, %v2893
      %v2895 = vld [vmem:[%s803] sm:$0x1]
      %v2896 = vld [vmem:[%s806] sm:$0x1]
      %v2897 = vsel %vm838, %v2894, 0.0
      %2898 = vadd.xlane.f32.xlu0 %v2897
      %v2899 = vpop.xlane.xlu0 %2898
      %v2900 = vmul.f32 %v2899, %v842
      %v2901 = vsub.f32 %v2894, %v2900
      %v2902 = vmul.f32 %v2901, %v2901
      %v2903 = vsel %vm838, %v2902, 0.0
      %2904 = vadd.xlane.f32.xlu0 %v2903
      %v2905 = vpop.xlane.xlu0 %2904
      %v2906 = vmul.f32 %v2905, %v842
      %v2907 = vadd.f32 %v2906, 1e-12
      %v2908 = vrsqrt.pop %v2907
      %v2909 = vmul.f32 %v2901, %v2908
      %v2911 = vlaneseq
      %v2912 = vshrl.u32 %v2911, 7
      %v2913 = vsub.s32 0, %v2912
      %v2914 = vrot.slane %v2895, %v2913
      %v2916 = vmul.f32 %v2909, %v2914
      %v2918 = vlaneseq
      %v2919 = vshrl.u32 %v2918, 7
      %v2920 = vsub.s32 0, %v2919
      %v2921 = vrot.slane %v2896, %v2920
      %v2923 = vadd.f32 %v2916, %v2921
      %v2924 = vpack.c.bf16 %v2923, %v2923
      %v2925 = vld [vmem:[%s811] sm:$0xff]
      %v2926 = vld [vmem:[%s811 + $0x8] sm:$0xff]
      %v2927 = vld [vmem:[%s811 + $0x10] sm:$0xff]
      %v2928 = vld [vmem:[%s811 + $0x18] sm:$0xff]
      %v2929 = vld [vmem:[%s811 + $0x20] sm:$0xff]
      %v2930 = vld [vmem:[%s811 + $0x28] sm:$0xff]
      %v2931 = vld [vmem:[%s811 + $0x30] sm:$0xff]
      %v2932 = vld [vmem:[%s811 + $0x38] sm:$0xff]
      %v2933 = vld [vmem:[%s811 + $0x40] sm:$0xff]
      %v2934 = vld [vmem:[%s811 + $0x48] sm:$0xff]
      %v2935 = vld [vmem:[%s811 + $0x50] sm:$0xff]
      %v2936 = vld [vmem:[%s811 + $0x58] sm:$0xff]
      %v2937 = vld [vmem:[%s811 + $0x60] sm:$0xff]
      %v2938 = vld [vmem:[%s811 + $0x68] sm:$0xff]
      %v2939 = vld [vmem:[%s811 + $0x70] sm:$0xff]
      %v2940 = vld [vmem:[%s811 + $0x78] sm:$0xff]
      %v2941 = vld [vmem:[%s815] sm:$0x3]
      %v2943 = vlaneseq
      %v2944 = vshrl.u32 %v2943, 7
      %v2945 = vsub.s32 0, %v2944
      %v2946 = vrot.slane %v2941, %v2945
      %v2947 = vlaneseq
      %v2948 = vshrl.u32 %v2947, 7
      %v2949 = vsub.s32 1, %v2948
      %v2950 = vrot.slane %v2941, %v2949
      %v2969 = vunpack.c.l.b16 %v2925
      %v2970 = vunpack.c.h.b16 %v2925
      %v2971 = vunpack.c.l.b16 %v2926
      %v2972 = vunpack.c.h.b16 %v2926
      %v2973 = vunpack.c.l.b16 %v2927
      %v2974 = vunpack.c.h.b16 %v2927
      %v2975 = vunpack.c.l.b16 %v2928
      %v2976 = vunpack.c.h.b16 %v2928
      %v2977 = vunpack.c.l.b16 %v2929
      %v2978 = vunpack.c.h.b16 %v2929
      %v2979 = vunpack.c.l.b16 %v2930
      %v2980 = vunpack.c.h.b16 %v2930
      %v2981 = vunpack.c.l.b16 %v2931
      %v2982 = vunpack.c.h.b16 %v2931
      %v2983 = vunpack.c.l.b16 %v2932
      %v2984 = vunpack.c.h.b16 %v2932
      %v2985 = vunpack.c.l.b16 %v2933
      %v2986 = vunpack.c.h.b16 %v2933
      %v2987 = vunpack.c.l.b16 %v2934
      %v2988 = vunpack.c.h.b16 %v2934
      %v2989 = vunpack.c.l.b16 %v2935
      %v2990 = vunpack.c.h.b16 %v2935
      %v2991 = vunpack.c.l.b16 %v2936
      %v2992 = vunpack.c.h.b16 %v2936
      %v2993 = vunpack.c.l.b16 %v2937
      %v2994 = vunpack.c.h.b16 %v2937
      %v2995 = vunpack.c.l.b16 %v2938
      %v2996 = vunpack.c.h.b16 %v2938
      %v2997 = vunpack.c.l.b16 %v2939
      %v2998 = vunpack.c.h.b16 %v2939
      %v2999 = vunpack.c.l.b16 %v2940
      %v3000 = vunpack.c.h.b16 %v2940
      %v3001 = vpack.c.b16 %v2971, %v2969
      %v3002 = vpack.c.b16 %v2972, %v2970
      %v3003 = vpack.c.b16 %v2975, %v2973
      %v3004 = vpack.c.b16 %v2976, %v2974
      %v3005 = vpack.c.b16 %v2979, %v2977
      %v3006 = vpack.c.b16 %v2980, %v2978
      %v3007 = vpack.c.b16 %v2983, %v2981
      %v3008 = vpack.c.b16 %v2984, %v2982
      %v3009 = vpack.c.b16 %v2987, %v2985
      %v3010 = vpack.c.b16 %v2988, %v2986
      %v3011 = vpack.c.b16 %v2991, %v2989
      %v3012 = vpack.c.b16 %v2992, %v2990
      %v3013 = vpack.c.b16 %v2995, %v2993
      %v3014 = vpack.c.b16 %v2996, %v2994
      %v3015 = vpack.c.b16 %v2999, %v2997
      %v3016 = vpack.c.b16 %v3000, %v2998
      %3033 = vmatprep.subr.bf16.mxu0 %v3016
      %3034 = vmatpush1.bf16.msra.mxu0 %v3015
      %3035 = vmatprep.subr.bf16.mxu0 %v3014
      %3036 = vmatpush1.bf16.msra.mxu0 %v3013
      %3037 = vmatprep.subr.bf16.mxu0 %v3012
      %3038 = vmatpush1.bf16.msra.mxu0 %v3011
      %3039 = vmatprep.subr.bf16.mxu0 %v3010
      %3040 = vmatpush1.bf16.msra.mxu0 %v3009
      %3041 = vmatprep.subr.bf16.mxu0 %v3008
      %3042 = vmatpush1.bf16.msra.mxu0 %v3007
      %3043 = vmatprep.subr.bf16.mxu0 %v3006
      %3044 = vmatpush1.bf16.msra.mxu0 %v3005
      %3045 = vmatprep.subr.bf16.mxu0 %v3004
      %3046 = vmatpush1.bf16.msra.mxu0 %v3003
      %3047 = vmatprep.subr.bf16.mxu0 %v3002
      %3048 = vmatpush1.bf16.msra.mxu0 %v3001
      %3049 = vmatprep.subr.bf16.mxu0 0
      %3050 = vmatpush2.bf16.msra.mxu0 0
      %3051 = vmatprep.subr.bf16.mxu0 0
      %3052 = vmatpush2.bf16.msra.mxu0 0
      %3053 = vmatprep.subr.bf16.mxu0 0
      %3054 = vmatpush2.bf16.msra.mxu0 0
      %3055 = vmatprep.subr.bf16.mxu0 0
      %3056 = vmatpush2.bf16.msra.mxu0 0
      %3057 = vmatprep.subr.bf16.mxu0 0
      %3058 = vmatpush2.bf16.msra.mxu0 0
      %3059 = vmatprep.subr.bf16.mxu0 0
      %3060 = vmatpush2.bf16.msra.mxu0 0
      %3061 = vmatprep.subr.bf16.mxu0 0
      %3062 = vmatpush2.bf16.msra.mxu0 0
      %3063 = vmatprep.subr.bf16.mxu0 0
      %3064 = vmatpush2.bf16.msra.mxu0 0
      %3065 = vmatprep.mubr.bf16.mxu0 0
      %3066 = vmatmul.mubr.bf16.gmra.mxu0 %v2924
      %v3067 = vpop.f32.mrf.mxu0
      %v3068 = vadd.f32 %v2946, %v3067
      %v3069 = vpop.f32.mrf.mxu0
      %v3070 = vadd.f32 %v2950, %v3069
      %v3071 = vpop.f32.mrf.mxu0
      %v3072 = vpop.f32.mrf.mxu0
      %3073 = vdwg.mxu0
      %v3074 = vmul.f32 %v3068, 0.5
      %v3075 = vmul.f32 %v3070, 0.5
      %v3076 = vmul.f32 %v3068, 0.044715
      %v3077 = vmul.f32 %v3070, 0.044715
      %v3078 = vmul.f32 %v3076, %v3068
      %v3079 = vmul.f32 %v3077, %v3070
      %v3080 = vmul.f32 %v3078, %v3068
      %v3081 = vmul.f32 %v3079, %v3070
      %v3082 = vadd.f32 %v3068, %v3080
      %v3083 = vadd.f32 %v3070, %v3081
      %v3084 = vmul.f32 %v3082, 0.7978846
      %v3085 = vmul.f32 %v3083, 0.7978846
      %v3086 = vtanh.pop %v3084
      %v3087 = vtanh.pop %v3085
      %v3088 = vadd.f32 %v3086, 1.0
      %v3089 = vadd.f32 %v3087, 1.0
      %v3090 = vmul.f32 %v3074, %v3088
      %v3091 = vmul.f32 %v3075, %v3089
      %v3092 = vpack.c.bf16 %v3090, %v3090
      %v3093 = vpack.c.bf16 %v3091, %v3091
      %v3094 = vld [vmem:[%s820] sm:$0xf]
      %v3095 = vld [vmem:[%s820 + $0x4] sm:$0xf]
      %v3096 = vld [vmem:[%s820 + $0x8] sm:$0xf]
      %v3097 = vld [vmem:[%s820 + $0xc] sm:$0xf]
      %v3098 = vld [vmem:[%s820 + $0x10] sm:$0xf]
      %v3099 = vld [vmem:[%s820 + $0x14] sm:$0xf]
      %v3100 = vld [vmem:[%s820 + $0x18] sm:$0xf]
      %v3101 = vld [vmem:[%s820 + $0x1c] sm:$0xf]
      %v3102 = vld [vmem:[%s820 + $0x20] sm:$0xf]
      %v3103 = vld [vmem:[%s820 + $0x24] sm:$0xf]
      %v3104 = vld [vmem:[%s820 + $0x28] sm:$0xf]
      %v3105 = vld [vmem:[%s820 + $0x2c] sm:$0xf]
      %v3106 = vld [vmem:[%s820 + $0x30] sm:$0xf]
      %v3107 = vld [vmem:[%s820 + $0x34] sm:$0xf]
      %v3108 = vld [vmem:[%s820 + $0x38] sm:$0xf]
      %v3109 = vld [vmem:[%s820 + $0x3c] sm:$0xf]
      %v3110 = vld [vmem:[%s820 + $0x40] sm:$0xf]
      %v3111 = vld [vmem:[%s820 + $0x44] sm:$0xf]
      %v3112 = vld [vmem:[%s820 + $0x48] sm:$0xf]
      %v3113 = vld [vmem:[%s820 + $0x4c] sm:$0xf]
      %v3114 = vld [vmem:[%s820 + $0x50] sm:$0xf]
      %v3115 = vld [vmem:[%s820 + $0x54] sm:$0xf]
      %v3116 = vld [vmem:[%s820 + $0x58] sm:$0xf]
      %v3117 = vld [vmem:[%s820 + $0x5c] sm:$0xf]
      %v3118 = vld [vmem:[%s820 + $0x60] sm:$0xf]
      %v3119 = vld [vmem:[%s820 + $0x64] sm:$0xf]
      %v3120 = vld [vmem:[%s820 + $0x68] sm:$0xf]
      %v3121 = vld [vmem:[%s820 + $0x6c] sm:$0xf]
      %v3122 = vld [vmem:[%s820 + $0x70] sm:$0xf]
      %v3123 = vld [vmem:[%s820 + $0x74] sm:$0xf]
      %v3124 = vld [vmem:[%s820 + $0x78] sm:$0xf]
      %v3125 = vld [vmem:[%s820 + $0x7c] sm:$0xf]
      %v3126 = vld [vmem:[%s823] sm:$0x1]
      %v3128 = vlaneseq
      %v3129 = vshrl.u32 %v3128, 7
      %v3130 = vsub.s32 0, %v3129
      %v3131 = vrot.slane %v3126, %v3130
      %v3165 = vunpack.c.l.b16 %v3094
      %v3166 = vunpack.c.l.b16 %v3095
      %v3167 = vunpack.c.l.b16 %v3096
      %v3168 = vunpack.c.l.b16 %v3097
      %v3169 = vunpack.c.l.b16 %v3098
      %v3170 = vunpack.c.l.b16 %v3099
      %v3171 = vunpack.c.l.b16 %v3100
      %v3172 = vunpack.c.l.b16 %v3101
      %v3173 = vunpack.c.l.b16 %v3102
      %v3174 = vunpack.c.l.b16 %v3103
      %v3175 = vunpack.c.l.b16 %v3104
      %v3176 = vunpack.c.l.b16 %v3105
      %v3177 = vunpack.c.l.b16 %v3106
      %v3178 = vunpack.c.l.b16 %v3107
      %v3179 = vunpack.c.l.b16 %v3108
      %v3180 = vunpack.c.l.b16 %v3109
      %v3181 = vunpack.c.l.b16 %v3110
      %v3182 = vunpack.c.l.b16 %v3111
      %v3183 = vunpack.c.l.b16 %v3112
      %v3184 = vunpack.c.l.b16 %v3113
      %v3185 = vunpack.c.l.b16 %v3114
      %v3186 = vunpack.c.l.b16 %v3115
      %v3187 = vunpack.c.l.b16 %v3116
      %v3188 = vunpack.c.l.b16 %v3117
      %v3189 = vunpack.c.l.b16 %v3118
      %v3190 = vunpack.c.l.b16 %v3119
      %v3191 = vunpack.c.l.b16 %v3120
      %v3192 = vunpack.c.l.b16 %v3121
      %v3193 = vunpack.c.l.b16 %v3122
      %v3194 = vunpack.c.l.b16 %v3123
      %v3195 = vunpack.c.l.b16 %v3124
      %v3196 = vunpack.c.l.b16 %v3125
      %v3197 = vpack.c.b16 %v3166, %v3165
      %v3198 = vpack.c.b16 %v3168, %v3167
      %v3199 = vpack.c.b16 %v3170, %v3169
      %v3200 = vpack.c.b16 %v3172, %v3171
      %v3201 = vpack.c.b16 %v3174, %v3173
      %v3202 = vpack.c.b16 %v3176, %v3175
      %v3203 = vpack.c.b16 %v3178, %v3177
      %v3204 = vpack.c.b16 %v3180, %v3179
      %v3205 = vpack.c.b16 %v3182, %v3181
      %v3206 = vpack.c.b16 %v3184, %v3183
      %v3207 = vpack.c.b16 %v3186, %v3185
      %v3208 = vpack.c.b16 %v3188, %v3187
      %v3209 = vpack.c.b16 %v3190, %v3189
      %v3210 = vpack.c.b16 %v3192, %v3191
      %v3211 = vpack.c.b16 %v3194, %v3193
      %v3212 = vpack.c.b16 %v3196, %v3195
      %3229 = vmatprep.subr.bf16.mxu0 0
      %3230 = vmatpush1.bf16.msra.mxu0 %v3204
      %3231 = vmatprep.subr.bf16.mxu0 0
      %3232 = vmatpush1.bf16.msra.mxu0 %v3203
      %3233 = vmatprep.subr.bf16.mxu0 0
      %3234 = vmatpush1.bf16.msra.mxu0 %v3202
      %3235 = vmatprep.subr.bf16.mxu0 0
      %3236 = vmatpush1.bf16.msra.mxu0 %v3201
      %3237 = vmatprep.subr.bf16.mxu0 0
      %3238 = vmatpush1.bf16.msra.mxu0 %v3200
      %3239 = vmatprep.subr.bf16.mxu0 0
      %3240 = vmatpush1.bf16.msra.mxu0 %v3199
      %3241 = vmatprep.subr.bf16.mxu0 0
      %3242 = vmatpush1.bf16.msra.mxu0 %v3198
      %3243 = vmatprep.subr.bf16.mxu0 0
      %3244 = vmatpush1.bf16.msra.mxu0 %v3197
      %3245 = vmatprep.subr.bf16.mxu0 0
      %3246 = vmatpush2.bf16.msra.mxu0 %v3212
      %3247 = vmatprep.subr.bf16.mxu0 0
      %3248 = vmatpush2.bf16.msra.mxu0 %v3211
      %3249 = vmatprep.subr.bf16.mxu0 0
      %3250 = vmatpush2.bf16.msra.mxu0 %v3210
      %3251 = vmatprep.subr.bf16.mxu0 0
      %3252 = vmatpush2.bf16.msra.mxu0 %v3209
      %3253 = vmatprep.subr.bf16.mxu0 0
      %3254 = vmatpush2.bf16.msra.mxu0 %v3208
      %3255 = vmatprep.subr.bf16.mxu0 0
      %3256 = vmatpush2.bf16.msra.mxu0 %v3207
      %3257 = vmatprep.subr.bf16.mxu0 0
      %3258 = vmatpush2.bf16.msra.mxu0 %v3206
      %3259 = vmatprep.subr.bf16.mxu0 0
      %3260 = vmatpush2.bf16.msra.mxu0 %v3205
      %3261 = vmatprep.mubr.bf16.mxu0 %v3093
      %3262 = vmatmul.mubr.bf16.gmra.mxu0 %v3092
      %v3263 = vpop.f32.mrf.mxu0
      %v3264 = vadd.f32 %v3131, %v3263
      %v3265 = vpop.f32.mrf.mxu0
      %v3266 = vpop.f32.mrf.mxu0
      %v3267 = vpop.f32.mrf.mxu0
      %3268 = vdwg.mxu0
      %v3269 = vadd.f32 %v2894, %v3264
      %3270 = vst [vmem:[%s827] sm:$0x1f] %v3269
      %p3271 = scmp.lt.s32.totalorder %s32, 1
      %s3272 = scalar_select %p3271, %s32, 1
      %s3273 = smul.addr %s3272, 8
      %s3274 = scalar_lea.vmem %s17, %s3273
      // Predicated region
      $region93: #{vit_forward.4} parent=87 // pred_check
        %p3275 = pneg %p500
      $region94: #{vit_forward.4} parent=87 // pred_check_branch
        %3277 = sbr.rel (%p3275) target = $region96
      $region95: #{vit_forward.4} parent=87 // pred_region
        _
      $region96: #{vit_forward.4} parent=87 // pred_fallthru
        _
    $region88: #{vit_forward.4} parent=5 // pred_fallthru
      _
    %p3278 = scmp.le.s32.totalorder 2, %s23
    // Predicated region
    $region97: #{vit_forward.4} parent=5 // pred_check
      %p3279 = pneg %p3278
    $region98: #{vit_forward.4} parent=5 // pred_check_branch
      %3281 = sbr.rel (%p3279) target = $region100
    $region99: #{vit_forward.4} parent=5 // pred_region
      %s3282 = ssub.s32 %s23, 2
      // Predicated region
      $region101: #{vit_forward.4} parent=99 // pred_check
        %p3283 = pneg %p506
      $region102: #{vit_forward.4} parent=99 // pred_check_branch
        %3285 = sbr.rel (%p3283) target = $region104
      $region103: #{vit_forward.4} parent=99 // pred_region
        %p3286 = scmp.lt.s32.totalorder %s34, 1
        %s3287 = scalar_select %p3286, %s34, 1
        %s3288 = smul.addr %s3287, 8
        %s3289 = scalar_lea.vmem %s17, %s3288
      $region104: #{vit_forward.4} parent=99 // pred_fallthru
        _
    $region100: #{vit_forward.4} parent=5 // pred_fallthru
      _
  $region6: #{vit_forward.4} parent=0 // loop_footer
    %s27 = sadd.s32 1, %s23
  $region7: #{vit_forward.4} parent=0 // loop_footer_branch
    %22 = sbr.rel target = $region3
  $region8: #{vit_forward.4} parent=0 // loop_exit
    _

</llo_original>
